<compile_context>
chip_gen: v7x
topology: tpu7x:2x2x1
jax: 0.10.0
libtpu: 0.0.40
codegen_flags: <defaults>
</compile_context>

<pallas_src>
import jax
import jax.numpy as jnp
from jax.experimental import pallas as pl
from jax.experimental.pallas import tpu as pltpu

IN_FEATURES = 3 * 32 * 32      # 3072
HIDDEN = 300
HIDDEN_PAD = 384               # 3 x 128 lanes; keep at 384 (512 would slow v5e)
OUT = 10

_MAX_BATCH_TILE = 512
_VMEM_LIMIT_BYTES = 48 * 1024 * 1024
_COMPUTE_DTYPE = jnp.bfloat16


def _round_up(n, m):
    return ((n + m - 1) // m) * m


def prepare_params(w1, w2, compute_dtype=_COMPUTE_DTYPE):
    """One-time weight prep (call at init, NOT per forward).

    w1: (300, 3072) float32  -- PyTorch nn.Linear layout
    w2: (10, 300)   float32
    Returns (w1_p, w2_p): (3072, 384) and (384, 10) in `compute_dtype`,
    zero-padded along the hidden dim (ReLU keeps padded columns at exactly 0).
    """
    w1_t = jnp.asarray(w1).T.astype(compute_dtype)                     # (3072, 300)
    w2_t = jnp.asarray(w2).T.astype(compute_dtype)                     # (300, 10)
    w1_p = jnp.pad(w1_t, ((0, 0), (0, HIDDEN_PAD - HIDDEN)))           # (3072, 384)
    w2_p = jnp.pad(w2_t, ((0, HIDDEN_PAD - HIDDEN), (0, 0)))           # (384, 10)
    return w1_p, w2_p


def _mlp_logsoftmax_kernel(x_ref, w1_ref, w2_ref, o_ref):
    # fc1 (bias=False): bf16 MXU matmul, f32 accumulation.
    x = x_ref[...]
    if x.dtype != w1_ref.dtype:          # no-op when x arrives as bf16
        x = x.astype(w1_ref.dtype)
    h = jnp.dot(x, w1_ref[...], preferred_element_type=jnp.float32)
    # ReLU (padded hidden columns are exactly 0 and stay 0).
    h = jnp.maximum(h, 0.0)
    # fc2 (bias=False).
    y = jnp.dot(h.astype(w2_ref.dtype), w2_ref[...],
                preferred_element_type=jnp.float32)
    # Numerically-stable log_softmax over the class axis, in f32.
    m = jnp.max(y, axis=-1, keepdims=True)
    s = y - m
    lse = jnp.log(jnp.sum(jnp.exp(s), axis=-1, keepdims=True))
    o_ref[...] = (s - lse).astype(o_ref.dtype)


def net_forward(x_nchw, w1_p, w2_p):
    """Forward pass.

    x_nchw: (B, 3, 32, 32), ideally already bfloat16 (upstream producer).
    w1_p, w2_p: outputs of prepare_params()  (pre-transposed / padded / bf16)
    returns (B, 10) float32 log-probabilities.
    """
    B = x_nchw.shape[0]
    x2d = x_nchw.reshape(B, IN_FEATURES)          # same ordering as torch .view()
    if x2d.dtype != w1_p.dtype:
        # Fallback cast. For the real DMA win the producer should emit bf16
        # so the f32 copy never touches HBM.
        x2d = x2d.astype(w1_p.dtype)

    # Ragged-aware batch tiling with >= 2 grid steps (keeps both v7x TCs busy,
    # near-free on single-TC v5e/v6e) and minimal row padding for awkward B.
    nt = max(2, pl.cdiv(B, _MAX_BATCH_TILE))
    tb = _round_up(pl.cdiv(B, nt), 16)
    b_pad = nt * tb
    if b_pad != B:
        x2d = jnp.pad(x2d, ((0, b_pad - B), (0, 0)))

    grid = (nt,)

    itemsize_x = jnp.dtype(x2d.dtype).itemsize
    itemsize_w = jnp.dtype(w1_p.dtype).itemsize
    cost = pl.CostEstimate(
        flops=2 * b_pad * IN_FEATURES * HIDDEN_PAD + 2 * b_pad * HIDDEN_PAD * OUT,
        transcendentals=b_pad * OUT,
        bytes_accessed=(b_pad * IN_FEATURES * itemsize_x
                        + w1_p.size * itemsize_w
                        + w2_p.size * itemsize_w
                        + b_pad * OUT * 4),
    )

    out = pl.pallas_call(
        _mlp_logsoftmax_kernel,
        out_shape=jax.ShapeDtypeStruct((b_pad, OUT), jnp.float32),
        grid=grid,
        in_specs=[
            # x: pipelined (double-buffered) per batch tile.
            pl.BlockSpec((tb, IN_FEATURES), lambda i: (i, 0)),
            # W1 / W2: grid-invariant, resident, single-buffered (VMEM headroom).
            pl.BlockSpec((IN_FEATURES, HIDDEN_PAD), lambda i: (0, 0),
                         pipeline_mode=pl.Buffered(1)),
            pl.BlockSpec((HIDDEN_PAD, OUT), lambda i: (0, 0),
                         pipeline_mode=pl.Buffered(1)),
        ],
        out_specs=pl.BlockSpec((tb, OUT), lambda i: (i, 0)),
        compiler_params=pltpu.CompilerParams(
            dimension_semantics=("parallel",),   # shard batch tiles across TCs on v7x
            vmem_limit_bytes=_VMEM_LIMIT_BYTES,
        ),
        cost_estimate=cost,
    )(x2d, w1_p, w2_p)

    return out[:B]


# TODO(synk): clip_weights / normalize_weights are training-time parameter
# mutations, not part of forward(); intentionally not implemented here.


def _reference_forward_bf16(x_bf16_nchw, w1_p, w2_p):
    """Emulates the kernel's bf16-input / f32-accumulate arithmetic."""
    x = x_bf16_nchw.reshape(x_bf16_nchw.shape[0], IN_FEATURES).astype(jnp.float32)
    h = jnp.maximum(jnp.dot(x, w1_p.astype(jnp.float32)), 0.0)
    y = jnp.dot(h.astype(jnp.bfloat16).astype(jnp.float32), w2_p.astype(jnp.float32))
    return jax.nn.log_softmax(y, axis=-1)


def _reference_forward_f32(x_nchw, w1, w2):
    x = x_nchw.reshape(x_nchw.shape[0], IN_FEATURES)
    h = jnp.maximum(x @ w1.T, 0.0)
    y = h @ w2.T
    return jax.nn.log_softmax(y, axis=-1)


if __name__ == "__main__":
    key = jax.random.PRNGKey(0)
    kx, k1, k2 = jax.random.split(key, 3)

    B = 8
    x_f32 = jax.random.normal(kx, (B, 3, 32, 32), dtype=jnp.float32)
    # Emulate an upstream producer that emits bf16 activations.
    x_bf16 = x_f32.astype(jnp.bfloat16)

    # Deterministic init mimicking nn.Linear's uniform(-1/sqrt(fan_in), 1/sqrt(fan_in))
    b1 = 1.0 / jnp.sqrt(IN_FEATURES)
    b2 = 1.0 / jnp.sqrt(HIDDEN)
    w1 = jax.random.uniform(k1, (HIDDEN, IN_FEATURES), jnp.float32, -b1, b1)
    w2 = jax.random.uniform(k2, (OUT, HIDDEN), jnp.float32, -b2, b2)

    # One-time weight preparation (transpose + pad + bf16 cast), outside forward.
    w1_p, w2_p = prepare_params(w1, w2)

    fwd = jax.jit(net_forward)
    out = jax.block_until_ready(fwd(x_bf16, w1_p, w2_p))

    assert out.shape == (B, OUT)

    ref_bf16 = _reference_forward_bf16(x_bf16, w1_p, w2_p)
    assert jnp.allclose(out, ref_bf16, atol=5e-3, rtol=5e-3), \
        "mismatch vs bf16-matched JAX reference"

    ref_f32 = _reference_forward_f32(x_f32, w1, w2)
    assert jnp.allclose(out, ref_f32, atol=5e-2, rtol=5e-2), \
        "mismatch vs f32 JAX reference"

    # log_softmax rows must (approximately) normalize.
    assert jnp.allclose(jnp.sum(jnp.exp(out), axis=-1), 1.0, atol=1e-3)

    print("KERNEL_OK")
</pallas_src>

<mosaic_0001>
module attributes {stable_mosaic.version = 11 : i64} {
  func.func @_mlp_logsoftmax_kernel(%arg0: i32, %arg1: memref<16x3072xbf16, #tpu.memory_space<vmem>>, %arg2: memref<3072x384xbf16, #tpu.memory_space<vmem>>, %arg3: memref<384x10xbf16, #tpu.memory_space<vmem>>, %arg4: memref<16x10xf32, #tpu.memory_space<vmem>>) attributes {dimension_semantics = [#tpu.dimension_semantics<parallel>], iteration_bounds = array<i64: 2>, scalar_prefetch = 0 : i64, scratch_operands = 0 : i64, tpu.core_type = #tpu.core_type<tc>, window_params = [{transform_indices = @transform_0, window_bounds = array<i64: 16, 3072>}, {pipeline_mode = #tpu.pipeline_mode<synchronous>, transform_indices = @transform_1, window_bounds = array<i64: 3072, 384>}, {pipeline_mode = #tpu.pipeline_mode<synchronous>, transform_indices = @transform_2, window_bounds = array<i64: 384, 10>}, {transform_indices = @transform_3, window_bounds = array<i64: 16, 10>}]} {
    %c0 = arith.constant 0 : index
    %c0_0 = arith.constant 0 : index
    %0 = vector.load %arg1[%c0, %c0_0] : memref<16x3072xbf16, #tpu.memory_space<vmem>>, vector<16x3072xbf16>
    %c0_1 = arith.constant 0 : index
    %c0_2 = arith.constant 0 : index
    %1 = vector.load %arg2[%c0_1, %c0_2] : memref<3072x384xbf16, #tpu.memory_space<vmem>>, vector<3072x384xbf16>
    %cst = arith.constant dense<0.000000e+00> : vector<16x384xf32>
    %2 = tpu.matmul %0, %1, %cst {dimension_numbers = #tpu.dot_dimension_numbers<[1], [0], [0], [1], [0, 0, 1, 1], [], []>} : vector<16x3072xbf16>, vector<3072x384xbf16>, vector<16x384xf32> -> vector<16x384xf32>
    %cst_3 = arith.constant 0.000000e+00 : f32
    %3 = vector.broadcast %cst_3 : f32 to vector<16x384xf32>
    %4 = arith.maximumf %2, %3 : vector<16x384xf32>
    %5 = arith.truncf %4 : vector<16x384xf32> to vector<16x384xbf16>
    %c0_4 = arith.constant 0 : index
    %c0_5 = arith.constant 0 : index
    %6 = vector.load %arg3[%c0_4, %c0_5] : memref<384x10xbf16, #tpu.memory_space<vmem>>, vector<384x10xbf16>
    %cst_6 = arith.constant dense<0.000000e+00> : vector<16x10xf32>
    %7 = tpu.matmul %5, %6, %cst_6 {dimension_numbers = #tpu.dot_dimension_numbers<[1], [0], [0], [1], [0, 0, 1, 1], [], []>} : vector<16x384xbf16>, vector<384x10xbf16>, vector<16x10xf32> -> vector<16x10xf32>
    %cst_7 = arith.constant dense<0xFF800000> : vector<16xf32>
    %8 = vector.multi_reduction <maximumf>, %7, %cst_7 [1] : vector<16x10xf32> to vector<16xf32>
    %9 = vector.shape_cast %8 : vector<16xf32> to vector<16x1xf32>
    %10 = vector.broadcast %9 : vector<16x1xf32> to vector<16x10xf32>
    %11 = arith.subf %7, %10 : vector<16x10xf32>
    %12 = math.exp %11 : vector<16x10xf32>
    %cst_8 = arith.constant dense<0.000000e+00> : vector<16xf32>
    %13 = vector.multi_reduction <add>, %12, %cst_8 [1] : vector<16x10xf32> to vector<16xf32>
    %14 = vector.shape_cast %13 : vector<16xf32> to vector<16x1xf32>
    %15 = math.log %14 : vector<16x1xf32>
    %16 = vector.broadcast %15 : vector<16x1xf32> to vector<16x10xf32>
    %17 = arith.subf %11, %16 : vector<16x10xf32>
    %c0_9 = arith.constant 0 : index
    %c0_10 = arith.constant 0 : index
    %18 = vector.load %arg4[%c0_9, %c0_10] : memref<16x10xf32, #tpu.memory_space<vmem>>, vector<16x10xf32>
    tpu.vector_store %arg4[%c0_9, %c0_10], %17 {strides = array<i32>} : memref<16x10xf32, #tpu.memory_space<vmem>>, vector<16x10xf32>,
    return
  }
  func.func @transform_0(%arg0: i32) -> (i32, i32) {
    %c0_i32 = arith.constant 0 : i32
    %c0_i32_0 = arith.constant 0 : i32
    return %arg0, %c0_i32 : i32, i32
  }
  func.func @transform_1(%arg0: i32) -> (i32, i32) {
    %c0_i32 = arith.constant 0 : i32
    %c0_i32_0 = arith.constant 0 : i32
    %c0_i32_1 = arith.constant 0 : i32
    return %c0_i32, %c0_i32_0 : i32, i32
  }
  func.func @transform_2(%arg0: i32) -> (i32, i32) {
    %c0_i32 = arith.constant 0 : i32
    %c0_i32_0 = arith.constant 0 : i32
    %c0_i32_1 = arith.constant 0 : i32
    return %c0_i32, %c0_i32_0 : i32, i32
  }
  func.func @transform_3(%arg0: i32) -> (i32, i32) {
    %c0_i32 = arith.constant 0 : i32
    %c0_i32_0 = arith.constant 0 : i32
    return %arg0, %c0_i32 : i32, i32
  }
}

</mosaic_0001>

<llo_original>
// kernel: net_forward.1
$region0: #{net_forward.1}
  #allocation0 [shape = 'u32[]', space=smem, size = 0x4, offset = 0x4, fixed_abs, tag = 'smem constant byte address 0x4 - core index']
  #allocation1 [shape = 'u32[144,128]{1,0:T(1,128)}', space=vmem, size = 0x12000, scoped, tag = 'internal scratch']
  %s0 = inlined_call_operand.vmem [shape: bf16[32,3072], index: 0, kind: input, shape index: {}]
  %s1 = inlined_call_operand.hbm [shape: bf16[3072,384], index: 1, kind: input, shape index: {}]
  %s2 = inlined_call_operand.vmem [shape: bf16[384,10], index: 2, kind: input, shape index: {}]
  %s3 = inlined_call_operand.vmem [shape: f32[32,10], index: 3, kind: output, shape index: {}]
  %s4 = sld [smem:[#allocation0]]
  $region49: #{net_forward.1} parent=0
    _
  %s6 = ssub.s32 1, %s4
  %s7 = scalar_select 0, %s6, %s4
  $region1: #{net_forward.1} parent=0
    #allocation2 [shape = 'u8[2359296]{0}', space=vmem, size = 0x240000, scoped, tag = 'input window, operand 1, single buffered']
    #allocation3 [shape = 's32[2]{0}', space=sflag, size = 0x8, scoped, tag = 'scoped memory for net_forward.1']
    %8 = vsyncpa [#allocation3], 0
    loop: start=0, step=1, limit=4
    $region2: #{net_forward.1} parent=1 // loop_pre_header
      _
    $region3: #{net_forward.1} parent=1 // loop_header
      %s10 = sphi 0, %s14
      %p11 = scmp.ge.s32.totalorder %s10, 4
      %s20 = sphi 0, %s22
      %s23 = sphi 0, %s20
      %s24 = sphi 0, %s23
      %s40 = sphi 0, %s24
      %s44 = sphi 0, %s44
      %s46 = sphi 0, %s44
      %s47 = sphi 0, %s46
      %s61 = sphi 0, %s47
      %s65 = sphi 0, %s65
      %s67 = sphi 0, %s65
      %s68 = sphi 0, %s67
      %s82 = sphi 0, %s68
      %s88 = sphi 0, %s90
      %s91 = sphi 0, %s88
      %s92 = sphi 0, %s91
      %s108 = sphi 0, %s92
    $region4: #{net_forward.1} parent=1 // loop_header_branch
      %13 = sbr.rel (%p11) target = $region8
    $region5: #{net_forward.1} parent=1 // loop_body
      %s15 = ssub.s32 %s10, 1
      %s16 = ssub.s32 %s10, 2
      %s17 = sadd.s32 %s10, 1
      %s18 = ssub.s32 %s10, %s17
      %p19 = scmp.eq.s32.totalorder %s18, 0
      %s21 = sadd.s32 %s20, 1
      %s22 = scalar_select %p19, %s20, %s21
      %p25 = pneg %p19
      %p26 = scmp.eq.s32.totalorder %s10, 1
      %p27 = por %p25, %p26
      %p28 = scmp.ne.s32.totalorder %s20, %s23
      %p29 = scmp.eq.s32.totalorder %s10, 0
      %p30 = por %p28, %p29
      %p31 = scmp.ne.s32.totalorder %s20, %s23
      %p32 = scmp.eq.s32.totalorder %s15, 1
      %p33 = por %p31, %p32
      %p34 = scmp.ne.s32.totalorder %s23, %s24
      %p35 = scmp.eq.s32.totalorder %s15, 0
      %p36 = por %p34, %p35
      %p37 = scmp.ne.s32.totalorder %s23, %s24
      %p38 = scmp.eq.s32.totalorder %s16, 1
      %p39 = por %p37, %p38
      %p41 = scmp.ne.s32.totalorder %s24, %s40
      %p42 = scmp.eq.s32.totalorder %s16, 0
      %p43 = por %p41, %p42
      %s45 = sadd.s32 %s44, 1
      %p48 = scmp.eq.s32.totalorder %s10, 1
      %p49 = scmp.ne.s32.totalorder %s44, %s46
      %p50 = scmp.eq.s32.totalorder %s10, 0
      %p51 = por %p49, %p50
      %p52 = scmp.ne.s32.totalorder %s44, %s46
      %p53 = scmp.eq.s32.totalorder %s15, 1
      %p54 = por %p52, %p53
      %p55 = scmp.ne.s32.totalorder %s46, %s47
      %p56 = scmp.eq.s32.totalorder %s15, 0
      %p57 = por %p55, %p56
      %p58 = scmp.ne.s32.totalorder %s46, %s47
      %p59 = scmp.eq.s32.totalorder %s16, 1
      %p60 = por %p58, %p59
      %p62 = scmp.ne.s32.totalorder %s47, %s61
      %p63 = scmp.eq.s32.totalorder %s16, 0
      %p64 = por %p62, %p63
      %s66 = sadd.s32 %s65, 1
      %p69 = scmp.eq.s32.totalorder %s10, 1
      %p70 = scmp.ne.s32.totalorder %s65, %s67
      %p71 = scmp.eq.s32.totalorder %s10, 0
      %p72 = por %p70, %p71
      %p73 = scmp.ne.s32.totalorder %s65, %s67
      %p74 = scmp.eq.s32.totalorder %s15, 1
      %p75 = por %p73, %p74
      %p76 = scmp.ne.s32.totalorder %s67, %s68
      %p77 = scmp.eq.s32.totalorder %s15, 0
      %p78 = por %p76, %p77
      %p79 = scmp.ne.s32.totalorder %s67, %s68
      %p80 = scmp.eq.s32.totalorder %s16, 1
      %p81 = por %p79, %p80
      %p83 = scmp.ne.s32.totalorder %s68, %s82
      %p84 = scmp.eq.s32.totalorder %s16, 0
      %p85 = por %p83, %p84
      %s86 = ssub.s32 %s10, %s17
      %p87 = scmp.eq.s32.totalorder %s86, 0
      %s89 = sadd.s32 %s88, 1
      %s90 = scalar_select %p87, %s88, %s89
      %p93 = pneg %p87
      %p94 = scmp.eq.s32.totalorder %s10, 1
      %p95 = por %p93, %p94
      %p96 = scmp.ne.s32.totalorder %s88, %s91
      %p97 = scmp.eq.s32.totalorder %s10, 0
      %p98 = por %p96, %p97
      %p99 = scmp.ne.s32.totalorder %s88, %s91
      %p100 = scmp.eq.s32.totalorder %s15, 1
      %p101 = por %p99, %p100
      %p102 = scmp.ne.s32.totalorder %s91, %s92
      %p103 = scmp.eq.s32.totalorder %s15, 0
      %p104 = por %p102, %p103
      %p105 = scmp.ne.s32.totalorder %s91, %s92
      %p106 = scmp.eq.s32.totalorder %s16, 1
      %p107 = por %p105, %p106
      %p109 = scmp.ne.s32.totalorder %s92, %s108
      %p110 = scmp.eq.s32.totalorder %s16, 0
      %p111 = por %p109, %p110
      %p112 = scmp.le.s32.totalorder 1, %s10
      %p113 = scmp.lt.s32.totalorder %s10, 3
      %p114 = pnand %p112, %p113
      %p115 = pneg %p114
      // Predicated region
      $region9: #{net_forward.1} parent=5 // pred_check
        _
      $region10: #{net_forward.1} parent=5 // pred_check_branch
        %117 = sbr.rel (%p114) target = $region12
      $region11: #{net_forward.1} parent=5 // pred_region
        %s118 = ssub.s32 %s10, 1
        // Predicated region
        $region13: #{net_forward.1} parent=11 // pred_check
          %p119 = pneg %p57
        $region14: #{net_forward.1} parent=11 // pred_check_branch
          %121 = sbr.rel (%p119) target = $region16
        $region15: #{net_forward.1} parent=11 // pred_region
          %s123 = ssub.s32 73728, 73728
          %124 = vsyncadd [#allocation3], %s123
          %s125 = sshll.u32 [#allocation2], 4
          %s126 = int_to_ptr.vmem [resolvable:$true] %s125
          %131 = dma.hbm_to_vmem [thread:$0]  %s1, 73728, %s126, [#allocation3], 192, 192, 12
        $region16: #{net_forward.1} parent=11 // pred_fallthru
          _
        // Predicated region
        $region17: #{net_forward.1} parent=11 // pred_check
          %p132 = pneg %p78
        $region18: #{net_forward.1} parent=11 // pred_check_branch
          %134 = sbr.rel (%p132) target = $region20
        $region19: #{net_forward.1} parent=11 // pred_region
          _
        $region20: #{net_forward.1} parent=11 // pred_fallthru
          _
      $region12: #{net_forward.1} parent=5 // pred_fallthru
        _
      %p135 = scmp.lt.s32.totalorder %s10, 2
      // Predicated region
      $region21: #{net_forward.1} parent=5 // pred_check
        %p136 = pneg %p135
      $region22: #{net_forward.1} parent=5 // pred_check_branch
        %138 = sbr.rel (%p136) target = $region24
      $region23: #{net_forward.1} parent=5 // pred_region
        // Predicated region
        $region25: #{net_forward.1} parent=23 // pred_check
          %p139 = pneg %p30
        $region26: #{net_forward.1} parent=23 // pred_check_branch
          %141 = sbr.rel (%p139) target = $region28
        $region27: #{net_forward.1} parent=23 // pred_region
          %s142 = smul.u32 2, %s10
          %p143 = scmp.lt.s32.totalorder %s142, 3
          %s144 = scalar_select %p143, %s142, 3
          %s145 = smul.addr %s144, 24
          %s146 = smul.addr %s145, 4
          %s147 = scalar_lea.vmem %s0, %s146
          %s148 = smul.u32 2, %s10
        $region28: #{net_forward.1} parent=23 // pred_fallthru
          _
      $region24: #{net_forward.1} parent=5 // pred_fallthru
        _
      %p149 = scmp.le.s32.totalorder 1, %s10
      %p150 = scmp.lt.s32.totalorder %s10, 3
      %p151 = pnand %p149, %p150
      %p152 = pneg %p151
      // Predicated region
      $region29: #{net_forward.1} parent=5 // pred_check
        _
      $region30: #{net_forward.1} parent=5 // pred_check_branch
        %154 = sbr.rel (%p151) target = $region32
      $region31: #{net_forward.1} parent=5 // pred_region
        %s155 = ssub.s32 %s10, 1
        // Predicated region
        $region33: #{net_forward.1} parent=31 // pred_check
          %p156 = pneg %p57
        $region34: #{net_forward.1} parent=31 // pred_check_branch
          %158 = sbr.rel (%p156) target = $region36
        $region35: #{net_forward.1} parent=31 // pred_region
          %159 = dma.done [#allocation3], 73728
        $region36: #{net_forward.1} parent=31 // pred_fallthru
          _
        %s160 = smul.u32 2, %s15
        %p161 = scmp.lt.s32.totalorder %s160, 3
        %s162 = scalar_select %p161, %s160, 3
        %s163 = smul.addr %s162, 24
        %s164 = smul.addr %s163, 4
        %s165 = scalar_lea.vmem %s0, %s164
        %p166 = pneg %p36
        %p167 = pneg %p33
        %p168 = pneg %p57
        %p169 = pneg %p54
        %p170 = pneg %p78
        %p171 = pneg %p75
        %p172 = pneg %p104
        %p173 = pneg %p101
        %s174 = smul.u32 2, %s15
        %p175 = scmp.lt.s32.totalorder %s174, 3
        %s176 = scalar_select %p175, %s174, 3
        %s177 = smul.addr %s176, 8
        %s178 = scalar_lea.vmem %s3, %s177
        %s179 = smul.u32 2, %s15
        %p180 = scmp.lt.s32.totalorder %s179, 3
        %s181 = scalar_select %p180, %s179, 3
        %s182 = smul.addr %s181, 24
        %s183 = smul.addr %s182, 4
        %s184 = scalar_lea.vmem %s0, %s183
        %s185 = smul.u32 2, %s15
        %s186 = smul.u32 2, %s15
        %p187 = scmp.lt.s32.totalorder %s186, 3
        %s188 = scalar_select %p187, %s186, 3
        %s189 = smul.addr %s188, 8
        %s190 = scalar_lea.vmem %s3, %s189
        %s191 = smul.u32 2, %s15
        %v193 = vld [vmem:[%s184] sm:$0xff]
        %v194 = vld [vmem:[%s184 + $0x8] sm:$0xff]
        %v195 = vld [vmem:[%s184 + $0x10] sm:$0xff]
        %v196 = vld [vmem:[%s184 + $0x18] sm:$0xff]
        %v197 = vld [vmem:[%s184 + $0x20] sm:$0xff]
        %v198 = vld [vmem:[%s184 + $0x28] sm:$0xff]
        %v199 = vld [vmem:[%s184 + $0x30] sm:$0xff]
        %v200 = vld [vmem:[%s184 + $0x38] sm:$0xff]
        %v201 = vld [vmem:[%s184 + $0x40] sm:$0xff]
        %v202 = vld [vmem:[%s184 + $0x48] sm:$0xff]
        %v203 = vld [vmem:[%s184 + $0x50] sm:$0xff]
        %v204 = vld [vmem:[%s184 + $0x58] sm:$0xff]
        %v205 = vld [vmem:[%s184 + $0x60] sm:$0xff]
        %v206 = vld [vmem:[%s184 + $0x68] sm:$0xff]
        %v207 = vld [vmem:[%s184 + $0x70] sm:$0xff]
        %v208 = vld [vmem:[%s184 + $0x78] sm:$0xff]
        %v209 = vld [vmem:[%s184 + $0x80] sm:$0xff]
        %v210 = vld [vmem:[%s184 + $0x88] sm:$0xff]
        %v211 = vld [vmem:[%s184 + $0x90] sm:$0xff]
        %v212 = vld [vmem:[%s184 + $0x98] sm:$0xff]
        %v213 = vld [vmem:[%s184 + $0xa0] sm:$0xff]
        %v214 = vld [vmem:[%s184 + $0xa8] sm:$0xff]
        %v215 = vld [vmem:[%s184 + $0xb0] sm:$0xff]
        %v216 = vld [vmem:[%s184 + $0xb8] sm:$0xff]
        %v217 = vld [vmem:[#allocation2] sm:$0xff]
        %v218 = vld [vmem:[#allocation2 + $0x8] sm:$0xf]
        %v219 = vld [vmem:[#allocation2 + $0xc] sm:$0xff]
        %v220 = vld [vmem:[#allocation2 + $0x14] sm:$0xf]
        %v221 = vld [vmem:[#allocation2 + $0x18] sm:$0xff]
        %v222 = vld [vmem:[#allocation2 + $0x20] sm:$0xf]
        %v223 = vld [vmem:[#allocation2 + $0x24] sm:$0xff]
        %v224 = vld [vmem:[#allocation2 + $0x2c] sm:$0xf]
        %v225 = vld [vmem:[#allocation2 + $0x30] sm:$0xff]
        %v226 = vld [vmem:[#allocation2 + $0x38] sm:$0xf]
        %v227 = vld [vmem:[#allocation2 + $0x3c] sm:$0xff]
        %v228 = vld [vmem:[#allocation2 + $0x44] sm:$0xf]
        %v229 = vld [vmem:[#allocation2 + $0x48] sm:$0xff]
        %v230 = vld [vmem:[#allocation2 + $0x50] sm:$0xf]
        %v231 = vld [vmem:[#allocation2 + $0x54] sm:$0xff]
        %v232 = vld [vmem:[#allocation2 + $0x5c] sm:$0xf]
        %v233 = vld [vmem:[#allocation2 + $0x60] sm:$0xff]
        %v234 = vld [vmem:[#allocation2 + $0x68] sm:$0xf]
        %v235 = vld [vmem:[#allocation2 + $0x6c] sm:$0xff]
        %v236 = vld [vmem:[#allocation2 + $0x74] sm:$0xf]
        %v237 = vld [vmem:[#allocation2 + $0x78] sm:$0xff]
        %v238 = vld [vmem:[#allocation2 + $0x80] sm:$0xf]
        %v239 = vld [vmem:[#allocation2 + $0x84] sm:$0xff]
        %v240 = vld [vmem:[#allocation2 + $0x8c] sm:$0xf]
        %v241 = vld [vmem:[#allocation2 + $0x90] sm:$0xff]
        %v242 = vld [vmem:[#allocation2 + $0x98] sm:$0xf]
        %v243 = vld [vmem:[#allocation2 + $0x9c] sm:$0xff]
        %v244 = vld [vmem:[#allocation2 + $0xa4] sm:$0xf]
        %v245 = vld [vmem:[#allocation2 + $0xa8] sm:$0xff]
        %v246 = vld [vmem:[#allocation2 + $0xb0] sm:$0xf]
        %v247 = vld [vmem:[#allocation2 + $0xb4] sm:$0xff]
        %v248 = vld [vmem:[#allocation2 + $0xbc] sm:$0xf]
        %v249 = vld [vmem:[#allocation2 + $0xc0] sm:$0xff]
        %v250 = vld [vmem:[#allocation2 + $0xc8] sm:$0xf]
        %v251 = vld [vmem:[#allocation2 + $0xcc] sm:$0xff]
        %v252 = vld [vmem:[#allocation2 + $0xd4] sm:$0xf]
        %v253 = vld [vmem:[#allocation2 + $0xd8] sm:$0xff]
        %v254 = vld [vmem:[#allocation2 + $0xe0] sm:$0xf]
        %v255 = vld [vmem:[#allocation2 + $0xe4] sm:$0xff]
        %v256 = vld [vmem:[#allocation2 + $0xec] sm:$0xf]
        %v257 = vld [vmem:[#allocation2 + $0xf0] sm:$0xff]
        %v258 = vld [vmem:[#allocation2 + $0xf8] sm:$0xf]
        %v259 = vld [vmem:[#allocation2 + $0xfc] sm:$0xff]
        %v260 = vld [vmem:[#allocation2 + $0x104] sm:$0xf]
        %v261 = vld [vmem:[#allocation2 + $0x108] sm:$0xff]
        %v262 = vld [vmem:[#allocation2 + $0x110] sm:$0xf]
        %v263 = vld [vmem:[#allocation2 + $0x114] sm:$0xff]
        %v264 = vld [vmem:[#allocation2 + $0x11c] sm:$0xf]
        %v265 = vld [vmem:[#allocation2 + $0x120] sm:$0xff]
        %v266 = vld [vmem:[#allocation2 + $0x128] sm:$0xf]
        %v267 = vld [vmem:[#allocation2 + $0x12c] sm:$0xff]
        %v268 = vld [vmem:[#allocation2 + $0x134] sm:$0xf]
        %v269 = vld [vmem:[#allocation2 + $0x138] sm:$0xff]
        %v270 = vld [vmem:[#allocation2 + $0x140] sm:$0xf]
        %v271 = vld [vmem:[#allocation2 + $0x144] sm:$0xff]
        %v272 = vld [vmem:[#allocation2 + $0x14c] sm:$0xf]
        %v273 = vld [vmem:[#allocation2 + $0x150] sm:$0xff]
        %v274 = vld [vmem:[#allocation2 + $0x158] sm:$0xf]
        %v275 = vld [vmem:[#allocation2 + $0x15c] sm:$0xff]
        %v276 = vld [vmem:[#allocation2 + $0x164] sm:$0xf]
        %v277 = vld [vmem:[#allocation2 + $0x168] sm:$0xff]
        %v278 = vld [vmem:[#allocation2 + $0x170] sm:$0xf]
        %v279 = vld [vmem:[#allocation2 + $0x174] sm:$0xff]
        %v280 = vld [vmem:[#allocation2 + $0x17c] sm:$0xf]
        %v281 = vld [vmem:[#allocation2 + $0x180] sm:$0xff]
        %v282 = vld [vmem:[#allocation2 + $0x188] sm:$0xf]
        %v283 = vld [vmem:[#allocation2 + $0x18c] sm:$0xff]
        %v284 = vld [vmem:[#allocation2 + $0x194] sm:$0xf]
        %v285 = vld [vmem:[#allocation2 + $0x198] sm:$0xff]
        %v286 = vld [vmem:[#allocation2 + $0x1a0] sm:$0xf]
        %v287 = vld [vmem:[#allocation2 + $0x1a4] sm:$0xff]
        %v288 = vld [vmem:[#allocation2 + $0x1ac] sm:$0xf]
        %v289 = vld [vmem:[#allocation2 + $0x1b0] sm:$0xff]
        %v290 = vld [vmem:[#allocation2 + $0x1b8] sm:$0xf]
        %v291 = vld [vmem:[#allocation2 + $0x1bc] sm:$0xff]
        %v292 = vld [vmem:[#allocation2 + $0x1c4] sm:$0xf]
        %v293 = vld [vmem:[#allocation2 + $0x1c8] sm:$0xff]
        %v294 = vld [vmem:[#allocation2 + $0x1d0] sm:$0xf]
        %v295 = vld [vmem:[#allocation2 + $0x1d4] sm:$0xff]
        %v296 = vld [vmem:[#allocation2 + $0x1dc] sm:$0xf]
        %v297 = vld [vmem:[#allocation2 + $0x1e0] sm:$0xff]
        %v298 = vld [vmem:[#allocation2 + $0x1e8] sm:$0xf]
        %v299 = vld [vmem:[#allocation2 + $0x1ec] sm:$0xff]
        %v300 = vld [vmem:[#allocation2 + $0x1f4] sm:$0xf]
        %v301 = vld [vmem:[#allocation2 + $0x1f8] sm:$0xff]
        %v302 = vld [vmem:[#allocation2 + $0x200] sm:$0xf]
        %v303 = vld [vmem:[#allocation2 + $0x204] sm:$0xff]
        %v304 = vld [vmem:[#allocation2 + $0x20c] sm:$0xf]
        %v305 = vld [vmem:[#allocation2 + $0x210] sm:$0xff]
        %v306 = vld [vmem:[#allocation2 + $0x218] sm:$0xf]
        %v307 = vld [vmem:[#allocation2 + $0x21c] sm:$0xff]
        %v308 = vld [vmem:[#allocation2 + $0x224] sm:$0xf]
        %v309 = vld [vmem:[#allocation2 + $0x228] sm:$0xff]
        %v310 = vld [vmem:[#allocation2 + $0x230] sm:$0xf]
        %v311 = vld [vmem:[#allocation2 + $0x234] sm:$0xff]
        %v312 = vld [vmem:[#allocation2 + $0x23c] sm:$0xf]
        %v313 = vld [vmem:[#allocation2 + $0x240] sm:$0xff]
        %v314 = vld [vmem:[#allocation2 + $0x248] sm:$0xf]
        %v315 = vld [vmem:[#allocation2 + $0x24c] sm:$0xff]
        %v316 = vld [vmem:[#allocation2 + $0x254] sm:$0xf]
        %v317 = vld [vmem:[#allocation2 + $0x258] sm:$0xff]
        %v318 = vld [vmem:[#allocation2 + $0x260] sm:$0xf]
        %v319 = vld [vmem:[#allocation2 + $0x264] sm:$0xff]
        %v320 = vld [vmem:[#allocation2 + $0x26c] sm:$0xf]
        %v321 = vld [vmem:[#allocation2 + $0x270] sm:$0xff]
        %v322 = vld [vmem:[#allocation2 + $0x278] sm:$0xf]
        %v323 = vld [vmem:[#allocation2 + $0x27c] sm:$0xff]
        %v324 = vld [vmem:[#allocation2 + $0x284] sm:$0xf]
        %v325 = vld [vmem:[#allocation2 + $0x288] sm:$0xff]
        %v326 = vld [vmem:[#allocation2 + $0x290] sm:$0xf]
        %v327 = vld [vmem:[#allocation2 + $0x294] sm:$0xff]
        %v328 = vld [vmem:[#allocation2 + $0x29c] sm:$0xf]
        %v329 = vld [vmem:[#allocation2 + $0x2a0] sm:$0xff]
        %v330 = vld [vmem:[#allocation2 + $0x2a8] sm:$0xf]
        %v331 = vld [vmem:[#allocation2 + $0x2ac] sm:$0xff]
        %v332 = vld [vmem:[#allocation2 + $0x2b4] sm:$0xf]
        %v333 = vld [vmem:[#allocation2 + $0x2b8] sm:$0xff]
        %v334 = vld [vmem:[#allocation2 + $0x2c0] sm:$0xf]
        %v335 = vld [vmem:[#allocation2 + $0x2c4] sm:$0xff]
        %v336 = vld [vmem:[#allocation2 + $0x2cc] sm:$0xf]
        %v337 = vld [vmem:[#allocation2 + $0x2d0] sm:$0xff]
        %v338 = vld [vmem:[#allocation2 + $0x2d8] sm:$0xf]
        %v339 = vld [vmem:[#allocation2 + $0x2dc] sm:$0xff]
        %v340 = vld [vmem:[#allocation2 + $0x2e4] sm:$0xf]
        %v341 = vld [vmem:[#allocation2 + $0x2e8] sm:$0xff]
        %v342 = vld [vmem:[#allocation2 + $0x2f0] sm:$0xf]
        %v343 = vld [vmem:[#allocation2 + $0x2f4] sm:$0xff]
        %v344 = vld [vmem:[#allocation2 + $0x2fc] sm:$0xf]
        %v345 = vld [vmem:[#allocation2 + $0x300] sm:$0xff]
        %v346 = vld [vmem:[#allocation2 + $0x308] sm:$0xf]
        %v347 = vld [vmem:[#allocation2 + $0x30c] sm:$0xff]
        %v348 = vld [vmem:[#allocation2 + $0x314] sm:$0xf]
        %v349 = vld [vmem:[#allocation2 + $0x318] sm:$0xff]
        %v350 = vld [vmem:[#allocation2 + $0x320] sm:$0xf]
        %v351 = vld [vmem:[#allocation2 + $0x324] sm:$0xff]
        %v352 = vld [vmem:[#allocation2 + $0x32c] sm:$0xf]
        %v353 = vld [vmem:[#allocation2 + $0x330] sm:$0xff]
        %v354 = vld [vmem:[#allocation2 + $0x338] sm:$0xf]
        %v355 = vld [vmem:[#allocation2 + $0x33c] sm:$0xff]
        %v356 = vld [vmem:[#allocation2 + $0x344] sm:$0xf]
        %v357 = vld [vmem:[#allocation2 + $0x348] sm:$0xff]
        %v358 = vld [vmem:[#allocation2 + $0x350] sm:$0xf]
        %v359 = vld [vmem:[#allocation2 + $0x354] sm:$0xff]
        %v360 = vld [vmem:[#allocation2 + $0x35c] sm:$0xf]
        %v361 = vld [vmem:[#allocation2 + $0x360] sm:$0xff]
        %v362 = vld [vmem:[#allocation2 + $0x368] sm:$0xf]
        %v363 = vld [vmem:[#allocation2 + $0x36c] sm:$0xff]
        %v364 = vld [vmem:[#allocation2 + $0x374] sm:$0xf]
        %v365 = vld [vmem:[#allocation2 + $0x378] sm:$0xff]
        %v366 = vld [vmem:[#allocation2 + $0x380] sm:$0xf]
        %v367 = vld [vmem:[#allocation2 + $0x384] sm:$0xff]
        %v368 = vld [vmem:[#allocation2 + $0x38c] sm:$0xf]
        %v369 = vld [vmem:[#allocation2 + $0x390] sm:$0xff]
        %v370 = vld [vmem:[#allocation2 + $0x398] sm:$0xf]
        %v371 = vld [vmem:[#allocation2 + $0x39c] sm:$0xff]
        %v372 = vld [vmem:[#allocation2 + $0x3a4] sm:$0xf]
        %v373 = vld [vmem:[#allocation2 + $0x3a8] sm:$0xff]
        %v374 = vld [vmem:[#allocation2 + $0x3b0] sm:$0xf]
        %v375 = vld [vmem:[#allocation2 + $0x3b4] sm:$0xff]
        %v376 = vld [vmem:[#allocation2 + $0x3bc] sm:$0xf]
        %v377 = vld [vmem:[#allocation2 + $0x3c0] sm:$0xff]
        %v378 = vld [vmem:[#allocation2 + $0x3c8] sm:$0xf]
        %v379 = vld [vmem:[#allocation2 + $0x3cc] sm:$0xff]
        %v380 = vld [vmem:[#allocation2 + $0x3d4] sm:$0xf]
        %v381 = vld [vmem:[#allocation2 + $0x3d8] sm:$0xff]
        %v382 = vld [vmem:[#allocation2 + $0x3e0] sm:$0xf]
        %v383 = vld [vmem:[#allocation2 + $0x3e4] sm:$0xff]
        %v384 = vld [vmem:[#allocation2 + $0x3ec] sm:$0xf]
        %v385 = vld [vmem:[#allocation2 + $0x3f0] sm:$0xff]
        %v386 = vld [vmem:[#allocation2 + $0x3f8] sm:$0xf]
        %v387 = vld [vmem:[#allocation2 + $0x3fc] sm:$0xff]
        %v388 = vld [vmem:[#allocation2 + $0x404] sm:$0xf]
        %v389 = vld [vmem:[#allocation2 + $0x408] sm:$0xff]
        %v390 = vld [vmem:[#allocation2 + $0x410] sm:$0xf]
        %v391 = vld [vmem:[#allocation2 + $0x414] sm:$0xff]
        %v392 = vld [vmem:[#allocation2 + $0x41c] sm:$0xf]
        %v393 = vld [vmem:[#allocation2 + $0x420] sm:$0xff]
        %v394 = vld [vmem:[#allocation2 + $0x428] sm:$0xf]
        %v395 = vld [vmem:[#allocation2 + $0x42c] sm:$0xff]
        %v396 = vld [vmem:[#allocation2 + $0x434] sm:$0xf]
        %v397 = vld [vmem:[#allocation2 + $0x438] sm:$0xff]
        %v398 = vld [vmem:[#allocation2 + $0x440] sm:$0xf]
        %v399 = vld [vmem:[#allocation2 + $0x444] sm:$0xff]
        %v400 = vld [vmem:[#allocation2 + $0x44c] sm:$0xf]
        %v401 = vld [vmem:[#allocation2 + $0x450] sm:$0xff]
        %v402 = vld [vmem:[#allocation2 + $0x458] sm:$0xf]
        %v403 = vld [vmem:[#allocation2 + $0x45c] sm:$0xff]
        %v404 = vld [vmem:[#allocation2 + $0x464] sm:$0xf]
        %v405 = vld [vmem:[#allocation2 + $0x468] sm:$0xff]
        %v406 = vld [vmem:[#allocation2 + $0x470] sm:$0xf]
        %v407 = vld [vmem:[#allocation2 + $0x474] sm:$0xff]
        %v408 = vld [vmem:[#allocation2 + $0x47c] sm:$0xf]
        %v409 = vld [vmem:[#allocation2 + $0x480] sm:$0xff]
        %v410 = vld [vmem:[#allocation2 + $0x488] sm:$0xf]
        %v411 = vld [vmem:[#allocation2 + $0x48c] sm:$0xff]
        %v412 = vld [vmem:[#allocation2 + $0x494] sm:$0xf]
        %v413 = vld [vmem:[#allocation2 + $0x498] sm:$0xff]
        %v414 = vld [vmem:[#allocation2 + $0x4a0] sm:$0xf]
        %v415 = vld [vmem:[#allocation2 + $0x4a4] sm:$0xff]
        %v416 = vld [vmem:[#allocation2 + $0x4ac] sm:$0xf]
        %v417 = vld [vmem:[#allocation2 + $0x4b0] sm:$0xff]
        %v418 = vld [vmem:[#allocation2 + $0x4b8] sm:$0xf]
        %v419 = vld [vmem:[#allocation2 + $0x4bc] sm:$0xff]
        %v420 = vld [vmem:[#allocation2 + $0x4c4] sm:$0xf]
        %v421 = vld [vmem:[#allocation2 + $0x4c8] sm:$0xff]
        %v422 = vld [vmem:[#allocation2 + $0x4d0] sm:$0xf]
        %v423 = vld [vmem:[#allocation2 + $0x4d4] sm:$0xff]
        %v424 = vld [vmem:[#allocation2 + $0x4dc] sm:$0xf]
        %v425 = vld [vmem:[#allocation2 + $0x4e0] sm:$0xff]
        %v426 = vld [vmem:[#allocation2 + $0x4e8] sm:$0xf]
        %v427 = vld [vmem:[#allocation2 + $0x4ec] sm:$0xff]
        %v428 = vld [vmem:[#allocation2 + $0x4f4] sm:$0xf]
        %v429 = vld [vmem:[#allocation2 + $0x4f8] sm:$0xff]
        %v430 = vld [vmem:[#allocation2 + $0x500] sm:$0xf]
        %v431 = vld [vmem:[#allocation2 + $0x504] sm:$0xff]
        %v432 = vld [vmem:[#allocation2 + $0x50c] sm:$0xf]
        %v433 = vld [vmem:[#allocation2 + $0x510] sm:$0xff]
        %v434 = vld [vmem:[#allocation2 + $0x518] sm:$0xf]
        %v435 = vld [vmem:[#allocation2 + $0x51c] sm:$0xff]
        %v436 = vld [vmem:[#allocation2 + $0x524] sm:$0xf]
        %v437 = vld [vmem:[#allocation2 + $0x528] sm:$0xff]
        %v438 = vld [vmem:[#allocation2 + $0x530] sm:$0xf]
        %v439 = vld [vmem:[#allocation2 + $0x534] sm:$0xff]
        %v440 = vld [vmem:[#allocation2 + $0x53c] sm:$0xf]
        %v441 = vld [vmem:[#allocation2 + $0x540] sm:$0xff]
        %v442 = vld [vmem:[#allocation2 + $0x548] sm:$0xf]
        %v443 = vld [vmem:[#allocation2 + $0x54c] sm:$0xff]
        %v444 = vld [vmem:[#allocation2 + $0x554] sm:$0xf]
        %v445 = vld [vmem:[#allocation2 + $0x558] sm:$0xff]
        %v446 = vld [vmem:[#allocation2 + $0x560] sm:$0xf]
        %v447 = vld [vmem:[#allocation2 + $0x564] sm:$0xff]
        %v448 = vld [vmem:[#allocation2 + $0x56c] sm:$0xf]
        %v449 = vld [vmem:[#allocation2 + $0x570] sm:$0xff]
        %v450 = vld [vmem:[#allocation2 + $0x578] sm:$0xf]
        %v451 = vld [vmem:[#allocation2 + $0x57c] sm:$0xff]
        %v452 = vld [vmem:[#allocation2 + $0x584] sm:$0xf]
        %v453 = vld [vmem:[#allocation2 + $0x588] sm:$0xff]
        %v454 = vld [vmem:[#allocation2 + $0x590] sm:$0xf]
        %v455 = vld [vmem:[#allocation2 + $0x594] sm:$0xff]
        %v456 = vld [vmem:[#allocation2 + $0x59c] sm:$0xf]
        %v457 = vld [vmem:[#allocation2 + $0x5a0] sm:$0xff]
        %v458 = vld [vmem:[#allocation2 + $0x5a8] sm:$0xf]
        %v459 = vld [vmem:[#allocation2 + $0x5ac] sm:$0xff]
        %v460 = vld [vmem:[#allocation2 + $0x5b4] sm:$0xf]
        %v461 = vld [vmem:[#allocation2 + $0x5b8] sm:$0xff]
        %v462 = vld [vmem:[#allocation2 + $0x5c0] sm:$0xf]
        %v463 = vld [vmem:[#allocation2 + $0x5c4] sm:$0xff]
        %v464 = vld [vmem:[#allocation2 + $0x5cc] sm:$0xf]
        %v465 = vld [vmem:[#allocation2 + $0x5d0] sm:$0xff]
        %v466 = vld [vmem:[#allocation2 + $0x5d8] sm:$0xf]
        %v467 = vld [vmem:[#allocation2 + $0x5dc] sm:$0xff]
        %v468 = vld [vmem:[#allocation2 + $0x5e4] sm:$0xf]
        %v469 = vld [vmem:[#allocation2 + $0x5e8] sm:$0xff]
        %v470 = vld [vmem:[#allocation2 + $0x5f0] sm:$0xf]
        %v471 = vld [vmem:[#allocation2 + $0x5f4] sm:$0xff]
        %v472 = vld [vmem:[#allocation2 + $0x5fc] sm:$0xf]
        %v473 = vld [vmem:[#allocation2 + $0x600] sm:$0xff]
        %v474 = vld [vmem:[#allocation2 + $0x608] sm:$0xf]
        %v475 = vld [vmem:[#allocation2 + $0x60c] sm:$0xff]
        %v476 = vld [vmem:[#allocation2 + $0x614] sm:$0xf]
        %v477 = vld [vmem:[#allocation2 + $0x618] sm:$0xff]
        %v478 = vld [vmem:[#allocation2 + $0x620] sm:$0xf]
        %v479 = vld [vmem:[#allocation2 + $0x624] sm:$0xff]
        %v480 = vld [vmem:[#allocation2 + $0x62c] sm:$0xf]
        %v481 = vld [vmem:[#allocation2 + $0x630] sm:$0xff]
        %v482 = vld [vmem:[#allocation2 + $0x638] sm:$0xf]
        %v483 = vld [vmem:[#allocation2 + $0x63c] sm:$0xff]
        %v484 = vld [vmem:[#allocation2 + $0x644] sm:$0xf]
        %v485 = vld [vmem:[#allocation2 + $0x648] sm:$0xff]
        %v486 = vld [vmem:[#allocation2 + $0x650] sm:$0xf]
        %v487 = vld [vmem:[#allocation2 + $0x654] sm:$0xff]
        %v488 = vld [vmem:[#allocation2 + $0x65c] sm:$0xf]
        %v489 = vld [vmem:[#allocation2 + $0x660] sm:$0xff]
        %v490 = vld [vmem:[#allocation2 + $0x668] sm:$0xf]
        %v491 = vld [vmem:[#allocation2 + $0x66c] sm:$0xff]
        %v492 = vld [vmem:[#allocation2 + $0x674] sm:$0xf]
        %v493 = vld [vmem:[#allocation2 + $0x678] sm:$0xff]
        %v494 = vld [vmem:[#allocation2 + $0x680] sm:$0xf]
        %v495 = vld [vmem:[#allocation2 + $0x684] sm:$0xff]
        %v496 = vld [vmem:[#allocation2 + $0x68c] sm:$0xf]
        %v497 = vld [vmem:[#allocation2 + $0x690] sm:$0xff]
        %v498 = vld [vmem:[#allocation2 + $0x698] sm:$0xf]
        %v499 = vld [vmem:[#allocation2 + $0x69c] sm:$0xff]
        %v500 = vld [vmem:[#allocation2 + $0x6a4] sm:$0xf]
        %v501 = vld [vmem:[#allocation2 + $0x6a8] sm:$0xff]
        %v502 = vld [vmem:[#allocation2 + $0x6b0] sm:$0xf]
        %v503 = vld [vmem:[#allocation2 + $0x6b4] sm:$0xff]
        %v504 = vld [vmem:[#allocation2 + $0x6bc] sm:$0xf]
        %v505 = vld [vmem:[#allocation2 + $0x6c0] sm:$0xff]
        %v506 = vld [vmem:[#allocation2 + $0x6c8] sm:$0xf]
        %v507 = vld [vmem:[#allocation2 + $0x6cc] sm:$0xff]
        %v508 = vld [vmem:[#allocation2 + $0x6d4] sm:$0xf]
        %v509 = vld [vmem:[#allocation2 + $0x6d8] sm:$0xff]
        %v510 = vld [vmem:[#allocation2 + $0x6e0] sm:$0xf]
        %v511 = vld [vmem:[#allocation2 + $0x6e4] sm:$0xff]
        %v512 = vld [vmem:[#allocation2 + $0x6ec] sm:$0xf]
        %v513 = vld [vmem:[#allocation2 + $0x6f0] sm:$0xff]
        %v514 = vld [vmem:[#allocation2 + $0x6f8] sm:$0xf]
        %v515 = vld [vmem:[#allocation2 + $0x6fc] sm:$0xff]
        %v516 = vld [vmem:[#allocation2 + $0x704] sm:$0xf]
        %v517 = vld [vmem:[#allocation2 + $0x708] sm:$0xff]
        %v518 = vld [vmem:[#allocation2 + $0x710] sm:$0xf]
        %v519 = vld [vmem:[#allocation2 + $0x714] sm:$0xff]
        %v520 = vld [vmem:[#allocation2 + $0x71c] sm:$0xf]
        %v521 = vld [vmem:[#allocation2 + $0x720] sm:$0xff]
        %v522 = vld [vmem:[#allocation2 + $0x728] sm:$0xf]
        %v523 = vld [vmem:[#allocation2 + $0x72c] sm:$0xff]
        %v524 = vld [vmem:[#allocation2 + $0x734] sm:$0xf]
        %v525 = vld [vmem:[#allocation2 + $0x738] sm:$0xff]
        %v526 = vld [vmem:[#allocation2 + $0x740] sm:$0xf]
        %v527 = vld [vmem:[#allocation2 + $0x744] sm:$0xff]
        %v528 = vld [vmem:[#allocation2 + $0x74c] sm:$0xf]
        %v529 = vld [vmem:[#allocation2 + $0x750] sm:$0xff]
        %v530 = vld [vmem:[#allocation2 + $0x758] sm:$0xf]
        %v531 = vld [vmem:[#allocation2 + $0x75c] sm:$0xff]
        %v532 = vld [vmem:[#allocation2 + $0x764] sm:$0xf]
        %v533 = vld [vmem:[#allocation2 + $0x768] sm:$0xff]
        %v534 = vld [vmem:[#allocation2 + $0x770] sm:$0xf]
        %v535 = vld [vmem:[#allocation2 + $0x774] sm:$0xff]
        %v536 = vld [vmem:[#allocation2 + $0x77c] sm:$0xf]
        %v537 = vld [vmem:[#allocation2 + $0x780] sm:$0xff]
        %v538 = vld [vmem:[#allocation2 + $0x788] sm:$0xf]
        %v539 = vld [vmem:[#allocation2 + $0x78c] sm:$0xff]
        %v540 = vld [vmem:[#allocation2 + $0x794] sm:$0xf]
        %v541 = vld [vmem:[#allocation2 + $0x798] sm:$0xff]
        %v542 = vld [vmem:[#allocation2 + $0x7a0] sm:$0xf]
        %v543 = vld [vmem:[#allocation2 + $0x7a4] sm:$0xff]
        %v544 = vld [vmem:[#allocation2 + $0x7ac] sm:$0xf]
        %v545 = vld [vmem:[#allocation2 + $0x7b0] sm:$0xff]
        %v546 = vld [vmem:[#allocation2 + $0x7b8] sm:$0xf]
        %v547 = vld [vmem:[#allocation2 + $0x7bc] sm:$0xff]
        %v548 = vld [vmem:[#allocation2 + $0x7c4] sm:$0xf]
        %v549 = vld [vmem:[#allocation2 + $0x7c8] sm:$0xff]
        %v550 = vld [vmem:[#allocation2 + $0x7d0] sm:$0xf]
        %v551 = vld [vmem:[#allocation2 + $0x7d4] sm:$0xff]
        %v552 = vld [vmem:[#allocation2 + $0x7dc] sm:$0xf]
        %v553 = vld [vmem:[#allocation2 + $0x7e0] sm:$0xff]
        %v554 = vld [vmem:[#allocation2 + $0x7e8] sm:$0xf]
        %v555 = vld [vmem:[#allocation2 + $0x7ec] sm:$0xff]
        %v556 = vld [vmem:[#allocation2 + $0x7f4] sm:$0xf]
        %v557 = vld [vmem:[#allocation2 + $0x7f8] sm:$0xff]
        %v558 = vld [vmem:[#allocation2 + $0x800] sm:$0xf]
        %v559 = vld [vmem:[#allocation2 + $0x804] sm:$0xff]
        %v560 = vld [vmem:[#allocation2 + $0x80c] sm:$0xf]
        %v561 = vld [vmem:[#allocation2 + $0x810] sm:$0xff]
        %v562 = vld [vmem:[#allocation2 + $0x818] sm:$0xf]
        %v563 = vld [vmem:[#allocation2 + $0x81c] sm:$0xff]
        %v564 = vld [vmem:[#allocation2 + $0x824] sm:$0xf]
        %v565 = vld [vmem:[#allocation2 + $0x828] sm:$0xff]
        %v566 = vld [vmem:[#allocation2 + $0x830] sm:$0xf]
        %v567 = vld [vmem:[#allocation2 + $0x834] sm:$0xff]
        %v568 = vld [vmem:[#allocation2 + $0x83c] sm:$0xf]
        %v569 = vld [vmem:[#allocation2 + $0x840] sm:$0xff]
        %v570 = vld [vmem:[#allocation2 + $0x848] sm:$0xf]
        %v571 = vld [vmem:[#allocation2 + $0x84c] sm:$0xff]
        %v572 = vld [vmem:[#allocation2 + $0x854] sm:$0xf]
        %v573 = vld [vmem:[#allocation2 + $0x858] sm:$0xff]
        %v574 = vld [vmem:[#allocation2 + $0x860] sm:$0xf]
        %v575 = vld [vmem:[#allocation2 + $0x864] sm:$0xff]
        %v576 = vld [vmem:[#allocation2 + $0x86c] sm:$0xf]
        %v577 = vld [vmem:[#allocation2 + $0x870] sm:$0xff]
        %v578 = vld [vmem:[#allocation2 + $0x878] sm:$0xf]
        %v579 = vld [vmem:[#allocation2 + $0x87c] sm:$0xff]
        %v580 = vld [vmem:[#allocation2 + $0x884] sm:$0xf]
        %v581 = vld [vmem:[#allocation2 + $0x888] sm:$0xff]
        %v582 = vld [vmem:[#allocation2 + $0x890] sm:$0xf]
        %v583 = vld [vmem:[#allocation2 + $0x894] sm:$0xff]
        %v584 = vld [vmem:[#allocation2 + $0x89c] sm:$0xf]
        %v585 = vld [vmem:[#allocation2 + $0x8a0] sm:$0xff]
        %v586 = vld [vmem:[#allocation2 + $0x8a8] sm:$0xf]
        %v587 = vld [vmem:[#allocation2 + $0x8ac] sm:$0xff]
        %v588 = vld [vmem:[#allocation2 + $0x8b4] sm:$0xf]
        %v589 = vld [vmem:[#allocation2 + $0x8b8] sm:$0xff]
        %v590 = vld [vmem:[#allocation2 + $0x8c0] sm:$0xf]
        %v591 = vld [vmem:[#allocation2 + $0x8c4] sm:$0xff]
        %v592 = vld [vmem:[#allocation2 + $0x8cc] sm:$0xf]
        %v593 = vld [vmem:[#allocation2 + $0x8d0] sm:$0xff]
        %v594 = vld [vmem:[#allocation2 + $0x8d8] sm:$0xf]
        %v595 = vld [vmem:[#allocation2 + $0x8dc] sm:$0xff]
        %v596 = vld [vmem:[#allocation2 + $0x8e4] sm:$0xf]
        %v597 = vld [vmem:[#allocation2 + $0x8e8] sm:$0xff]
        %v598 = vld [vmem:[#allocation2 + $0x8f0] sm:$0xf]
        %v599 = vld [vmem:[#allocation2 + $0x8f4] sm:$0xff]
        %v600 = vld [vmem:[#allocation2 + $0x8fc] sm:$0xf]
        %v601 = vld [vmem:[#allocation2 + $0x900] sm:$0xff]
        %v602 = vld [vmem:[#allocation2 + $0x908] sm:$0xf]
        %v603 = vld [vmem:[#allocation2 + $0x90c] sm:$0xff]
        %v604 = vld [vmem:[#allocation2 + $0x914] sm:$0xf]
        %v605 = vld [vmem:[#allocation2 + $0x918] sm:$0xff]
        %v606 = vld [vmem:[#allocation2 + $0x920] sm:$0xf]
        %v607 = vld [vmem:[#allocation2 + $0x924] sm:$0xff]
        %v608 = vld [vmem:[#allocation2 + $0x92c] sm:$0xf]
        %v609 = vld [vmem:[#allocation2 + $0x930] sm:$0xff]
        %v610 = vld [vmem:[#allocation2 + $0x938] sm:$0xf]
        %v611 = vld [vmem:[#allocation2 + $0x93c] sm:$0xff]
        %v612 = vld [vmem:[#allocation2 + $0x944] sm:$0xf]
        %v613 = vld [vmem:[#allocation2 + $0x948] sm:$0xff]
        %v614 = vld [vmem:[#allocation2 + $0x950] sm:$0xf]
        %v615 = vld [vmem:[#allocation2 + $0x954] sm:$0xff]
        %v616 = vld [vmem:[#allocation2 + $0x95c] sm:$0xf]
        %v617 = vld [vmem:[#allocation2 + $0x960] sm:$0xff]
        %v618 = vld [vmem:[#allocation2 + $0x968] sm:$0xf]
        %v619 = vld [vmem:[#allocation2 + $0x96c] sm:$0xff]
        %v620 = vld [vmem:[#allocation2 + $0x974] sm:$0xf]
        %v621 = vld [vmem:[#allocation2 + $0x978] sm:$0xff]
        %v622 = vld [vmem:[#allocation2 + $0x980] sm:$0xf]
        %v623 = vld [vmem:[#allocation2 + $0x984] sm:$0xff]
        %v624 = vld [vmem:[#allocation2 + $0x98c] sm:$0xf]
        %v625 = vld [vmem:[#allocation2 + $0x990] sm:$0xff]
        %v626 = vld [vmem:[#allocation2 + $0x998] sm:$0xf]
        %v627 = vld [vmem:[#allocation2 + $0x99c] sm:$0xff]
        %v628 = vld [vmem:[#allocation2 + $0x9a4] sm:$0xf]
        %v629 = vld [vmem:[#allocation2 + $0x9a8] sm:$0xff]
        %v630 = vld [vmem:[#allocation2 + $0x9b0] sm:$0xf]
        %v631 = vld [vmem:[#allocation2 + $0x9b4] sm:$0xff]
        %v632 = vld [vmem:[#allocation2 + $0x9bc] sm:$0xf]
        %v633 = vld [vmem:[#allocation2 + $0x9c0] sm:$0xff]
        %v634 = vld [vmem:[#allocation2 + $0x9c8] sm:$0xf]
        %v635 = vld [vmem:[#allocation2 + $0x9cc] sm:$0xff]
        %v636 = vld [vmem:[#allocation2 + $0x9d4] sm:$0xf]
        %v637 = vld [vmem:[#allocation2 + $0x9d8] sm:$0xff]
        %v638 = vld [vmem:[#allocation2 + $0x9e0] sm:$0xf]
        %v639 = vld [vmem:[#allocation2 + $0x9e4] sm:$0xff]
        %v640 = vld [vmem:[#allocation2 + $0x9ec] sm:$0xf]
        %v641 = vld [vmem:[#allocation2 + $0x9f0] sm:$0xff]
        %v642 = vld [vmem:[#allocation2 + $0x9f8] sm:$0xf]
        %v643 = vld [vmem:[#allocation2 + $0x9fc] sm:$0xff]
        %v644 = vld [vmem:[#allocation2 + $0xa04] sm:$0xf]
        %v645 = vld [vmem:[#allocation2 + $0xa08] sm:$0xff]
        %v646 = vld [vmem:[#allocation2 + $0xa10] sm:$0xf]
        %v647 = vld [vmem:[#allocation2 + $0xa14] sm:$0xff]
        %v648 = vld [vmem:[#allocation2 + $0xa1c] sm:$0xf]
        %v649 = vld [vmem:[#allocation2 + $0xa20] sm:$0xff]
        %v650 = vld [vmem:[#allocation2 + $0xa28] sm:$0xf]
        %v651 = vld [vmem:[#allocation2 + $0xa2c] sm:$0xff]
        %v652 = vld [vmem:[#allocation2 + $0xa34] sm:$0xf]
        %v653 = vld [vmem:[#allocation2 + $0xa38] sm:$0xff]
        %v654 = vld [vmem:[#allocation2 + $0xa40] sm:$0xf]
        %v655 = vld [vmem:[#allocation2 + $0xa44] sm:$0xff]
        %v656 = vld [vmem:[#allocation2 + $0xa4c] sm:$0xf]
        %v657 = vld [vmem:[#allocation2 + $0xa50] sm:$0xff]
        %v658 = vld [vmem:[#allocation2 + $0xa58] sm:$0xf]
        %v659 = vld [vmem:[#allocation2 + $0xa5c] sm:$0xff]
        %v660 = vld [vmem:[#allocation2 + $0xa64] sm:$0xf]
        %v661 = vld [vmem:[#allocation2 + $0xa68] sm:$0xff]
        %v662 = vld [vmem:[#allocation2 + $0xa70] sm:$0xf]
        %v663 = vld [vmem:[#allocation2 + $0xa74] sm:$0xff]
        %v664 = vld [vmem:[#allocation2 + $0xa7c] sm:$0xf]
        %v665 = vld [vmem:[#allocation2 + $0xa80] sm:$0xff]
        %v666 = vld [vmem:[#allocation2 + $0xa88] sm:$0xf]
        %v667 = vld [vmem:[#allocation2 + $0xa8c] sm:$0xff]
        %v668 = vld [vmem:[#allocation2 + $0xa94] sm:$0xf]
        %v669 = vld [vmem:[#allocation2 + $0xa98] sm:$0xff]
        %v670 = vld [vmem:[#allocation2 + $0xaa0] sm:$0xf]
        %v671 = vld [vmem:[#allocation2 + $0xaa4] sm:$0xff]
        %v672 = vld [vmem:[#allocation2 + $0xaac] sm:$0xf]
        %v673 = vld [vmem:[#allocation2 + $0xab0] sm:$0xff]
        %v674 = vld [vmem:[#allocation2 + $0xab8] sm:$0xf]
        %v675 = vld [vmem:[#allocation2 + $0xabc] sm:$0xff]
        %v676 = vld [vmem:[#allocation2 + $0xac4] sm:$0xf]
        %v677 = vld [vmem:[#allocation2 + $0xac8] sm:$0xff]
        %v678 = vld [vmem:[#allocation2 + $0xad0] sm:$0xf]
        %v679 = vld [vmem:[#allocation2 + $0xad4] sm:$0xff]
        %v680 = vld [vmem:[#allocation2 + $0xadc] sm:$0xf]
        %v681 = vld [vmem:[#allocation2 + $0xae0] sm:$0xff]
        %v682 = vld [vmem:[#allocation2 + $0xae8] sm:$0xf]
        %v683 = vld [vmem:[#allocation2 + $0xaec] sm:$0xff]
        %v684 = vld [vmem:[#allocation2 + $0xaf4] sm:$0xf]
        %v685 = vld [vmem:[#allocation2 + $0xaf8] sm:$0xff]
        %v686 = vld [vmem:[#allocation2 + $0xb00] sm:$0xf]
        %v687 = vld [vmem:[#allocation2 + $0xb04] sm:$0xff]
        %v688 = vld [vmem:[#allocation2 + $0xb0c] sm:$0xf]
        %v689 = vld [vmem:[#allocation2 + $0xb10] sm:$0xff]
        %v690 = vld [vmem:[#allocation2 + $0xb18] sm:$0xf]
        %v691 = vld [vmem:[#allocation2 + $0xb1c] sm:$0xff]
        %v692 = vld [vmem:[#allocation2 + $0xb24] sm:$0xf]
        %v693 = vld [vmem:[#allocation2 + $0xb28] sm:$0xff]
        %v694 = vld [vmem:[#allocation2 + $0xb30] sm:$0xf]
        %v695 = vld [vmem:[#allocation2 + $0xb34] sm:$0xff]
        %v696 = vld [vmem:[#allocation2 + $0xb3c] sm:$0xf]
        %v697 = vld [vmem:[#allocation2 + $0xb40] sm:$0xff]
        %v698 = vld [vmem:[#allocation2 + $0xb48] sm:$0xf]
        %v699 = vld [vmem:[#allocation2 + $0xb4c] sm:$0xff]
        %v700 = vld [vmem:[#allocation2 + $0xb54] sm:$0xf]
        %v701 = vld [vmem:[#allocation2 + $0xb58] sm:$0xff]
        %v702 = vld [vmem:[#allocation2 + $0xb60] sm:$0xf]
        %v703 = vld [vmem:[#allocation2 + $0xb64] sm:$0xff]
        %v704 = vld [vmem:[#allocation2 + $0xb6c] sm:$0xf]
        %v705 = vld [vmem:[#allocation2 + $0xb70] sm:$0xff]
        %v706 = vld [vmem:[#allocation2 + $0xb78] sm:$0xf]
        %v707 = vld [vmem:[#allocation2 + $0xb7c] sm:$0xff]
        %v708 = vld [vmem:[#allocation2 + $0xb84] sm:$0xf]
        %v709 = vld [vmem:[#allocation2 + $0xb88] sm:$0xff]
        %v710 = vld [vmem:[#allocation2 + $0xb90] sm:$0xf]
        %v711 = vld [vmem:[#allocation2 + $0xb94] sm:$0xff]
        %v712 = vld [vmem:[#allocation2 + $0xb9c] sm:$0xf]
        %v713 = vld [vmem:[#allocation2 + $0xba0] sm:$0xff]
        %v714 = vld [vmem:[#allocation2 + $0xba8] sm:$0xf]
        %v715 = vld [vmem:[#allocation2 + $0xbac] sm:$0xff]
        %v716 = vld [vmem:[#allocation2 + $0xbb4] sm:$0xf]
        %v717 = vld [vmem:[#allocation2 + $0xbb8] sm:$0xff]
        %v718 = vld [vmem:[#allocation2 + $0xbc0] sm:$0xf]
        %v719 = vld [vmem:[#allocation2 + $0xbc4] sm:$0xff]
        %v720 = vld [vmem:[#allocation2 + $0xbcc] sm:$0xf]
        %v721 = vld [vmem:[#allocation2 + $0xbd0] sm:$0xff]
        %v722 = vld [vmem:[#allocation2 + $0xbd8] sm:$0xf]
        %v723 = vld [vmem:[#allocation2 + $0xbdc] sm:$0xff]
        %v724 = vld [vmem:[#allocation2 + $0xbe4] sm:$0xf]
        %v725 = vld [vmem:[#allocation2 + $0xbe8] sm:$0xff]
        %v726 = vld [vmem:[#allocation2 + $0xbf0] sm:$0xf]
        %v727 = vld [vmem:[#allocation2 + $0xbf4] sm:$0xff]
        %v728 = vld [vmem:[#allocation2 + $0xbfc] sm:$0xf]
        %v729 = vld [vmem:[#allocation2 + $0xc00] sm:$0xff]
        %v730 = vld [vmem:[#allocation2 + $0xc08] sm:$0xf]
        %v731 = vld [vmem:[#allocation2 + $0xc0c] sm:$0xff]
        %v732 = vld [vmem:[#allocation2 + $0xc14] sm:$0xf]
        %v733 = vld [vmem:[#allocation2 + $0xc18] sm:$0xff]
        %v734 = vld [vmem:[#allocation2 + $0xc20] sm:$0xf]
        %v735 = vld [vmem:[#allocation2 + $0xc24] sm:$0xff]
        %v736 = vld [vmem:[#allocation2 + $0xc2c] sm:$0xf]
        %v737 = vld [vmem:[#allocation2 + $0xc30] sm:$0xff]
        %v738 = vld [vmem:[#allocation2 + $0xc38] sm:$0xf]
        %v739 = vld [vmem:[#allocation2 + $0xc3c] sm:$0xff]
        %v740 = vld [vmem:[#allocation2 + $0xc44] sm:$0xf]
        %v741 = vld [vmem:[#allocation2 + $0xc48] sm:$0xff]
        %v742 = vld [vmem:[#allocation2 + $0xc50] sm:$0xf]
        %v743 = vld [vmem:[#allocation2 + $0xc54] sm:$0xff]
        %v744 = vld [vmem:[#allocation2 + $0xc5c] sm:$0xf]
        %v745 = vld [vmem:[#allocation2 + $0xc60] sm:$0xff]
        %v746 = vld [vmem:[#allocation2 + $0xc68] sm:$0xf]
        %v747 = vld [vmem:[#allocation2 + $0xc6c] sm:$0xff]
        %v748 = vld [vmem:[#allocation2 + $0xc74] sm:$0xf]
        %v749 = vld [vmem:[#allocation2 + $0xc78] sm:$0xff]
        %v750 = vld [vmem:[#allocation2 + $0xc80] sm:$0xf]
        %v751 = vld [vmem:[#allocation2 + $0xc84] sm:$0xff]
        %v752 = vld [vmem:[#allocation2 + $0xc8c] sm:$0xf]
        %v753 = vld [vmem:[#allocation2 + $0xc90] sm:$0xff]
        %v754 = vld [vmem:[#allocation2 + $0xc98] sm:$0xf]
        %v755 = vld [vmem:[#allocation2 + $0xc9c] sm:$0xff]
        %v756 = vld [vmem:[#allocation2 + $0xca4] sm:$0xf]
        %v757 = vld [vmem:[#allocation2 + $0xca8] sm:$0xff]
        %v758 = vld [vmem:[#allocation2 + $0xcb0] sm:$0xf]
        %v759 = vld [vmem:[#allocation2 + $0xcb4] sm:$0xff]
        %v760 = vld [vmem:[#allocation2 + $0xcbc] sm:$0xf]
        %v761 = vld [vmem:[#allocation2 + $0xcc0] sm:$0xff]
        %v762 = vld [vmem:[#allocation2 + $0xcc8] sm:$0xf]
        %v763 = vld [vmem:[#allocation2 + $0xccc] sm:$0xff]
        %v764 = vld [vmem:[#allocation2 + $0xcd4] sm:$0xf]
        %v765 = vld [vmem:[#allocation2 + $0xcd8] sm:$0xff]
        %v766 = vld [vmem:[#allocation2 + $0xce0] sm:$0xf]
        %v767 = vld [vmem:[#allocation2 + $0xce4] sm:$0xff]
        %v768 = vld [vmem:[#allocation2 + $0xcec] sm:$0xf]
        %v769 = vld [vmem:[#allocation2 + $0xcf0] sm:$0xff]
        %v770 = vld [vmem:[#allocation2 + $0xcf8] sm:$0xf]
        %v771 = vld [vmem:[#allocation2 + $0xcfc] sm:$0xff]
        %v772 = vld [vmem:[#allocation2 + $0xd04] sm:$0xf]
        %v773 = vld [vmem:[#allocation2 + $0xd08] sm:$0xff]
        %v774 = vld [vmem:[#allocation2 + $0xd10] sm:$0xf]
        %v775 = vld [vmem:[#allocation2 + $0xd14] sm:$0xff]
        %v776 = vld [vmem:[#allocation2 + $0xd1c] sm:$0xf]
        %v777 = vld [vmem:[#allocation2 + $0xd20] sm:$0xff]
        %v778 = vld [vmem:[#allocation2 + $0xd28] sm:$0xf]
        %v779 = vld [vmem:[#allocation2 + $0xd2c] sm:$0xff]
        %v780 = vld [vmem:[#allocation2 + $0xd34] sm:$0xf]
        %v781 = vld [vmem:[#allocation2 + $0xd38] sm:$0xff]
        %v782 = vld [vmem:[#allocation2 + $0xd40] sm:$0xf]
        %v783 = vld [vmem:[#allocation2 + $0xd44] sm:$0xff]
        %v784 = vld [vmem:[#allocation2 + $0xd4c] sm:$0xf]
        %v785 = vld [vmem:[#allocation2 + $0xd50] sm:$0xff]
        %v786 = vld [vmem:[#allocation2 + $0xd58] sm:$0xf]
        %v787 = vld [vmem:[#allocation2 + $0xd5c] sm:$0xff]
        %v788 = vld [vmem:[#allocation2 + $0xd64] sm:$0xf]
        %v789 = vld [vmem:[#allocation2 + $0xd68] sm:$0xff]
        %v790 = vld [vmem:[#allocation2 + $0xd70] sm:$0xf]
        %v791 = vld [vmem:[#allocation2 + $0xd74] sm:$0xff]
        %v792 = vld [vmem:[#allocation2 + $0xd7c] sm:$0xf]
        %v793 = vld [vmem:[#allocation2 + $0xd80] sm:$0xff]
        %v794 = vld [vmem:[#allocation2 + $0xd88] sm:$0xf]
        %v795 = vld [vmem:[#allocation2 + $0xd8c] sm:$0xff]
        %v796 = vld [vmem:[#allocation2 + $0xd94] sm:$0xf]
        %v797 = vld [vmem:[#allocation2 + $0xd98] sm:$0xff]
        %v798 = vld [vmem:[#allocation2 + $0xda0] sm:$0xf]
        %v799 = vld [vmem:[#allocation2 + $0xda4] sm:$0xff]
        %v800 = vld [vmem:[#allocation2 + $0xdac] sm:$0xf]
        %v801 = vld [vmem:[#allocation2 + $0xdb0] sm:$0xff]
        %v802 = vld [vmem:[#allocation2 + $0xdb8] sm:$0xf]
        %v803 = vld [vmem:[#allocation2 + $0xdbc] sm:$0xff]
        %v804 = vld [vmem:[#allocation2 + $0xdc4] sm:$0xf]
        %v805 = vld [vmem:[#allocation2 + $0xdc8] sm:$0xff]
        %v806 = vld [vmem:[#allocation2 + $0xdd0] sm:$0xf]
        %v807 = vld [vmem:[#allocation2 + $0xdd4] sm:$0xff]
        %v808 = vld [vmem:[#allocation2 + $0xddc] sm:$0xf]
        %v809 = vld [vmem:[#allocation2 + $0xde0] sm:$0xff]
        %v810 = vld [vmem:[#allocation2 + $0xde8] sm:$0xf]
        %v811 = vld [vmem:[#allocation2 + $0xdec] sm:$0xff]
        %v812 = vld [vmem:[#allocation2 + $0xdf4] sm:$0xf]
        %v813 = vld [vmem:[#allocation2 + $0xdf8] sm:$0xff]
        %v814 = vld [vmem:[#allocation2 + $0xe00] sm:$0xf]
        %v815 = vld [vmem:[#allocation2 + $0xe04] sm:$0xff]
        %v816 = vld [vmem:[#allocation2 + $0xe0c] sm:$0xf]
        %v817 = vld [vmem:[#allocation2 + $0xe10] sm:$0xff]
        %v818 = vld [vmem:[#allocation2 + $0xe18] sm:$0xf]
        %v819 = vld [vmem:[#allocation2 + $0xe1c] sm:$0xff]
        %v820 = vld [vmem:[#allocation2 + $0xe24] sm:$0xf]
        %v821 = vld [vmem:[#allocation2 + $0xe28] sm:$0xff]
        %v822 = vld [vmem:[#allocation2 + $0xe30] sm:$0xf]
        %v823 = vld [vmem:[#allocation2 + $0xe34] sm:$0xff]
        %v824 = vld [vmem:[#allocation2 + $0xe3c] sm:$0xf]
        %v825 = vld [vmem:[#allocation2 + $0xe40] sm:$0xff]
        %v826 = vld [vmem:[#allocation2 + $0xe48] sm:$0xf]
        %v827 = vld [vmem:[#allocation2 + $0xe4c] sm:$0xff]
        %v828 = vld [vmem:[#allocation2 + $0xe54] sm:$0xf]
        %v829 = vld [vmem:[#allocation2 + $0xe58] sm:$0xff]
        %v830 = vld [vmem:[#allocation2 + $0xe60] sm:$0xf]
        %v831 = vld [vmem:[#allocation2 + $0xe64] sm:$0xff]
        %v832 = vld [vmem:[#allocation2 + $0xe6c] sm:$0xf]
        %v833 = vld [vmem:[#allocation2 + $0xe70] sm:$0xff]
        %v834 = vld [vmem:[#allocation2 + $0xe78] sm:$0xf]
        %v835 = vld [vmem:[#allocation2 + $0xe7c] sm:$0xff]
        %v836 = vld [vmem:[#allocation2 + $0xe84] sm:$0xf]
        %v837 = vld [vmem:[#allocation2 + $0xe88] sm:$0xff]
        %v838 = vld [vmem:[#allocation2 + $0xe90] sm:$0xf]
        %v839 = vld [vmem:[#allocation2 + $0xe94] sm:$0xff]
        %v840 = vld [vmem:[#allocation2 + $0xe9c] sm:$0xf]
        %v841 = vld [vmem:[#allocation2 + $0xea0] sm:$0xff]
        %v842 = vld [vmem:[#allocation2 + $0xea8] sm:$0xf]
        %v843 = vld [vmem:[#allocation2 + $0xeac] sm:$0xff]
        %v844 = vld [vmem:[#allocation2 + $0xeb4] sm:$0xf]
        %v845 = vld [vmem:[#allocation2 + $0xeb8] sm:$0xff]
        %v846 = vld [vmem:[#allocation2 + $0xec0] sm:$0xf]
        %v847 = vld [vmem:[#allocation2 + $0xec4] sm:$0xff]
        %v848 = vld [vmem:[#allocation2 + $0xecc] sm:$0xf]
        %v849 = vld [vmem:[#allocation2 + $0xed0] sm:$0xff]
        %v850 = vld [vmem:[#allocation2 + $0xed8] sm:$0xf]
        %v851 = vld [vmem:[#allocation2 + $0xedc] sm:$0xff]
        %v852 = vld [vmem:[#allocation2 + $0xee4] sm:$0xf]
        %v853 = vld [vmem:[#allocation2 + $0xee8] sm:$0xff]
        %v854 = vld [vmem:[#allocation2 + $0xef0] sm:$0xf]
        %v855 = vld [vmem:[#allocation2 + $0xef4] sm:$0xff]
        %v856 = vld [vmem:[#allocation2 + $0xefc] sm:$0xf]
        %v857 = vld [vmem:[#allocation2 + $0xf00] sm:$0xff]
        %v858 = vld [vmem:[#allocation2 + $0xf08] sm:$0xf]
        %v859 = vld [vmem:[#allocation2 + $0xf0c] sm:$0xff]
        %v860 = vld [vmem:[#allocation2 + $0xf14] sm:$0xf]
        %v861 = vld [vmem:[#allocation2 + $0xf18] sm:$0xff]
        %v862 = vld [vmem:[#allocation2 + $0xf20] sm:$0xf]
        %v863 = vld [vmem:[#allocation2 + $0xf24] sm:$0xff]
        %v864 = vld [vmem:[#allocation2 + $0xf2c] sm:$0xf]
        %v865 = vld [vmem:[#allocation2 + $0xf30] sm:$0xff]
        %v866 = vld [vmem:[#allocation2 + $0xf38] sm:$0xf]
        %v867 = vld [vmem:[#allocation2 + $0xf3c] sm:$0xff]
        %v868 = vld [vmem:[#allocation2 + $0xf44] sm:$0xf]
        %v869 = vld [vmem:[#allocation2 + $0xf48] sm:$0xff]
        %v870 = vld [vmem:[#allocation2 + $0xf50] sm:$0xf]
        %v871 = vld [vmem:[#allocation2 + $0xf54] sm:$0xff]
        %v872 = vld [vmem:[#allocation2 + $0xf5c] sm:$0xf]
        %v873 = vld [vmem:[#allocation2 + $0xf60] sm:$0xff]
        %v874 = vld [vmem:[#allocation2 + $0xf68] sm:$0xf]
        %v875 = vld [vmem:[#allocation2 + $0xf6c] sm:$0xff]
        %v876 = vld [vmem:[#allocation2 + $0xf74] sm:$0xf]
        %v877 = vld [vmem:[#allocation2 + $0xf78] sm:$0xff]
        %v878 = vld [vmem:[#allocation2 + $0xf80] sm:$0xf]
        %v879 = vld [vmem:[#allocation2 + $0xf84] sm:$0xff]
        %v880 = vld [vmem:[#allocation2 + $0xf8c] sm:$0xf]
        %v881 = vld [vmem:[#allocation2 + $0xf90] sm:$0xff]
        %v882 = vld [vmem:[#allocation2 + $0xf98] sm:$0xf]
        %v883 = vld [vmem:[#allocation2 + $0xf9c] sm:$0xff]
        %v884 = vld [vmem:[#allocation2 + $0xfa4] sm:$0xf]
        %v885 = vld [vmem:[#allocation2 + $0xfa8] sm:$0xff]
        %v886 = vld [vmem:[#allocation2 + $0xfb0] sm:$0xf]
        %v887 = vld [vmem:[#allocation2 + $0xfb4] sm:$0xff]
        %v888 = vld [vmem:[#allocation2 + $0xfbc] sm:$0xf]
        %v889 = vld [vmem:[#allocation2 + $0xfc0] sm:$0xff]
        %v890 = vld [vmem:[#allocation2 + $0xfc8] sm:$0xf]
        %v891 = vld [vmem:[#allocation2 + $0xfcc] sm:$0xff]
        %v892 = vld [vmem:[#allocation2 + $0xfd4] sm:$0xf]
        %v893 = vld [vmem:[#allocation2 + $0xfd8] sm:$0xff]
        %v894 = vld [vmem:[#allocation2 + $0xfe0] sm:$0xf]
        %v895 = vld [vmem:[#allocation2 + $0xfe4] sm:$0xff]
        %v896 = vld [vmem:[#allocation2 + $0xfec] sm:$0xf]
        %v897 = vld [vmem:[#allocation2 + $0xff0] sm:$0xff]
        %v898 = vld [vmem:[#allocation2 + $0xff8] sm:$0xf]
        %v899 = vld [vmem:[#allocation2 + $0xffc] sm:$0xff]
        %v900 = vld [vmem:[#allocation2 + $0x1004] sm:$0xf]
        %v901 = vld [vmem:[#allocation2 + $0x1008] sm:$0xff]
        %v902 = vld [vmem:[#allocation2 + $0x1010] sm:$0xf]
        %v903 = vld [vmem:[#allocation2 + $0x1014] sm:$0xff]
        %v904 = vld [vmem:[#allocation2 + $0x101c] sm:$0xf]
        %v905 = vld [vmem:[#allocation2 + $0x1020] sm:$0xff]
        %v906 = vld [vmem:[#allocation2 + $0x1028] sm:$0xf]
        %v907 = vld [vmem:[#allocation2 + $0x102c] sm:$0xff]
        %v908 = vld [vmem:[#allocation2 + $0x1034] sm:$0xf]
        %v909 = vld [vmem:[#allocation2 + $0x1038] sm:$0xff]
        %v910 = vld [vmem:[#allocation2 + $0x1040] sm:$0xf]
        %v911 = vld [vmem:[#allocation2 + $0x1044] sm:$0xff]
        %v912 = vld [vmem:[#allocation2 + $0x104c] sm:$0xf]
        %v913 = vld [vmem:[#allocation2 + $0x1050] sm:$0xff]
        %v914 = vld [vmem:[#allocation2 + $0x1058] sm:$0xf]
        %v915 = vld [vmem:[#allocation2 + $0x105c] sm:$0xff]
        %v916 = vld [vmem:[#allocation2 + $0x1064] sm:$0xf]
        %v917 = vld [vmem:[#allocation2 + $0x1068] sm:$0xff]
        %v918 = vld [vmem:[#allocation2 + $0x1070] sm:$0xf]
        %v919 = vld [vmem:[#allocation2 + $0x1074] sm:$0xff]
        %v920 = vld [vmem:[#allocation2 + $0x107c] sm:$0xf]
        %v921 = vld [vmem:[#allocation2 + $0x1080] sm:$0xff]
        %v922 = vld [vmem:[#allocation2 + $0x1088] sm:$0xf]
        %v923 = vld [vmem:[#allocation2 + $0x108c] sm:$0xff]
        %v924 = vld [vmem:[#allocation2 + $0x1094] sm:$0xf]
        %v925 = vld [vmem:[#allocation2 + $0x1098] sm:$0xff]
        %v926 = vld [vmem:[#allocation2 + $0x10a0] sm:$0xf]
        %v927 = vld [vmem:[#allocation2 + $0x10a4] sm:$0xff]
        %v928 = vld [vmem:[#allocation2 + $0x10ac] sm:$0xf]
        %v929 = vld [vmem:[#allocation2 + $0x10b0] sm:$0xff]
        %v930 = vld [vmem:[#allocation2 + $0x10b8] sm:$0xf]
        %v931 = vld [vmem:[#allocation2 + $0x10bc] sm:$0xff]
        %v932 = vld [vmem:[#allocation2 + $0x10c4] sm:$0xf]
        %v933 = vld [vmem:[#allocation2 + $0x10c8] sm:$0xff]
        %v934 = vld [vmem:[#allocation2 + $0x10d0] sm:$0xf]
        %v935 = vld [vmem:[#allocation2 + $0x10d4] sm:$0xff]
        %v936 = vld [vmem:[#allocation2 + $0x10dc] sm:$0xf]
        %v937 = vld [vmem:[#allocation2 + $0x10e0] sm:$0xff]
        %v938 = vld [vmem:[#allocation2 + $0x10e8] sm:$0xf]
        %v939 = vld [vmem:[#allocation2 + $0x10ec] sm:$0xff]
        %v940 = vld [vmem:[#allocation2 + $0x10f4] sm:$0xf]
        %v941 = vld [vmem:[#allocation2 + $0x10f8] sm:$0xff]
        %v942 = vld [vmem:[#allocation2 + $0x1100] sm:$0xf]
        %v943 = vld [vmem:[#allocation2 + $0x1104] sm:$0xff]
        %v944 = vld [vmem:[#allocation2 + $0x110c] sm:$0xf]
        %v945 = vld [vmem:[#allocation2 + $0x1110] sm:$0xff]
        %v946 = vld [vmem:[#allocation2 + $0x1118] sm:$0xf]
        %v947 = vld [vmem:[#allocation2 + $0x111c] sm:$0xff]
        %v948 = vld [vmem:[#allocation2 + $0x1124] sm:$0xf]
        %v949 = vld [vmem:[#allocation2 + $0x1128] sm:$0xff]
        %v950 = vld [vmem:[#allocation2 + $0x1130] sm:$0xf]
        %v951 = vld [vmem:[#allocation2 + $0x1134] sm:$0xff]
        %v952 = vld [vmem:[#allocation2 + $0x113c] sm:$0xf]
        %v953 = vld [vmem:[#allocation2 + $0x1140] sm:$0xff]
        %v954 = vld [vmem:[#allocation2 + $0x1148] sm:$0xf]
        %v955 = vld [vmem:[#allocation2 + $0x114c] sm:$0xff]
        %v956 = vld [vmem:[#allocation2 + $0x1154] sm:$0xf]
        %v957 = vld [vmem:[#allocation2 + $0x1158] sm:$0xff]
        %v958 = vld [vmem:[#allocation2 + $0x1160] sm:$0xf]
        %v959 = vld [vmem:[#allocation2 + $0x1164] sm:$0xff]
        %v960 = vld [vmem:[#allocation2 + $0x116c] sm:$0xf]
        %v961 = vld [vmem:[#allocation2 + $0x1170] sm:$0xff]
        %v962 = vld [vmem:[#allocation2 + $0x1178] sm:$0xf]
        %v963 = vld [vmem:[#allocation2 + $0x117c] sm:$0xff]
        %v964 = vld [vmem:[#allocation2 + $0x1184] sm:$0xf]
        %v965 = vld [vmem:[#allocation2 + $0x1188] sm:$0xff]
        %v966 = vld [vmem:[#allocation2 + $0x1190] sm:$0xf]
        %v967 = vld [vmem:[#allocation2 + $0x1194] sm:$0xff]
        %v968 = vld [vmem:[#allocation2 + $0x119c] sm:$0xf]
        %v969 = vld [vmem:[#allocation2 + $0x11a0] sm:$0xff]
        %v970 = vld [vmem:[#allocation2 + $0x11a8] sm:$0xf]
        %v971 = vld [vmem:[#allocation2 + $0x11ac] sm:$0xff]
        %v972 = vld [vmem:[#allocation2 + $0x11b4] sm:$0xf]
        %v973 = vld [vmem:[#allocation2 + $0x11b8] sm:$0xff]
        %v974 = vld [vmem:[#allocation2 + $0x11c0] sm:$0xf]
        %v975 = vld [vmem:[#allocation2 + $0x11c4] sm:$0xff]
        %v976 = vld [vmem:[#allocation2 + $0x11cc] sm:$0xf]
        %v977 = vld [vmem:[#allocation2 + $0x11d0] sm:$0xff]
        %v978 = vld [vmem:[#allocation2 + $0x11d8] sm:$0xf]
        %v979 = vld [vmem:[#allocation2 + $0x11dc] sm:$0xff]
        %v980 = vld [vmem:[#allocation2 + $0x11e4] sm:$0xf]
        %v981 = vld [vmem:[#allocation2 + $0x11e8] sm:$0xff]
        %v982 = vld [vmem:[#allocation2 + $0x11f0] sm:$0xf]
        %v983 = vld [vmem:[#allocation2 + $0x11f4] sm:$0xff]
        %v984 = vld [vmem:[#allocation2 + $0x11fc] sm:$0xf]
        %v1009 = vunpack.c.l.b16 %v193
        %v1010 = vunpack.c.h.b16 %v193
        %v1011 = vunpack.c.l.b16 %v194
        %v1012 = vunpack.c.h.b16 %v194
        %v1013 = vunpack.c.l.b16 %v195
        %v1014 = vunpack.c.h.b16 %v195
        %v1015 = vunpack.c.l.b16 %v196
        %v1016 = vunpack.c.h.b16 %v196
        %v1017 = vunpack.c.l.b16 %v197
        %v1018 = vunpack.c.h.b16 %v197
        %v1019 = vunpack.c.l.b16 %v198
        %v1020 = vunpack.c.h.b16 %v198
        %v1021 = vunpack.c.l.b16 %v199
        %v1022 = vunpack.c.h.b16 %v199
        %v1023 = vunpack.c.l.b16 %v200
        %v1024 = vunpack.c.h.b16 %v200
        %v1025 = vunpack.c.l.b16 %v201
        %v1026 = vunpack.c.h.b16 %v201
        %v1027 = vunpack.c.l.b16 %v202
        %v1028 = vunpack.c.h.b16 %v202
        %v1029 = vunpack.c.l.b16 %v203
        %v1030 = vunpack.c.h.b16 %v203
        %v1031 = vunpack.c.l.b16 %v204
        %v1032 = vunpack.c.h.b16 %v204
        %v1033 = vunpack.c.l.b16 %v205
        %v1034 = vunpack.c.h.b16 %v205
        %v1035 = vunpack.c.l.b16 %v206
        %v1036 = vunpack.c.h.b16 %v206
        %v1037 = vunpack.c.l.b16 %v207
        %v1038 = vunpack.c.h.b16 %v207
        %v1039 = vunpack.c.l.b16 %v208
        %v1040 = vunpack.c.h.b16 %v208
        %v1041 = vunpack.c.l.b16 %v209
        %v1042 = vunpack.c.h.b16 %v209
        %v1043 = vunpack.c.l.b16 %v210
        %v1044 = vunpack.c.h.b16 %v210
        %v1045 = vunpack.c.l.b16 %v211
        %v1046 = vunpack.c.h.b16 %v211
        %v1047 = vunpack.c.l.b16 %v212
        %v1048 = vunpack.c.h.b16 %v212
        %v1049 = vunpack.c.l.b16 %v213
        %v1050 = vunpack.c.h.b16 %v213
        %v1051 = vunpack.c.l.b16 %v214
        %v1052 = vunpack.c.h.b16 %v214
        %v1053 = vunpack.c.l.b16 %v215
        %v1054 = vunpack.c.h.b16 %v215
        %v1055 = vunpack.c.l.b16 %v216
        %v1056 = vunpack.c.h.b16 %v216
        %v1057 = vpack.c.b16 %v1033, %v1009
        %v1058 = vpack.c.b16 %v1034, %v1010
        %v1059 = vpack.c.b16 %v1035, %v1011
        %v1060 = vpack.c.b16 %v1036, %v1012
        %v1061 = vpack.c.b16 %v1037, %v1013
        %v1062 = vpack.c.b16 %v1038, %v1014
        %v1063 = vpack.c.b16 %v1039, %v1015
        %v1064 = vpack.c.b16 %v1040, %v1016
        %v1065 = vpack.c.b16 %v1041, %v1017
        %v1066 = vpack.c.b16 %v1042, %v1018
        %v1067 = vpack.c.b16 %v1043, %v1019
        %v1068 = vpack.c.b16 %v1044, %v1020
        %v1069 = vpack.c.b16 %v1045, %v1021
        %v1070 = vpack.c.b16 %v1046, %v1022
        %v1071 = vpack.c.b16 %v1047, %v1023
        %v1072 = vpack.c.b16 %v1048, %v1024
        %v1073 = vpack.c.b16 %v1049, %v1025
        %v1074 = vpack.c.b16 %v1050, %v1026
        %v1075 = vpack.c.b16 %v1051, %v1027
        %v1076 = vpack.c.b16 %v1052, %v1028
        %v1077 = vpack.c.b16 %v1053, %v1029
        %v1078 = vpack.c.b16 %v1054, %v1030
        %v1079 = vpack.c.b16 %v1055, %v1031
        %v1080 = vpack.c.b16 %v1056, %v1032
        %v1873 = vunpack.c.l.b16 %v217
        %v1874 = vunpack.c.h.b16 %v217
        %v1875 = vunpack.c.l.b16 %v218
        %v1876 = vunpack.c.l.b16 %v219
        %v1877 = vunpack.c.h.b16 %v219
        %v1878 = vunpack.c.l.b16 %v220
        %v1879 = vunpack.c.l.b16 %v221
        %v1880 = vunpack.c.h.b16 %v221
        %v1881 = vunpack.c.l.b16 %v222
        %v1882 = vunpack.c.l.b16 %v223
        %v1883 = vunpack.c.h.b16 %v223
        %v1884 = vunpack.c.l.b16 %v224
        %v1885 = vunpack.c.l.b16 %v225
        %v1886 = vunpack.c.h.b16 %v225
        %v1887 = vunpack.c.l.b16 %v226
        %v1888 = vunpack.c.l.b16 %v227
        %v1889 = vunpack.c.h.b16 %v227
        %v1890 = vunpack.c.l.b16 %v228
        %v1891 = vunpack.c.l.b16 %v229
        %v1892 = vunpack.c.h.b16 %v229
        %v1893 = vunpack.c.l.b16 %v230
        %v1894 = vunpack.c.l.b16 %v231
        %v1895 = vunpack.c.h.b16 %v231
        %v1896 = vunpack.c.l.b16 %v232
        %v1897 = vunpack.c.l.b16 %v233
        %v1898 = vunpack.c.h.b16 %v233
        %v1899 = vunpack.c.l.b16 %v234
        %v1900 = vunpack.c.l.b16 %v235
        %v1901 = vunpack.c.h.b16 %v235
        %v1902 = vunpack.c.l.b16 %v236
        %v1903 = vunpack.c.l.b16 %v237
        %v1904 = vunpack.c.h.b16 %v237
        %v1905 = vunpack.c.l.b16 %v238
        %v1906 = vunpack.c.l.b16 %v239
        %v1907 = vunpack.c.h.b16 %v239
        %v1908 = vunpack.c.l.b16 %v240
        %v1909 = vunpack.c.l.b16 %v241
        %v1910 = vunpack.c.h.b16 %v241
        %v1911 = vunpack.c.l.b16 %v242
        %v1912 = vunpack.c.l.b16 %v243
        %v1913 = vunpack.c.h.b16 %v243
        %v1914 = vunpack.c.l.b16 %v244
        %v1915 = vunpack.c.l.b16 %v245
        %v1916 = vunpack.c.h.b16 %v245
        %v1917 = vunpack.c.l.b16 %v246
        %v1918 = vunpack.c.l.b16 %v247
        %v1919 = vunpack.c.h.b16 %v247
        %v1920 = vunpack.c.l.b16 %v248
        %v1921 = vunpack.c.l.b16 %v249
        %v1922 = vunpack.c.h.b16 %v249
        %v1923 = vunpack.c.l.b16 %v250
        %v1924 = vunpack.c.l.b16 %v251
        %v1925 = vunpack.c.h.b16 %v251
        %v1926 = vunpack.c.l.b16 %v252
        %v1927 = vunpack.c.l.b16 %v253
        %v1928 = vunpack.c.h.b16 %v253
        %v1929 = vunpack.c.l.b16 %v254
        %v1930 = vunpack.c.l.b16 %v255
        %v1931 = vunpack.c.h.b16 %v255
        %v1932 = vunpack.c.l.b16 %v256
        %v1933 = vunpack.c.l.b16 %v257
        %v1934 = vunpack.c.h.b16 %v257
        %v1935 = vunpack.c.l.b16 %v258
        %v1936 = vunpack.c.l.b16 %v259
        %v1937 = vunpack.c.h.b16 %v259
        %v1938 = vunpack.c.l.b16 %v260
        %v1939 = vunpack.c.l.b16 %v261
        %v1940 = vunpack.c.h.b16 %v261
        %v1941 = vunpack.c.l.b16 %v262
        %v1942 = vunpack.c.l.b16 %v263
        %v1943 = vunpack.c.h.b16 %v263
        %v1944 = vunpack.c.l.b16 %v264
        %v1945 = vunpack.c.l.b16 %v265
        %v1946 = vunpack.c.h.b16 %v265
        %v1947 = vunpack.c.l.b16 %v266
        %v1948 = vunpack.c.l.b16 %v267
        %v1949 = vunpack.c.h.b16 %v267
        %v1950 = vunpack.c.l.b16 %v268
        %v1951 = vunpack.c.l.b16 %v269
        %v1952 = vunpack.c.h.b16 %v269
        %v1953 = vunpack.c.l.b16 %v270
        %v1954 = vunpack.c.l.b16 %v271
        %v1955 = vunpack.c.h.b16 %v271
        %v1956 = vunpack.c.l.b16 %v272
        %v1957 = vunpack.c.l.b16 %v273
        %v1958 = vunpack.c.h.b16 %v273
        %v1959 = vunpack.c.l.b16 %v274
        %v1960 = vunpack.c.l.b16 %v275
        %v1961 = vunpack.c.h.b16 %v275
        %v1962 = vunpack.c.l.b16 %v276
        %v1963 = vunpack.c.l.b16 %v277
        %v1964 = vunpack.c.h.b16 %v277
        %v1965 = vunpack.c.l.b16 %v278
        %v1966 = vunpack.c.l.b16 %v279
        %v1967 = vunpack.c.h.b16 %v279
        %v1968 = vunpack.c.l.b16 %v280
        %v1969 = vunpack.c.l.b16 %v281
        %v1970 = vunpack.c.h.b16 %v281
        %v1971 = vunpack.c.l.b16 %v282
        %v1972 = vunpack.c.l.b16 %v283
        %v1973 = vunpack.c.h.b16 %v283
        %v1974 = vunpack.c.l.b16 %v284
        %v1975 = vunpack.c.l.b16 %v285
        %v1976 = vunpack.c.h.b16 %v285
        %v1977 = vunpack.c.l.b16 %v286
        %v1978 = vunpack.c.l.b16 %v287
        %v1979 = vunpack.c.h.b16 %v287
        %v1980 = vunpack.c.l.b16 %v288
        %v1981 = vunpack.c.l.b16 %v289
        %v1982 = vunpack.c.h.b16 %v289
        %v1983 = vunpack.c.l.b16 %v290
        %v1984 = vunpack.c.l.b16 %v291
        %v1985 = vunpack.c.h.b16 %v291
        %v1986 = vunpack.c.l.b16 %v292
        %v1987 = vunpack.c.l.b16 %v293
        %v1988 = vunpack.c.h.b16 %v293
        %v1989 = vunpack.c.l.b16 %v294
        %v1990 = vunpack.c.l.b16 %v295
        %v1991 = vunpack.c.h.b16 %v295
        %v1992 = vunpack.c.l.b16 %v296
        %v1993 = vunpack.c.l.b16 %v297
        %v1994 = vunpack.c.h.b16 %v297
        %v1995 = vunpack.c.l.b16 %v298
        %v1996 = vunpack.c.l.b16 %v299
        %v1997 = vunpack.c.h.b16 %v299
        %v1998 = vunpack.c.l.b16 %v300
        %v1999 = vunpack.c.l.b16 %v301
        %v2000 = vunpack.c.h.b16 %v301
        %v2001 = vunpack.c.l.b16 %v302
        %v2002 = vunpack.c.l.b16 %v303
        %v2003 = vunpack.c.h.b16 %v303
        %v2004 = vunpack.c.l.b16 %v304
        %v2005 = vunpack.c.l.b16 %v305
        %v2006 = vunpack.c.h.b16 %v305
        %v2007 = vunpack.c.l.b16 %v306
        %v2008 = vunpack.c.l.b16 %v307
        %v2009 = vunpack.c.h.b16 %v307
        %v2010 = vunpack.c.l.b16 %v308
        %v2011 = vunpack.c.l.b16 %v309
        %v2012 = vunpack.c.h.b16 %v309
        %v2013 = vunpack.c.l.b16 %v310
        %v2014 = vunpack.c.l.b16 %v311
        %v2015 = vunpack.c.h.b16 %v311
        %v2016 = vunpack.c.l.b16 %v312
        %v2017 = vunpack.c.l.b16 %v313
        %v2018 = vunpack.c.h.b16 %v313
        %v2019 = vunpack.c.l.b16 %v314
        %v2020 = vunpack.c.l.b16 %v315
        %v2021 = vunpack.c.h.b16 %v315
        %v2022 = vunpack.c.l.b16 %v316
        %v2023 = vunpack.c.l.b16 %v317
        %v2024 = vunpack.c.h.b16 %v317
        %v2025 = vunpack.c.l.b16 %v318
        %v2026 = vunpack.c.l.b16 %v319
        %v2027 = vunpack.c.h.b16 %v319
        %v2028 = vunpack.c.l.b16 %v320
        %v2029 = vunpack.c.l.b16 %v321
        %v2030 = vunpack.c.h.b16 %v321
        %v2031 = vunpack.c.l.b16 %v322
        %v2032 = vunpack.c.l.b16 %v323
        %v2033 = vunpack.c.h.b16 %v323
        %v2034 = vunpack.c.l.b16 %v324
        %v2035 = vunpack.c.l.b16 %v325
        %v2036 = vunpack.c.h.b16 %v325
        %v2037 = vunpack.c.l.b16 %v326
        %v2038 = vunpack.c.l.b16 %v327
        %v2039 = vunpack.c.h.b16 %v327
        %v2040 = vunpack.c.l.b16 %v328
        %v2041 = vunpack.c.l.b16 %v329
        %v2042 = vunpack.c.h.b16 %v329
        %v2043 = vunpack.c.l.b16 %v330
        %v2044 = vunpack.c.l.b16 %v331
        %v2045 = vunpack.c.h.b16 %v331
        %v2046 = vunpack.c.l.b16 %v332
        %v2047 = vunpack.c.l.b16 %v333
        %v2048 = vunpack.c.h.b16 %v333
        %v2049 = vunpack.c.l.b16 %v334
        %v2050 = vunpack.c.l.b16 %v335
        %v2051 = vunpack.c.h.b16 %v335
        %v2052 = vunpack.c.l.b16 %v336
        %v2053 = vunpack.c.l.b16 %v337
        %v2054 = vunpack.c.h.b16 %v337
        %v2055 = vunpack.c.l.b16 %v338
        %v2056 = vunpack.c.l.b16 %v339
        %v2057 = vunpack.c.h.b16 %v339
        %v2058 = vunpack.c.l.b16 %v340
        %v2059 = vunpack.c.l.b16 %v341
        %v2060 = vunpack.c.h.b16 %v341
        %v2061 = vunpack.c.l.b16 %v342
        %v2062 = vunpack.c.l.b16 %v343
        %v2063 = vunpack.c.h.b16 %v343
        %v2064 = vunpack.c.l.b16 %v344
        %v2065 = vunpack.c.l.b16 %v345
        %v2066 = vunpack.c.h.b16 %v345
        %v2067 = vunpack.c.l.b16 %v346
        %v2068 = vunpack.c.l.b16 %v347
        %v2069 = vunpack.c.h.b16 %v347
        %v2070 = vunpack.c.l.b16 %v348
        %v2071 = vunpack.c.l.b16 %v349
        %v2072 = vunpack.c.h.b16 %v349
        %v2073 = vunpack.c.l.b16 %v350
        %v2074 = vunpack.c.l.b16 %v351
        %v2075 = vunpack.c.h.b16 %v351
        %v2076 = vunpack.c.l.b16 %v352
        %v2077 = vunpack.c.l.b16 %v353
        %v2078 = vunpack.c.h.b16 %v353
        %v2079 = vunpack.c.l.b16 %v354
        %v2080 = vunpack.c.l.b16 %v355
        %v2081 = vunpack.c.h.b16 %v355
        %v2082 = vunpack.c.l.b16 %v356
        %v2083 = vunpack.c.l.b16 %v357
        %v2084 = vunpack.c.h.b16 %v357
        %v2085 = vunpack.c.l.b16 %v358
        %v2086 = vunpack.c.l.b16 %v359
        %v2087 = vunpack.c.h.b16 %v359
        %v2088 = vunpack.c.l.b16 %v360
        %v2089 = vunpack.c.l.b16 %v361
        %v2090 = vunpack.c.h.b16 %v361
        %v2091 = vunpack.c.l.b16 %v362
        %v2092 = vunpack.c.l.b16 %v363
        %v2093 = vunpack.c.h.b16 %v363
        %v2094 = vunpack.c.l.b16 %v364
        %v2095 = vunpack.c.l.b16 %v365
        %v2096 = vunpack.c.h.b16 %v365
        %v2097 = vunpack.c.l.b16 %v366
        %v2098 = vunpack.c.l.b16 %v367
        %v2099 = vunpack.c.h.b16 %v367
        %v2100 = vunpack.c.l.b16 %v368
        %v2101 = vunpack.c.l.b16 %v369
        %v2102 = vunpack.c.h.b16 %v369
        %v2103 = vunpack.c.l.b16 %v370
        %v2104 = vunpack.c.l.b16 %v371
        %v2105 = vunpack.c.h.b16 %v371
        %v2106 = vunpack.c.l.b16 %v372
        %v2107 = vunpack.c.l.b16 %v373
        %v2108 = vunpack.c.h.b16 %v373
        %v2109 = vunpack.c.l.b16 %v374
        %v2110 = vunpack.c.l.b16 %v375
        %v2111 = vunpack.c.h.b16 %v375
        %v2112 = vunpack.c.l.b16 %v376
        %v2113 = vunpack.c.l.b16 %v377
        %v2114 = vunpack.c.h.b16 %v377
        %v2115 = vunpack.c.l.b16 %v378
        %v2116 = vunpack.c.l.b16 %v379
        %v2117 = vunpack.c.h.b16 %v379
        %v2118 = vunpack.c.l.b16 %v380
        %v2119 = vunpack.c.l.b16 %v381
        %v2120 = vunpack.c.h.b16 %v381
        %v2121 = vunpack.c.l.b16 %v382
        %v2122 = vunpack.c.l.b16 %v383
        %v2123 = vunpack.c.h.b16 %v383
        %v2124 = vunpack.c.l.b16 %v384
        %v2125 = vunpack.c.l.b16 %v385
        %v2126 = vunpack.c.h.b16 %v385
        %v2127 = vunpack.c.l.b16 %v386
        %v2128 = vunpack.c.l.b16 %v387
        %v2129 = vunpack.c.h.b16 %v387
        %v2130 = vunpack.c.l.b16 %v388
        %v2131 = vunpack.c.l.b16 %v389
        %v2132 = vunpack.c.h.b16 %v389
        %v2133 = vunpack.c.l.b16 %v390
        %v2134 = vunpack.c.l.b16 %v391
        %v2135 = vunpack.c.h.b16 %v391
        %v2136 = vunpack.c.l.b16 %v392
        %v2137 = vunpack.c.l.b16 %v393
        %v2138 = vunpack.c.h.b16 %v393
        %v2139 = vunpack.c.l.b16 %v394
        %v2140 = vunpack.c.l.b16 %v395
        %v2141 = vunpack.c.h.b16 %v395
        %v2142 = vunpack.c.l.b16 %v396
        %v2143 = vunpack.c.l.b16 %v397
        %v2144 = vunpack.c.h.b16 %v397
        %v2145 = vunpack.c.l.b16 %v398
        %v2146 = vunpack.c.l.b16 %v399
        %v2147 = vunpack.c.h.b16 %v399
        %v2148 = vunpack.c.l.b16 %v400
        %v2149 = vunpack.c.l.b16 %v401
        %v2150 = vunpack.c.h.b16 %v401
        %v2151 = vunpack.c.l.b16 %v402
        %v2152 = vunpack.c.l.b16 %v403
        %v2153 = vunpack.c.h.b16 %v403
        %v2154 = vunpack.c.l.b16 %v404
        %v2155 = vunpack.c.l.b16 %v405
        %v2156 = vunpack.c.h.b16 %v405
        %v2157 = vunpack.c.l.b16 %v406
        %v2158 = vunpack.c.l.b16 %v407
        %v2159 = vunpack.c.h.b16 %v407
        %v2160 = vunpack.c.l.b16 %v408
        %v2161 = vunpack.c.l.b16 %v409
        %v2162 = vunpack.c.h.b16 %v409
        %v2163 = vunpack.c.l.b16 %v410
        %v2164 = vunpack.c.l.b16 %v411
        %v2165 = vunpack.c.h.b16 %v411
        %v2166 = vunpack.c.l.b16 %v412
        %v2167 = vunpack.c.l.b16 %v413
        %v2168 = vunpack.c.h.b16 %v413
        %v2169 = vunpack.c.l.b16 %v414
        %v2170 = vunpack.c.l.b16 %v415
        %v2171 = vunpack.c.h.b16 %v415
        %v2172 = vunpack.c.l.b16 %v416
        %v2173 = vunpack.c.l.b16 %v417
        %v2174 = vunpack.c.h.b16 %v417
        %v2175 = vunpack.c.l.b16 %v418
        %v2176 = vunpack.c.l.b16 %v419
        %v2177 = vunpack.c.h.b16 %v419
        %v2178 = vunpack.c.l.b16 %v420
        %v2179 = vunpack.c.l.b16 %v421
        %v2180 = vunpack.c.h.b16 %v421
        %v2181 = vunpack.c.l.b16 %v422
        %v2182 = vunpack.c.l.b16 %v423
        %v2183 = vunpack.c.h.b16 %v423
        %v2184 = vunpack.c.l.b16 %v424
        %v2185 = vunpack.c.l.b16 %v425
        %v2186 = vunpack.c.h.b16 %v425
        %v2187 = vunpack.c.l.b16 %v426
        %v2188 = vunpack.c.l.b16 %v427
        %v2189 = vunpack.c.h.b16 %v427
        %v2190 = vunpack.c.l.b16 %v428
        %v2191 = vunpack.c.l.b16 %v429
        %v2192 = vunpack.c.h.b16 %v429
        %v2193 = vunpack.c.l.b16 %v430
        %v2194 = vunpack.c.l.b16 %v431
        %v2195 = vunpack.c.h.b16 %v431
        %v2196 = vunpack.c.l.b16 %v432
        %v2197 = vunpack.c.l.b16 %v433
        %v2198 = vunpack.c.h.b16 %v433
        %v2199 = vunpack.c.l.b16 %v434
        %v2200 = vunpack.c.l.b16 %v435
        %v2201 = vunpack.c.h.b16 %v435
        %v2202 = vunpack.c.l.b16 %v436
        %v2203 = vunpack.c.l.b16 %v437
        %v2204 = vunpack.c.h.b16 %v437
        %v2205 = vunpack.c.l.b16 %v438
        %v2206 = vunpack.c.l.b16 %v439
        %v2207 = vunpack.c.h.b16 %v439
        %v2208 = vunpack.c.l.b16 %v440
        %v2209 = vunpack.c.l.b16 %v441
        %v2210 = vunpack.c.h.b16 %v441
        %v2211 = vunpack.c.l.b16 %v442
        %v2212 = vunpack.c.l.b16 %v443
        %v2213 = vunpack.c.h.b16 %v443
        %v2214 = vunpack.c.l.b16 %v444
        %v2215 = vunpack.c.l.b16 %v445
        %v2216 = vunpack.c.h.b16 %v445
        %v2217 = vunpack.c.l.b16 %v446
        %v2218 = vunpack.c.l.b16 %v447
        %v2219 = vunpack.c.h.b16 %v447
        %v2220 = vunpack.c.l.b16 %v448
        %v2221 = vunpack.c.l.b16 %v449
        %v2222 = vunpack.c.h.b16 %v449
        %v2223 = vunpack.c.l.b16 %v450
        %v2224 = vunpack.c.l.b16 %v451
        %v2225 = vunpack.c.h.b16 %v451
        %v2226 = vunpack.c.l.b16 %v452
        %v2227 = vunpack.c.l.b16 %v453
        %v2228 = vunpack.c.h.b16 %v453
        %v2229 = vunpack.c.l.b16 %v454
        %v2230 = vunpack.c.l.b16 %v455
        %v2231 = vunpack.c.h.b16 %v455
        %v2232 = vunpack.c.l.b16 %v456
        %v2233 = vunpack.c.l.b16 %v457
        %v2234 = vunpack.c.h.b16 %v457
        %v2235 = vunpack.c.l.b16 %v458
        %v2236 = vunpack.c.l.b16 %v459
        %v2237 = vunpack.c.h.b16 %v459
        %v2238 = vunpack.c.l.b16 %v460
        %v2239 = vunpack.c.l.b16 %v461
        %v2240 = vunpack.c.h.b16 %v461
        %v2241 = vunpack.c.l.b16 %v462
        %v2242 = vunpack.c.l.b16 %v463
        %v2243 = vunpack.c.h.b16 %v463
        %v2244 = vunpack.c.l.b16 %v464
        %v2245 = vunpack.c.l.b16 %v465
        %v2246 = vunpack.c.h.b16 %v465
        %v2247 = vunpack.c.l.b16 %v466
        %v2248 = vunpack.c.l.b16 %v467
        %v2249 = vunpack.c.h.b16 %v467
        %v2250 = vunpack.c.l.b16 %v468
        %v2251 = vunpack.c.l.b16 %v469
        %v2252 = vunpack.c.h.b16 %v469
        %v2253 = vunpack.c.l.b16 %v470
        %v2254 = vunpack.c.l.b16 %v471
        %v2255 = vunpack.c.h.b16 %v471
        %v2256 = vunpack.c.l.b16 %v472
        %v2257 = vunpack.c.l.b16 %v473
        %v2258 = vunpack.c.h.b16 %v473
        %v2259 = vunpack.c.l.b16 %v474
        %v2260 = vunpack.c.l.b16 %v475
        %v2261 = vunpack.c.h.b16 %v475
        %v2262 = vunpack.c.l.b16 %v476
        %v2263 = vunpack.c.l.b16 %v477
        %v2264 = vunpack.c.h.b16 %v477
        %v2265 = vunpack.c.l.b16 %v478
        %v2266 = vunpack.c.l.b16 %v479
        %v2267 = vunpack.c.h.b16 %v479
        %v2268 = vunpack.c.l.b16 %v480
        %v2269 = vunpack.c.l.b16 %v481
        %v2270 = vunpack.c.h.b16 %v481
        %v2271 = vunpack.c.l.b16 %v482
        %v2272 = vunpack.c.l.b16 %v483
        %v2273 = vunpack.c.h.b16 %v483
        %v2274 = vunpack.c.l.b16 %v484
        %v2275 = vunpack.c.l.b16 %v485
        %v2276 = vunpack.c.h.b16 %v485
        %v2277 = vunpack.c.l.b16 %v486
        %v2278 = vunpack.c.l.b16 %v487
        %v2279 = vunpack.c.h.b16 %v487
        %v2280 = vunpack.c.l.b16 %v488
        %v2281 = vunpack.c.l.b16 %v489
        %v2282 = vunpack.c.h.b16 %v489
        %v2283 = vunpack.c.l.b16 %v490
        %v2284 = vunpack.c.l.b16 %v491
        %v2285 = vunpack.c.h.b16 %v491
        %v2286 = vunpack.c.l.b16 %v492
        %v2287 = vunpack.c.l.b16 %v493
        %v2288 = vunpack.c.h.b16 %v493
        %v2289 = vunpack.c.l.b16 %v494
        %v2290 = vunpack.c.l.b16 %v495
        %v2291 = vunpack.c.h.b16 %v495
        %v2292 = vunpack.c.l.b16 %v496
        %v2293 = vunpack.c.l.b16 %v497
        %v2294 = vunpack.c.h.b16 %v497
        %v2295 = vunpack.c.l.b16 %v498
        %v2296 = vunpack.c.l.b16 %v499
        %v2297 = vunpack.c.h.b16 %v499
        %v2298 = vunpack.c.l.b16 %v500
        %v2299 = vunpack.c.l.b16 %v501
        %v2300 = vunpack.c.h.b16 %v501
        %v2301 = vunpack.c.l.b16 %v502
        %v2302 = vunpack.c.l.b16 %v503
        %v2303 = vunpack.c.h.b16 %v503
        %v2304 = vunpack.c.l.b16 %v504
        %v2305 = vunpack.c.l.b16 %v505
        %v2306 = vunpack.c.h.b16 %v505
        %v2307 = vunpack.c.l.b16 %v506
        %v2308 = vunpack.c.l.b16 %v507
        %v2309 = vunpack.c.h.b16 %v507
        %v2310 = vunpack.c.l.b16 %v508
        %v2311 = vunpack.c.l.b16 %v509
        %v2312 = vunpack.c.h.b16 %v509
        %v2313 = vunpack.c.l.b16 %v510
        %v2314 = vunpack.c.l.b16 %v511
        %v2315 = vunpack.c.h.b16 %v511
        %v2316 = vunpack.c.l.b16 %v512
        %v2317 = vunpack.c.l.b16 %v513
        %v2318 = vunpack.c.h.b16 %v513
        %v2319 = vunpack.c.l.b16 %v514
        %v2320 = vunpack.c.l.b16 %v515
        %v2321 = vunpack.c.h.b16 %v515
        %v2322 = vunpack.c.l.b16 %v516
        %v2323 = vunpack.c.l.b16 %v517
        %v2324 = vunpack.c.h.b16 %v517
        %v2325 = vunpack.c.l.b16 %v518
        %v2326 = vunpack.c.l.b16 %v519
        %v2327 = vunpack.c.h.b16 %v519
        %v2328 = vunpack.c.l.b16 %v520
        %v2329 = vunpack.c.l.b16 %v521
        %v2330 = vunpack.c.h.b16 %v521
        %v2331 = vunpack.c.l.b16 %v522
        %v2332 = vunpack.c.l.b16 %v523
        %v2333 = vunpack.c.h.b16 %v523
        %v2334 = vunpack.c.l.b16 %v524
        %v2335 = vunpack.c.l.b16 %v525
        %v2336 = vunpack.c.h.b16 %v525
        %v2337 = vunpack.c.l.b16 %v526
        %v2338 = vunpack.c.l.b16 %v527
        %v2339 = vunpack.c.h.b16 %v527
        %v2340 = vunpack.c.l.b16 %v528
        %v2341 = vunpack.c.l.b16 %v529
        %v2342 = vunpack.c.h.b16 %v529
        %v2343 = vunpack.c.l.b16 %v530
        %v2344 = vunpack.c.l.b16 %v531
        %v2345 = vunpack.c.h.b16 %v531
        %v2346 = vunpack.c.l.b16 %v532
        %v2347 = vunpack.c.l.b16 %v533
        %v2348 = vunpack.c.h.b16 %v533
        %v2349 = vunpack.c.l.b16 %v534
        %v2350 = vunpack.c.l.b16 %v535
        %v2351 = vunpack.c.h.b16 %v535
        %v2352 = vunpack.c.l.b16 %v536
        %v2353 = vunpack.c.l.b16 %v537
        %v2354 = vunpack.c.h.b16 %v537
        %v2355 = vunpack.c.l.b16 %v538
        %v2356 = vunpack.c.l.b16 %v539
        %v2357 = vunpack.c.h.b16 %v539
        %v2358 = vunpack.c.l.b16 %v540
        %v2359 = vunpack.c.l.b16 %v541
        %v2360 = vunpack.c.h.b16 %v541
        %v2361 = vunpack.c.l.b16 %v542
        %v2362 = vunpack.c.l.b16 %v543
        %v2363 = vunpack.c.h.b16 %v543
        %v2364 = vunpack.c.l.b16 %v544
        %v2365 = vunpack.c.l.b16 %v545
        %v2366 = vunpack.c.h.b16 %v545
        %v2367 = vunpack.c.l.b16 %v546
        %v2368 = vunpack.c.l.b16 %v547
        %v2369 = vunpack.c.h.b16 %v547
        %v2370 = vunpack.c.l.b16 %v548
        %v2371 = vunpack.c.l.b16 %v549
        %v2372 = vunpack.c.h.b16 %v549
        %v2373 = vunpack.c.l.b16 %v550
        %v2374 = vunpack.c.l.b16 %v551
        %v2375 = vunpack.c.h.b16 %v551
        %v2376 = vunpack.c.l.b16 %v552
        %v2377 = vunpack.c.l.b16 %v553
        %v2378 = vunpack.c.h.b16 %v553
        %v2379 = vunpack.c.l.b16 %v554
        %v2380 = vunpack.c.l.b16 %v555
        %v2381 = vunpack.c.h.b16 %v555
        %v2382 = vunpack.c.l.b16 %v556
        %v2383 = vunpack.c.l.b16 %v557
        %v2384 = vunpack.c.h.b16 %v557
        %v2385 = vunpack.c.l.b16 %v558
        %v2386 = vunpack.c.l.b16 %v559
        %v2387 = vunpack.c.h.b16 %v559
        %v2388 = vunpack.c.l.b16 %v560
        %v2389 = vunpack.c.l.b16 %v561
        %v2390 = vunpack.c.h.b16 %v561
        %v2391 = vunpack.c.l.b16 %v562
        %v2392 = vunpack.c.l.b16 %v563
        %v2393 = vunpack.c.h.b16 %v563
        %v2394 = vunpack.c.l.b16 %v564
        %v2395 = vunpack.c.l.b16 %v565
        %v2396 = vunpack.c.h.b16 %v565
        %v2397 = vunpack.c.l.b16 %v566
        %v2398 = vunpack.c.l.b16 %v567
        %v2399 = vunpack.c.h.b16 %v567
        %v2400 = vunpack.c.l.b16 %v568
        %v2401 = vunpack.c.l.b16 %v569
        %v2402 = vunpack.c.h.b16 %v569
        %v2403 = vunpack.c.l.b16 %v570
        %v2404 = vunpack.c.l.b16 %v571
        %v2405 = vunpack.c.h.b16 %v571
        %v2406 = vunpack.c.l.b16 %v572
        %v2407 = vunpack.c.l.b16 %v573
        %v2408 = vunpack.c.h.b16 %v573
        %v2409 = vunpack.c.l.b16 %v574
        %v2410 = vunpack.c.l.b16 %v575
        %v2411 = vunpack.c.h.b16 %v575
        %v2412 = vunpack.c.l.b16 %v576
        %v2413 = vunpack.c.l.b16 %v577
        %v2414 = vunpack.c.h.b16 %v577
        %v2415 = vunpack.c.l.b16 %v578
        %v2416 = vunpack.c.l.b16 %v579
        %v2417 = vunpack.c.h.b16 %v579
        %v2418 = vunpack.c.l.b16 %v580
        %v2419 = vunpack.c.l.b16 %v581
        %v2420 = vunpack.c.h.b16 %v581
        %v2421 = vunpack.c.l.b16 %v582
        %v2422 = vunpack.c.l.b16 %v583
        %v2423 = vunpack.c.h.b16 %v583
        %v2424 = vunpack.c.l.b16 %v584
        %v2425 = vunpack.c.l.b16 %v585
        %v2426 = vunpack.c.h.b16 %v585
        %v2427 = vunpack.c.l.b16 %v586
        %v2428 = vunpack.c.l.b16 %v587
        %v2429 = vunpack.c.h.b16 %v587
        %v2430 = vunpack.c.l.b16 %v588
        %v2431 = vunpack.c.l.b16 %v589
        %v2432 = vunpack.c.h.b16 %v589
        %v2433 = vunpack.c.l.b16 %v590
        %v2434 = vunpack.c.l.b16 %v591
        %v2435 = vunpack.c.h.b16 %v591
        %v2436 = vunpack.c.l.b16 %v592
        %v2437 = vunpack.c.l.b16 %v593
        %v2438 = vunpack.c.h.b16 %v593
        %v2439 = vunpack.c.l.b16 %v594
        %v2440 = vunpack.c.l.b16 %v595
        %v2441 = vunpack.c.h.b16 %v595
        %v2442 = vunpack.c.l.b16 %v596
        %v2443 = vunpack.c.l.b16 %v597
        %v2444 = vunpack.c.h.b16 %v597
        %v2445 = vunpack.c.l.b16 %v598
        %v2446 = vunpack.c.l.b16 %v599
        %v2447 = vunpack.c.h.b16 %v599
        %v2448 = vunpack.c.l.b16 %v600
        %v2449 = vunpack.c.l.b16 %v601
        %v2450 = vunpack.c.h.b16 %v601
        %v2451 = vunpack.c.l.b16 %v602
        %v2452 = vunpack.c.l.b16 %v603
        %v2453 = vunpack.c.h.b16 %v603
        %v2454 = vunpack.c.l.b16 %v604
        %v2455 = vunpack.c.l.b16 %v605
        %v2456 = vunpack.c.h.b16 %v605
        %v2457 = vunpack.c.l.b16 %v606
        %v2458 = vunpack.c.l.b16 %v607
        %v2459 = vunpack.c.h.b16 %v607
        %v2460 = vunpack.c.l.b16 %v608
        %v2461 = vunpack.c.l.b16 %v609
        %v2462 = vunpack.c.h.b16 %v609
        %v2463 = vunpack.c.l.b16 %v610
        %v2464 = vunpack.c.l.b16 %v611
        %v2465 = vunpack.c.h.b16 %v611
        %v2466 = vunpack.c.l.b16 %v612
        %v2467 = vunpack.c.l.b16 %v613
        %v2468 = vunpack.c.h.b16 %v613
        %v2469 = vunpack.c.l.b16 %v614
        %v2470 = vunpack.c.l.b16 %v615
        %v2471 = vunpack.c.h.b16 %v615
        %v2472 = vunpack.c.l.b16 %v616
        %v2473 = vunpack.c.l.b16 %v617
        %v2474 = vunpack.c.h.b16 %v617
        %v2475 = vunpack.c.l.b16 %v618
        %v2476 = vunpack.c.l.b16 %v619
        %v2477 = vunpack.c.h.b16 %v619
        %v2478 = vunpack.c.l.b16 %v620
        %v2479 = vunpack.c.l.b16 %v621
        %v2480 = vunpack.c.h.b16 %v621
        %v2481 = vunpack.c.l.b16 %v622
        %v2482 = vunpack.c.l.b16 %v623
        %v2483 = vunpack.c.h.b16 %v623
        %v2484 = vunpack.c.l.b16 %v624
        %v2485 = vunpack.c.l.b16 %v625
        %v2486 = vunpack.c.h.b16 %v625
        %v2487 = vunpack.c.l.b16 %v626
        %v2488 = vunpack.c.l.b16 %v627
        %v2489 = vunpack.c.h.b16 %v627
        %v2490 = vunpack.c.l.b16 %v628
        %v2491 = vunpack.c.l.b16 %v629
        %v2492 = vunpack.c.h.b16 %v629
        %v2493 = vunpack.c.l.b16 %v630
        %v2494 = vunpack.c.l.b16 %v631
        %v2495 = vunpack.c.h.b16 %v631
        %v2496 = vunpack.c.l.b16 %v632
        %v2497 = vunpack.c.l.b16 %v633
        %v2498 = vunpack.c.h.b16 %v633
        %v2499 = vunpack.c.l.b16 %v634
        %v2500 = vunpack.c.l.b16 %v635
        %v2501 = vunpack.c.h.b16 %v635
        %v2502 = vunpack.c.l.b16 %v636
        %v2503 = vunpack.c.l.b16 %v637
        %v2504 = vunpack.c.h.b16 %v637
        %v2505 = vunpack.c.l.b16 %v638
        %v2506 = vunpack.c.l.b16 %v639
        %v2507 = vunpack.c.h.b16 %v639
        %v2508 = vunpack.c.l.b16 %v640
        %v2509 = vunpack.c.l.b16 %v641
        %v2510 = vunpack.c.h.b16 %v641
        %v2511 = vunpack.c.l.b16 %v642
        %v2512 = vunpack.c.l.b16 %v643
        %v2513 = vunpack.c.h.b16 %v643
        %v2514 = vunpack.c.l.b16 %v644
        %v2515 = vunpack.c.l.b16 %v645
        %v2516 = vunpack.c.h.b16 %v645
        %v2517 = vunpack.c.l.b16 %v646
        %v2518 = vunpack.c.l.b16 %v647
        %v2519 = vunpack.c.h.b16 %v647
        %v2520 = vunpack.c.l.b16 %v648
        %v2521 = vunpack.c.l.b16 %v649
        %v2522 = vunpack.c.h.b16 %v649
        %v2523 = vunpack.c.l.b16 %v650
        %v2524 = vunpack.c.l.b16 %v651
        %v2525 = vunpack.c.h.b16 %v651
        %v2526 = vunpack.c.l.b16 %v652
        %v2527 = vunpack.c.l.b16 %v653
        %v2528 = vunpack.c.h.b16 %v653
        %v2529 = vunpack.c.l.b16 %v654
        %v2530 = vunpack.c.l.b16 %v655
        %v2531 = vunpack.c.h.b16 %v655
        %v2532 = vunpack.c.l.b16 %v656
        %v2533 = vunpack.c.l.b16 %v657
        %v2534 = vunpack.c.h.b16 %v657
        %v2535 = vunpack.c.l.b16 %v658
        %v2536 = vunpack.c.l.b16 %v659
        %v2537 = vunpack.c.h.b16 %v659
        %v2538 = vunpack.c.l.b16 %v660
        %v2539 = vunpack.c.l.b16 %v661
        %v2540 = vunpack.c.h.b16 %v661
        %v2541 = vunpack.c.l.b16 %v662
        %v2542 = vunpack.c.l.b16 %v663
        %v2543 = vunpack.c.h.b16 %v663
        %v2544 = vunpack.c.l.b16 %v664
        %v2545 = vunpack.c.l.b16 %v665
        %v2546 = vunpack.c.h.b16 %v665
        %v2547 = vunpack.c.l.b16 %v666
        %v2548 = vunpack.c.l.b16 %v667
        %v2549 = vunpack.c.h.b16 %v667
        %v2550 = vunpack.c.l.b16 %v668
        %v2551 = vunpack.c.l.b16 %v669
        %v2552 = vunpack.c.h.b16 %v669
        %v2553 = vunpack.c.l.b16 %v670
        %v2554 = vunpack.c.l.b16 %v671
        %v2555 = vunpack.c.h.b16 %v671
        %v2556 = vunpack.c.l.b16 %v672
        %v2557 = vunpack.c.l.b16 %v673
        %v2558 = vunpack.c.h.b16 %v673
        %v2559 = vunpack.c.l.b16 %v674
        %v2560 = vunpack.c.l.b16 %v675
        %v2561 = vunpack.c.h.b16 %v675
        %v2562 = vunpack.c.l.b16 %v676
        %v2563 = vunpack.c.l.b16 %v677
        %v2564 = vunpack.c.h.b16 %v677
        %v2565 = vunpack.c.l.b16 %v678
        %v2566 = vunpack.c.l.b16 %v679
        %v2567 = vunpack.c.h.b16 %v679
        %v2568 = vunpack.c.l.b16 %v680
        %v2569 = vunpack.c.l.b16 %v681
        %v2570 = vunpack.c.h.b16 %v681
        %v2571 = vunpack.c.l.b16 %v682
        %v2572 = vunpack.c.l.b16 %v683
        %v2573 = vunpack.c.h.b16 %v683
        %v2574 = vunpack.c.l.b16 %v684
        %v2575 = vunpack.c.l.b16 %v685
        %v2576 = vunpack.c.h.b16 %v685
        %v2577 = vunpack.c.l.b16 %v686
        %v2578 = vunpack.c.l.b16 %v687
        %v2579 = vunpack.c.h.b16 %v687
        %v2580 = vunpack.c.l.b16 %v688
        %v2581 = vunpack.c.l.b16 %v689
        %v2582 = vunpack.c.h.b16 %v689
        %v2583 = vunpack.c.l.b16 %v690
        %v2584 = vunpack.c.l.b16 %v691
        %v2585 = vunpack.c.h.b16 %v691
        %v2586 = vunpack.c.l.b16 %v692
        %v2587 = vunpack.c.l.b16 %v693
        %v2588 = vunpack.c.h.b16 %v693
        %v2589 = vunpack.c.l.b16 %v694
        %v2590 = vunpack.c.l.b16 %v695
        %v2591 = vunpack.c.h.b16 %v695
        %v2592 = vunpack.c.l.b16 %v696
        %v2593 = vunpack.c.l.b16 %v697
        %v2594 = vunpack.c.h.b16 %v697
        %v2595 = vunpack.c.l.b16 %v698
        %v2596 = vunpack.c.l.b16 %v699
        %v2597 = vunpack.c.h.b16 %v699
        %v2598 = vunpack.c.l.b16 %v700
        %v2599 = vunpack.c.l.b16 %v701
        %v2600 = vunpack.c.h.b16 %v701
        %v2601 = vunpack.c.l.b16 %v702
        %v2602 = vunpack.c.l.b16 %v703
        %v2603 = vunpack.c.h.b16 %v703
        %v2604 = vunpack.c.l.b16 %v704
        %v2605 = vunpack.c.l.b16 %v705
        %v2606 = vunpack.c.h.b16 %v705
        %v2607 = vunpack.c.l.b16 %v706
        %v2608 = vunpack.c.l.b16 %v707
        %v2609 = vunpack.c.h.b16 %v707
        %v2610 = vunpack.c.l.b16 %v708
        %v2611 = vunpack.c.l.b16 %v709
        %v2612 = vunpack.c.h.b16 %v709
        %v2613 = vunpack.c.l.b16 %v710
        %v2614 = vunpack.c.l.b16 %v711
        %v2615 = vunpack.c.h.b16 %v711
        %v2616 = vunpack.c.l.b16 %v712
        %v2617 = vunpack.c.l.b16 %v713
        %v2618 = vunpack.c.h.b16 %v713
        %v2619 = vunpack.c.l.b16 %v714
        %v2620 = vunpack.c.l.b16 %v715
        %v2621 = vunpack.c.h.b16 %v715
        %v2622 = vunpack.c.l.b16 %v716
        %v2623 = vunpack.c.l.b16 %v717
        %v2624 = vunpack.c.h.b16 %v717
        %v2625 = vunpack.c.l.b16 %v718
        %v2626 = vunpack.c.l.b16 %v719
        %v2627 = vunpack.c.h.b16 %v719
        %v2628 = vunpack.c.l.b16 %v720
        %v2629 = vunpack.c.l.b16 %v721
        %v2630 = vunpack.c.h.b16 %v721
        %v2631 = vunpack.c.l.b16 %v722
        %v2632 = vunpack.c.l.b16 %v723
        %v2633 = vunpack.c.h.b16 %v723
        %v2634 = vunpack.c.l.b16 %v724
        %v2635 = vunpack.c.l.b16 %v725
        %v2636 = vunpack.c.h.b16 %v725
        %v2637 = vunpack.c.l.b16 %v726
        %v2638 = vunpack.c.l.b16 %v727
        %v2639 = vunpack.c.h.b16 %v727
        %v2640 = vunpack.c.l.b16 %v728
        %v2641 = vunpack.c.l.b16 %v729
        %v2642 = vunpack.c.h.b16 %v729
        %v2643 = vunpack.c.l.b16 %v730
        %v2644 = vunpack.c.l.b16 %v731
        %v2645 = vunpack.c.h.b16 %v731
        %v2646 = vunpack.c.l.b16 %v732
        %v2647 = vunpack.c.l.b16 %v733
        %v2648 = vunpack.c.h.b16 %v733
        %v2649 = vunpack.c.l.b16 %v734
        %v2650 = vunpack.c.l.b16 %v735
        %v2651 = vunpack.c.h.b16 %v735
        %v2652 = vunpack.c.l.b16 %v736
        %v2653 = vunpack.c.l.b16 %v737
        %v2654 = vunpack.c.h.b16 %v737
        %v2655 = vunpack.c.l.b16 %v738
        %v2656 = vunpack.c.l.b16 %v739
        %v2657 = vunpack.c.h.b16 %v739
        %v2658 = vunpack.c.l.b16 %v740
        %v2659 = vunpack.c.l.b16 %v741
        %v2660 = vunpack.c.h.b16 %v741
        %v2661 = vunpack.c.l.b16 %v742
        %v2662 = vunpack.c.l.b16 %v743
        %v2663 = vunpack.c.h.b16 %v743
        %v2664 = vunpack.c.l.b16 %v744
        %v2665 = vunpack.c.l.b16 %v745
        %v2666 = vunpack.c.h.b16 %v745
        %v2667 = vunpack.c.l.b16 %v746
        %v2668 = vunpack.c.l.b16 %v747
        %v2669 = vunpack.c.h.b16 %v747
        %v2670 = vunpack.c.l.b16 %v748
        %v2671 = vunpack.c.l.b16 %v749
        %v2672 = vunpack.c.h.b16 %v749
        %v2673 = vunpack.c.l.b16 %v750
        %v2674 = vunpack.c.l.b16 %v751
        %v2675 = vunpack.c.h.b16 %v751
        %v2676 = vunpack.c.l.b16 %v752
        %v2677 = vunpack.c.l.b16 %v753
        %v2678 = vunpack.c.h.b16 %v753
        %v2679 = vunpack.c.l.b16 %v754
        %v2680 = vunpack.c.l.b16 %v755
        %v2681 = vunpack.c.h.b16 %v755
        %v2682 = vunpack.c.l.b16 %v756
        %v2683 = vunpack.c.l.b16 %v757
        %v2684 = vunpack.c.h.b16 %v757
        %v2685 = vunpack.c.l.b16 %v758
        %v2686 = vunpack.c.l.b16 %v759
        %v2687 = vunpack.c.h.b16 %v759
        %v2688 = vunpack.c.l.b16 %v760
        %v2689 = vunpack.c.l.b16 %v761
        %v2690 = vunpack.c.h.b16 %v761
        %v2691 = vunpack.c.l.b16 %v762
        %v2692 = vunpack.c.l.b16 %v763
        %v2693 = vunpack.c.h.b16 %v763
        %v2694 = vunpack.c.l.b16 %v764
        %v2695 = vunpack.c.l.b16 %v765
        %v2696 = vunpack.c.h.b16 %v765
        %v2697 = vunpack.c.l.b16 %v766
        %v2698 = vunpack.c.l.b16 %v767
        %v2699 = vunpack.c.h.b16 %v767
        %v2700 = vunpack.c.l.b16 %v768
        %v2701 = vunpack.c.l.b16 %v769
        %v2702 = vunpack.c.h.b16 %v769
        %v2703 = vunpack.c.l.b16 %v770
        %v2704 = vunpack.c.l.b16 %v771
        %v2705 = vunpack.c.h.b16 %v771
        %v2706 = vunpack.c.l.b16 %v772
        %v2707 = vunpack.c.l.b16 %v773
        %v2708 = vunpack.c.h.b16 %v773
        %v2709 = vunpack.c.l.b16 %v774
        %v2710 = vunpack.c.l.b16 %v775
        %v2711 = vunpack.c.h.b16 %v775
        %v2712 = vunpack.c.l.b16 %v776
        %v2713 = vunpack.c.l.b16 %v777
        %v2714 = vunpack.c.h.b16 %v777
        %v2715 = vunpack.c.l.b16 %v778
        %v2716 = vunpack.c.l.b16 %v779
        %v2717 = vunpack.c.h.b16 %v779
        %v2718 = vunpack.c.l.b16 %v780
        %v2719 = vunpack.c.l.b16 %v781
        %v2720 = vunpack.c.h.b16 %v781
        %v2721 = vunpack.c.l.b16 %v782
        %v2722 = vunpack.c.l.b16 %v783
        %v2723 = vunpack.c.h.b16 %v783
        %v2724 = vunpack.c.l.b16 %v784
        %v2725 = vunpack.c.l.b16 %v785
        %v2726 = vunpack.c.h.b16 %v785
        %v2727 = vunpack.c.l.b16 %v786
        %v2728 = vunpack.c.l.b16 %v787
        %v2729 = vunpack.c.h.b16 %v787
        %v2730 = vunpack.c.l.b16 %v788
        %v2731 = vunpack.c.l.b16 %v789
        %v2732 = vunpack.c.h.b16 %v789
        %v2733 = vunpack.c.l.b16 %v790
        %v2734 = vunpack.c.l.b16 %v791
        %v2735 = vunpack.c.h.b16 %v791
        %v2736 = vunpack.c.l.b16 %v792
        %v2737 = vunpack.c.l.b16 %v793
        %v2738 = vunpack.c.h.b16 %v793
        %v2739 = vunpack.c.l.b16 %v794
        %v2740 = vunpack.c.l.b16 %v795
        %v2741 = vunpack.c.h.b16 %v795
        %v2742 = vunpack.c.l.b16 %v796
        %v2743 = vunpack.c.l.b16 %v797
        %v2744 = vunpack.c.h.b16 %v797
        %v2745 = vunpack.c.l.b16 %v798
        %v2746 = vunpack.c.l.b16 %v799
        %v2747 = vunpack.c.h.b16 %v799
        %v2748 = vunpack.c.l.b16 %v800
        %v2749 = vunpack.c.l.b16 %v801
        %v2750 = vunpack.c.h.b16 %v801
        %v2751 = vunpack.c.l.b16 %v802
        %v2752 = vunpack.c.l.b16 %v803
        %v2753 = vunpack.c.h.b16 %v803
        %v2754 = vunpack.c.l.b16 %v804
        %v2755 = vunpack.c.l.b16 %v805
        %v2756 = vunpack.c.h.b16 %v805
        %v2757 = vunpack.c.l.b16 %v806
        %v2758 = vunpack.c.l.b16 %v807
        %v2759 = vunpack.c.h.b16 %v807
        %v2760 = vunpack.c.l.b16 %v808
        %v2761 = vunpack.c.l.b16 %v809
        %v2762 = vunpack.c.h.b16 %v809
        %v2763 = vunpack.c.l.b16 %v810
        %v2764 = vunpack.c.l.b16 %v811
        %v2765 = vunpack.c.h.b16 %v811
        %v2766 = vunpack.c.l.b16 %v812
        %v2767 = vunpack.c.l.b16 %v813
        %v2768 = vunpack.c.h.b16 %v813
        %v2769 = vunpack.c.l.b16 %v814
        %v2770 = vunpack.c.l.b16 %v815
        %v2771 = vunpack.c.h.b16 %v815
        %v2772 = vunpack.c.l.b16 %v816
        %v2773 = vunpack.c.l.b16 %v817
        %v2774 = vunpack.c.h.b16 %v817
        %v2775 = vunpack.c.l.b16 %v818
        %v2776 = vunpack.c.l.b16 %v819
        %v2777 = vunpack.c.h.b16 %v819
        %v2778 = vunpack.c.l.b16 %v820
        %v2779 = vunpack.c.l.b16 %v821
        %v2780 = vunpack.c.h.b16 %v821
        %v2781 = vunpack.c.l.b16 %v822
        %v2782 = vunpack.c.l.b16 %v823
        %v2783 = vunpack.c.h.b16 %v823
        %v2784 = vunpack.c.l.b16 %v824
        %v2785 = vunpack.c.l.b16 %v825
        %v2786 = vunpack.c.h.b16 %v825
        %v2787 = vunpack.c.l.b16 %v826
        %v2788 = vunpack.c.l.b16 %v827
        %v2789 = vunpack.c.h.b16 %v827
        %v2790 = vunpack.c.l.b16 %v828
        %v2791 = vunpack.c.l.b16 %v829
        %v2792 = vunpack.c.h.b16 %v829
        %v2793 = vunpack.c.l.b16 %v830
        %v2794 = vunpack.c.l.b16 %v831
        %v2795 = vunpack.c.h.b16 %v831
        %v2796 = vunpack.c.l.b16 %v832
        %v2797 = vunpack.c.l.b16 %v833
        %v2798 = vunpack.c.h.b16 %v833
        %v2799 = vunpack.c.l.b16 %v834
        %v2800 = vunpack.c.l.b16 %v835
        %v2801 = vunpack.c.h.b16 %v835
        %v2802 = vunpack.c.l.b16 %v836
        %v2803 = vunpack.c.l.b16 %v837
        %v2804 = vunpack.c.h.b16 %v837
        %v2805 = vunpack.c.l.b16 %v838
        %v2806 = vunpack.c.l.b16 %v839
        %v2807 = vunpack.c.h.b16 %v839
        %v2808 = vunpack.c.l.b16 %v840
        %v2809 = vunpack.c.l.b16 %v841
        %v2810 = vunpack.c.h.b16 %v841
        %v2811 = vunpack.c.l.b16 %v842
        %v2812 = vunpack.c.l.b16 %v843
        %v2813 = vunpack.c.h.b16 %v843
        %v2814 = vunpack.c.l.b16 %v844
        %v2815 = vunpack.c.l.b16 %v845
        %v2816 = vunpack.c.h.b16 %v845
        %v2817 = vunpack.c.l.b16 %v846
        %v2818 = vunpack.c.l.b16 %v847
        %v2819 = vunpack.c.h.b16 %v847
        %v2820 = vunpack.c.l.b16 %v848
        %v2821 = vunpack.c.l.b16 %v849
        %v2822 = vunpack.c.h.b16 %v849
        %v2823 = vunpack.c.l.b16 %v850
        %v2824 = vunpack.c.l.b16 %v851
        %v2825 = vunpack.c.h.b16 %v851
        %v2826 = vunpack.c.l.b16 %v852
        %v2827 = vunpack.c.l.b16 %v853
        %v2828 = vunpack.c.h.b16 %v853
        %v2829 = vunpack.c.l.b16 %v854
        %v2830 = vunpack.c.l.b16 %v855
        %v2831 = vunpack.c.h.b16 %v855
        %v2832 = vunpack.c.l.b16 %v856
        %v2833 = vunpack.c.l.b16 %v857
        %v2834 = vunpack.c.h.b16 %v857
        %v2835 = vunpack.c.l.b16 %v858
        %v2836 = vunpack.c.l.b16 %v859
        %v2837 = vunpack.c.h.b16 %v859
        %v2838 = vunpack.c.l.b16 %v860
        %v2839 = vunpack.c.l.b16 %v861
        %v2840 = vunpack.c.h.b16 %v861
        %v2841 = vunpack.c.l.b16 %v862
        %v2842 = vunpack.c.l.b16 %v863
        %v2843 = vunpack.c.h.b16 %v863
        %v2844 = vunpack.c.l.b16 %v864
        %v2845 = vunpack.c.l.b16 %v865
        %v2846 = vunpack.c.h.b16 %v865
        %v2847 = vunpack.c.l.b16 %v866
        %v2848 = vunpack.c.l.b16 %v867
        %v2849 = vunpack.c.h.b16 %v867
        %v2850 = vunpack.c.l.b16 %v868
        %v2851 = vunpack.c.l.b16 %v869
        %v2852 = vunpack.c.h.b16 %v869
        %v2853 = vunpack.c.l.b16 %v870
        %v2854 = vunpack.c.l.b16 %v871
        %v2855 = vunpack.c.h.b16 %v871
        %v2856 = vunpack.c.l.b16 %v872
        %v2857 = vunpack.c.l.b16 %v873
        %v2858 = vunpack.c.h.b16 %v873
        %v2859 = vunpack.c.l.b16 %v874
        %v2860 = vunpack.c.l.b16 %v875
        %v2861 = vunpack.c.h.b16 %v875
        %v2862 = vunpack.c.l.b16 %v876
        %v2863 = vunpack.c.l.b16 %v877
        %v2864 = vunpack.c.h.b16 %v877
        %v2865 = vunpack.c.l.b16 %v878
        %v2866 = vunpack.c.l.b16 %v879
        %v2867 = vunpack.c.h.b16 %v879
        %v2868 = vunpack.c.l.b16 %v880
        %v2869 = vunpack.c.l.b16 %v881
        %v2870 = vunpack.c.h.b16 %v881
        %v2871 = vunpack.c.l.b16 %v882
        %v2872 = vunpack.c.l.b16 %v883
        %v2873 = vunpack.c.h.b16 %v883
        %v2874 = vunpack.c.l.b16 %v884
        %v2875 = vunpack.c.l.b16 %v885
        %v2876 = vunpack.c.h.b16 %v885
        %v2877 = vunpack.c.l.b16 %v886
        %v2878 = vunpack.c.l.b16 %v887
        %v2879 = vunpack.c.h.b16 %v887
        %v2880 = vunpack.c.l.b16 %v888
        %v2881 = vunpack.c.l.b16 %v889
        %v2882 = vunpack.c.h.b16 %v889
        %v2883 = vunpack.c.l.b16 %v890
        %v2884 = vunpack.c.l.b16 %v891
        %v2885 = vunpack.c.h.b16 %v891
        %v2886 = vunpack.c.l.b16 %v892
        %v2887 = vunpack.c.l.b16 %v893
        %v2888 = vunpack.c.h.b16 %v893
        %v2889 = vunpack.c.l.b16 %v894
        %v2890 = vunpack.c.l.b16 %v895
        %v2891 = vunpack.c.h.b16 %v895
        %v2892 = vunpack.c.l.b16 %v896
        %v2893 = vunpack.c.l.b16 %v897
        %v2894 = vunpack.c.h.b16 %v897
        %v2895 = vunpack.c.l.b16 %v898
        %v2896 = vunpack.c.l.b16 %v899
        %v2897 = vunpack.c.h.b16 %v899
        %v2898 = vunpack.c.l.b16 %v900
        %v2899 = vunpack.c.l.b16 %v901
        %v2900 = vunpack.c.h.b16 %v901
        %v2901 = vunpack.c.l.b16 %v902
        %v2902 = vunpack.c.l.b16 %v903
        %v2903 = vunpack.c.h.b16 %v903
        %v2904 = vunpack.c.l.b16 %v904
        %v2905 = vunpack.c.l.b16 %v905
        %v2906 = vunpack.c.h.b16 %v905
        %v2907 = vunpack.c.l.b16 %v906
        %v2908 = vunpack.c.l.b16 %v907
        %v2909 = vunpack.c.h.b16 %v907
        %v2910 = vunpack.c.l.b16 %v908
        %v2911 = vunpack.c.l.b16 %v909
        %v2912 = vunpack.c.h.b16 %v909
        %v2913 = vunpack.c.l.b16 %v910
        %v2914 = vunpack.c.l.b16 %v911
        %v2915 = vunpack.c.h.b16 %v911
        %v2916 = vunpack.c.l.b16 %v912
        %v2917 = vunpack.c.l.b16 %v913
        %v2918 = vunpack.c.h.b16 %v913
        %v2919 = vunpack.c.l.b16 %v914
        %v2920 = vunpack.c.l.b16 %v915
        %v2921 = vunpack.c.h.b16 %v915
        %v2922 = vunpack.c.l.b16 %v916
        %v2923 = vunpack.c.l.b16 %v917
        %v2924 = vunpack.c.h.b16 %v917
        %v2925 = vunpack.c.l.b16 %v918
        %v2926 = vunpack.c.l.b16 %v919
        %v2927 = vunpack.c.h.b16 %v919
        %v2928 = vunpack.c.l.b16 %v920
        %v2929 = vunpack.c.l.b16 %v921
        %v2930 = vunpack.c.h.b16 %v921
        %v2931 = vunpack.c.l.b16 %v922
        %v2932 = vunpack.c.l.b16 %v923
        %v2933 = vunpack.c.h.b16 %v923
        %v2934 = vunpack.c.l.b16 %v924
        %v2935 = vunpack.c.l.b16 %v925
        %v2936 = vunpack.c.h.b16 %v925
        %v2937 = vunpack.c.l.b16 %v926
        %v2938 = vunpack.c.l.b16 %v927
        %v2939 = vunpack.c.h.b16 %v927
        %v2940 = vunpack.c.l.b16 %v928
        %v2941 = vunpack.c.l.b16 %v929
        %v2942 = vunpack.c.h.b16 %v929
        %v2943 = vunpack.c.l.b16 %v930
        %v2944 = vunpack.c.l.b16 %v931
        %v2945 = vunpack.c.h.b16 %v931
        %v2946 = vunpack.c.l.b16 %v932
        %v2947 = vunpack.c.l.b16 %v933
        %v2948 = vunpack.c.h.b16 %v933
        %v2949 = vunpack.c.l.b16 %v934
        %v2950 = vunpack.c.l.b16 %v935
        %v2951 = vunpack.c.h.b16 %v935
        %v2952 = vunpack.c.l.b16 %v936
        %v2953 = vunpack.c.l.b16 %v937
        %v2954 = vunpack.c.h.b16 %v937
        %v2955 = vunpack.c.l.b16 %v938
        %v2956 = vunpack.c.l.b16 %v939
        %v2957 = vunpack.c.h.b16 %v939
        %v2958 = vunpack.c.l.b16 %v940
        %v2959 = vunpack.c.l.b16 %v941
        %v2960 = vunpack.c.h.b16 %v941
        %v2961 = vunpack.c.l.b16 %v942
        %v2962 = vunpack.c.l.b16 %v943
        %v2963 = vunpack.c.h.b16 %v943
        %v2964 = vunpack.c.l.b16 %v944
        %v2965 = vunpack.c.l.b16 %v945
        %v2966 = vunpack.c.h.b16 %v945
        %v2967 = vunpack.c.l.b16 %v946
        %v2968 = vunpack.c.l.b16 %v947
        %v2969 = vunpack.c.h.b16 %v947
        %v2970 = vunpack.c.l.b16 %v948
        %v2971 = vunpack.c.l.b16 %v949
        %v2972 = vunpack.c.h.b16 %v949
        %v2973 = vunpack.c.l.b16 %v950
        %v2974 = vunpack.c.l.b16 %v951
        %v2975 = vunpack.c.h.b16 %v951
        %v2976 = vunpack.c.l.b16 %v952
        %v2977 = vunpack.c.l.b16 %v953
        %v2978 = vunpack.c.h.b16 %v953
        %v2979 = vunpack.c.l.b16 %v954
        %v2980 = vunpack.c.l.b16 %v955
        %v2981 = vunpack.c.h.b16 %v955
        %v2982 = vunpack.c.l.b16 %v956
        %v2983 = vunpack.c.l.b16 %v957
        %v2984 = vunpack.c.h.b16 %v957
        %v2985 = vunpack.c.l.b16 %v958
        %v2986 = vunpack.c.l.b16 %v959
        %v2987 = vunpack.c.h.b16 %v959
        %v2988 = vunpack.c.l.b16 %v960
        %v2989 = vunpack.c.l.b16 %v961
        %v2990 = vunpack.c.h.b16 %v961
        %v2991 = vunpack.c.l.b16 %v962
        %v2992 = vunpack.c.l.b16 %v963
        %v2993 = vunpack.c.h.b16 %v963
        %v2994 = vunpack.c.l.b16 %v964
        %v2995 = vunpack.c.l.b16 %v965
        %v2996 = vunpack.c.h.b16 %v965
        %v2997 = vunpack.c.l.b16 %v966
        %v2998 = vunpack.c.l.b16 %v967
        %v2999 = vunpack.c.h.b16 %v967
        %v3000 = vunpack.c.l.b16 %v968
        %v3001 = vunpack.c.l.b16 %v969
        %v3002 = vunpack.c.h.b16 %v969
        %v3003 = vunpack.c.l.b16 %v970
        %v3004 = vunpack.c.l.b16 %v971
        %v3005 = vunpack.c.h.b16 %v971
        %v3006 = vunpack.c.l.b16 %v972
        %v3007 = vunpack.c.l.b16 %v973
        %v3008 = vunpack.c.h.b16 %v973
        %v3009 = vunpack.c.l.b16 %v974
        %v3010 = vunpack.c.l.b16 %v975
        %v3011 = vunpack.c.h.b16 %v975
        %v3012 = vunpack.c.l.b16 %v976
        %v3013 = vunpack.c.l.b16 %v977
        %v3014 = vunpack.c.h.b16 %v977
        %v3015 = vunpack.c.l.b16 %v978
        %v3016 = vunpack.c.l.b16 %v979
        %v3017 = vunpack.c.h.b16 %v979
        %v3018 = vunpack.c.l.b16 %v980
        %v3019 = vunpack.c.l.b16 %v981
        %v3020 = vunpack.c.h.b16 %v981
        %v3021 = vunpack.c.l.b16 %v982
        %v3022 = vunpack.c.l.b16 %v983
        %v3023 = vunpack.c.h.b16 %v983
        %v3024 = vunpack.c.l.b16 %v984
        %v3025 = vpack.c.b16 %v1876, %v1873
        %v3026 = vpack.c.b16 %v1877, %v1874
        %v3027 = vpack.c.b16 %v1878, %v1875
        %v3028 = vpack.c.b16 %v1882, %v1879
        %v3029 = vpack.c.b16 %v1883, %v1880
        %v3030 = vpack.c.b16 %v1884, %v1881
        %v3031 = vpack.c.b16 %v1888, %v1885
        %v3032 = vpack.c.b16 %v1889, %v1886
        %v3033 = vpack.c.b16 %v1890, %v1887
        %v3034 = vpack.c.b16 %v1894, %v1891
        %v3035 = vpack.c.b16 %v1895, %v1892
        %v3036 = vpack.c.b16 %v1896, %v1893
        %v3037 = vpack.c.b16 %v1900, %v1897
        %v3038 = vpack.c.b16 %v1901, %v1898
        %v3039 = vpack.c.b16 %v1902, %v1899
        %v3040 = vpack.c.b16 %v1906, %v1903
        %v3041 = vpack.c.b16 %v1907, %v1904
        %v3042 = vpack.c.b16 %v1908, %v1905
        %v3043 = vpack.c.b16 %v1912, %v1909
        %v3044 = vpack.c.b16 %v1913, %v1910
        %v3045 = vpack.c.b16 %v1914, %v1911
        %v3046 = vpack.c.b16 %v1918, %v1915
        %v3047 = vpack.c.b16 %v1919, %v1916
        %v3048 = vpack.c.b16 %v1920, %v1917
        %v3049 = vpack.c.b16 %v1924, %v1921
        %v3050 = vpack.c.b16 %v1925, %v1922
        %v3051 = vpack.c.b16 %v1926, %v1923
        %v3052 = vpack.c.b16 %v1930, %v1927
        %v3053 = vpack.c.b16 %v1931, %v1928
        %v3054 = vpack.c.b16 %v1932, %v1929
        %v3055 = vpack.c.b16 %v1936, %v1933
        %v3056 = vpack.c.b16 %v1937, %v1934
        %v3057 = vpack.c.b16 %v1938, %v1935
        %v3058 = vpack.c.b16 %v1942, %v1939
        %v3059 = vpack.c.b16 %v1943, %v1940
        %v3060 = vpack.c.b16 %v1944, %v1941
        %v3061 = vpack.c.b16 %v1948, %v1945
        %v3062 = vpack.c.b16 %v1949, %v1946
        %v3063 = vpack.c.b16 %v1950, %v1947
        %v3064 = vpack.c.b16 %v1954, %v1951
        %v3065 = vpack.c.b16 %v1955, %v1952
        %v3066 = vpack.c.b16 %v1956, %v1953
        %v3067 = vpack.c.b16 %v1960, %v1957
        %v3068 = vpack.c.b16 %v1961, %v1958
        %v3069 = vpack.c.b16 %v1962, %v1959
        %v3070 = vpack.c.b16 %v1966, %v1963
        %v3071 = vpack.c.b16 %v1967, %v1964
        %v3072 = vpack.c.b16 %v1968, %v1965
        %v3073 = vpack.c.b16 %v1972, %v1969
        %v3074 = vpack.c.b16 %v1973, %v1970
        %v3075 = vpack.c.b16 %v1974, %v1971
        %v3076 = vpack.c.b16 %v1978, %v1975
        %v3077 = vpack.c.b16 %v1979, %v1976
        %v3078 = vpack.c.b16 %v1980, %v1977
        %v3079 = vpack.c.b16 %v1984, %v1981
        %v3080 = vpack.c.b16 %v1985, %v1982
        %v3081 = vpack.c.b16 %v1986, %v1983
        %v3082 = vpack.c.b16 %v1990, %v1987
        %v3083 = vpack.c.b16 %v1991, %v1988
        %v3084 = vpack.c.b16 %v1992, %v1989
        %v3085 = vpack.c.b16 %v1996, %v1993
        %v3086 = vpack.c.b16 %v1997, %v1994
        %v3087 = vpack.c.b16 %v1998, %v1995
        %v3088 = vpack.c.b16 %v2002, %v1999
        %v3089 = vpack.c.b16 %v2003, %v2000
        %v3090 = vpack.c.b16 %v2004, %v2001
        %v3091 = vpack.c.b16 %v2008, %v2005
        %v3092 = vpack.c.b16 %v2009, %v2006
        %v3093 = vpack.c.b16 %v2010, %v2007
        %v3094 = vpack.c.b16 %v2014, %v2011
        %v3095 = vpack.c.b16 %v2015, %v2012
        %v3096 = vpack.c.b16 %v2016, %v2013
        %v3097 = vpack.c.b16 %v2020, %v2017
        %v3098 = vpack.c.b16 %v2021, %v2018
        %v3099 = vpack.c.b16 %v2022, %v2019
        %v3100 = vpack.c.b16 %v2026, %v2023
        %v3101 = vpack.c.b16 %v2027, %v2024
        %v3102 = vpack.c.b16 %v2028, %v2025
        %v3103 = vpack.c.b16 %v2032, %v2029
        %v3104 = vpack.c.b16 %v2033, %v2030
        %v3105 = vpack.c.b16 %v2034, %v2031
        %v3106 = vpack.c.b16 %v2038, %v2035
        %v3107 = vpack.c.b16 %v2039, %v2036
        %v3108 = vpack.c.b16 %v2040, %v2037
        %v3109 = vpack.c.b16 %v2044, %v2041
        %v3110 = vpack.c.b16 %v2045, %v2042
        %v3111 = vpack.c.b16 %v2046, %v2043
        %v3112 = vpack.c.b16 %v2050, %v2047
        %v3113 = vpack.c.b16 %v2051, %v2048
        %v3114 = vpack.c.b16 %v2052, %v2049
        %v3115 = vpack.c.b16 %v2056, %v2053
        %v3116 = vpack.c.b16 %v2057, %v2054
        %v3117 = vpack.c.b16 %v2058, %v2055
        %v3118 = vpack.c.b16 %v2062, %v2059
        %v3119 = vpack.c.b16 %v2063, %v2060
        %v3120 = vpack.c.b16 %v2064, %v2061
        %v3121 = vpack.c.b16 %v2068, %v2065
        %v3122 = vpack.c.b16 %v2069, %v2066
        %v3123 = vpack.c.b16 %v2070, %v2067
        %v3124 = vpack.c.b16 %v2074, %v2071
        %v3125 = vpack.c.b16 %v2075, %v2072
        %v3126 = vpack.c.b16 %v2076, %v2073
        %v3127 = vpack.c.b16 %v2080, %v2077
        %v3128 = vpack.c.b16 %v2081, %v2078
        %v3129 = vpack.c.b16 %v2082, %v2079
        %v3130 = vpack.c.b16 %v2086, %v2083
        %v3131 = vpack.c.b16 %v2087, %v2084
        %v3132 = vpack.c.b16 %v2088, %v2085
        %v3133 = vpack.c.b16 %v2092, %v2089
        %v3134 = vpack.c.b16 %v2093, %v2090
        %v3135 = vpack.c.b16 %v2094, %v2091
        %v3136 = vpack.c.b16 %v2098, %v2095
        %v3137 = vpack.c.b16 %v2099, %v2096
        %v3138 = vpack.c.b16 %v2100, %v2097
        %v3139 = vpack.c.b16 %v2104, %v2101
        %v3140 = vpack.c.b16 %v2105, %v2102
        %v3141 = vpack.c.b16 %v2106, %v2103
        %v3142 = vpack.c.b16 %v2110, %v2107
        %v3143 = vpack.c.b16 %v2111, %v2108
        %v3144 = vpack.c.b16 %v2112, %v2109
        %v3145 = vpack.c.b16 %v2116, %v2113
        %v3146 = vpack.c.b16 %v2117, %v2114
        %v3147 = vpack.c.b16 %v2118, %v2115
        %v3148 = vpack.c.b16 %v2122, %v2119
        %v3149 = vpack.c.b16 %v2123, %v2120
        %v3150 = vpack.c.b16 %v2124, %v2121
        %v3151 = vpack.c.b16 %v2128, %v2125
        %v3152 = vpack.c.b16 %v2129, %v2126
        %v3153 = vpack.c.b16 %v2130, %v2127
        %v3154 = vpack.c.b16 %v2134, %v2131
        %v3155 = vpack.c.b16 %v2135, %v2132
        %v3156 = vpack.c.b16 %v2136, %v2133
        %v3157 = vpack.c.b16 %v2140, %v2137
        %v3158 = vpack.c.b16 %v2141, %v2138
        %v3159 = vpack.c.b16 %v2142, %v2139
        %v3160 = vpack.c.b16 %v2146, %v2143
        %v3161 = vpack.c.b16 %v2147, %v2144
        %v3162 = vpack.c.b16 %v2148, %v2145
        %v3163 = vpack.c.b16 %v2152, %v2149
        %v3164 = vpack.c.b16 %v2153, %v2150
        %v3165 = vpack.c.b16 %v2154, %v2151
        %v3166 = vpack.c.b16 %v2158, %v2155
        %v3167 = vpack.c.b16 %v2159, %v2156
        %v3168 = vpack.c.b16 %v2160, %v2157
        %v3169 = vpack.c.b16 %v2164, %v2161
        %v3170 = vpack.c.b16 %v2165, %v2162
        %v3171 = vpack.c.b16 %v2166, %v2163
        %v3172 = vpack.c.b16 %v2170, %v2167
        %v3173 = vpack.c.b16 %v2171, %v2168
        %v3174 = vpack.c.b16 %v2172, %v2169
        %v3175 = vpack.c.b16 %v2176, %v2173
        %v3176 = vpack.c.b16 %v2177, %v2174
        %v3177 = vpack.c.b16 %v2178, %v2175
        %v3178 = vpack.c.b16 %v2182, %v2179
        %v3179 = vpack.c.b16 %v2183, %v2180
        %v3180 = vpack.c.b16 %v2184, %v2181
        %v3181 = vpack.c.b16 %v2188, %v2185
        %v3182 = vpack.c.b16 %v2189, %v2186
        %v3183 = vpack.c.b16 %v2190, %v2187
        %v3184 = vpack.c.b16 %v2194, %v2191
        %v3185 = vpack.c.b16 %v2195, %v2192
        %v3186 = vpack.c.b16 %v2196, %v2193
        %v3187 = vpack.c.b16 %v2200, %v2197
        %v3188 = vpack.c.b16 %v2201, %v2198
        %v3189 = vpack.c.b16 %v2202, %v2199
        %v3190 = vpack.c.b16 %v2206, %v2203
        %v3191 = vpack.c.b16 %v2207, %v2204
        %v3192 = vpack.c.b16 %v2208, %v2205
        %v3193 = vpack.c.b16 %v2212, %v2209
        %v3194 = vpack.c.b16 %v2213, %v2210
        %v3195 = vpack.c.b16 %v2214, %v2211
        %v3196 = vpack.c.b16 %v2218, %v2215
        %v3197 = vpack.c.b16 %v2219, %v2216
        %v3198 = vpack.c.b16 %v2220, %v2217
        %v3199 = vpack.c.b16 %v2224, %v2221
        %v3200 = vpack.c.b16 %v2225, %v2222
        %v3201 = vpack.c.b16 %v2226, %v2223
        %v3202 = vpack.c.b16 %v2230, %v2227
        %v3203 = vpack.c.b16 %v2231, %v2228
        %v3204 = vpack.c.b16 %v2232, %v2229
        %v3205 = vpack.c.b16 %v2236, %v2233
        %v3206 = vpack.c.b16 %v2237, %v2234
        %v3207 = vpack.c.b16 %v2238, %v2235
        %v3208 = vpack.c.b16 %v2242, %v2239
        %v3209 = vpack.c.b16 %v2243, %v2240
        %v3210 = vpack.c.b16 %v2244, %v2241
        %v3211 = vpack.c.b16 %v2248, %v2245
        %v3212 = vpack.c.b16 %v2249, %v2246
        %v3213 = vpack.c.b16 %v2250, %v2247
        %v3214 = vpack.c.b16 %v2254, %v2251
        %v3215 = vpack.c.b16 %v2255, %v2252
        %v3216 = vpack.c.b16 %v2256, %v2253
        %v3217 = vpack.c.b16 %v2260, %v2257
        %v3218 = vpack.c.b16 %v2261, %v2258
        %v3219 = vpack.c.b16 %v2262, %v2259
        %v3220 = vpack.c.b16 %v2266, %v2263
        %v3221 = vpack.c.b16 %v2267, %v2264
        %v3222 = vpack.c.b16 %v2268, %v2265
        %v3223 = vpack.c.b16 %v2272, %v2269
        %v3224 = vpack.c.b16 %v2273, %v2270
        %v3225 = vpack.c.b16 %v2274, %v2271
        %v3226 = vpack.c.b16 %v2278, %v2275
        %v3227 = vpack.c.b16 %v2279, %v2276
        %v3228 = vpack.c.b16 %v2280, %v2277
        %v3229 = vpack.c.b16 %v2284, %v2281
        %v3230 = vpack.c.b16 %v2285, %v2282
        %v3231 = vpack.c.b16 %v2286, %v2283
        %v3232 = vpack.c.b16 %v2290, %v2287
        %v3233 = vpack.c.b16 %v2291, %v2288
        %v3234 = vpack.c.b16 %v2292, %v2289
        %v3235 = vpack.c.b16 %v2296, %v2293
        %v3236 = vpack.c.b16 %v2297, %v2294
        %v3237 = vpack.c.b16 %v2298, %v2295
        %v3238 = vpack.c.b16 %v2302, %v2299
        %v3239 = vpack.c.b16 %v2303, %v2300
        %v3240 = vpack.c.b16 %v2304, %v2301
        %v3241 = vpack.c.b16 %v2308, %v2305
        %v3242 = vpack.c.b16 %v2309, %v2306
        %v3243 = vpack.c.b16 %v2310, %v2307
        %v3244 = vpack.c.b16 %v2314, %v2311
        %v3245 = vpack.c.b16 %v2315, %v2312
        %v3246 = vpack.c.b16 %v2316, %v2313
        %v3247 = vpack.c.b16 %v2320, %v2317
        %v3248 = vpack.c.b16 %v2321, %v2318
        %v3249 = vpack.c.b16 %v2322, %v2319
        %v3250 = vpack.c.b16 %v2326, %v2323
        %v3251 = vpack.c.b16 %v2327, %v2324
        %v3252 = vpack.c.b16 %v2328, %v2325
        %v3253 = vpack.c.b16 %v2332, %v2329
        %v3254 = vpack.c.b16 %v2333, %v2330
        %v3255 = vpack.c.b16 %v2334, %v2331
        %v3256 = vpack.c.b16 %v2338, %v2335
        %v3257 = vpack.c.b16 %v2339, %v2336
        %v3258 = vpack.c.b16 %v2340, %v2337
        %v3259 = vpack.c.b16 %v2344, %v2341
        %v3260 = vpack.c.b16 %v2345, %v2342
        %v3261 = vpack.c.b16 %v2346, %v2343
        %v3262 = vpack.c.b16 %v2350, %v2347
        %v3263 = vpack.c.b16 %v2351, %v2348
        %v3264 = vpack.c.b16 %v2352, %v2349
        %v3265 = vpack.c.b16 %v2356, %v2353
        %v3266 = vpack.c.b16 %v2357, %v2354
        %v3267 = vpack.c.b16 %v2358, %v2355
        %v3268 = vpack.c.b16 %v2362, %v2359
        %v3269 = vpack.c.b16 %v2363, %v2360
        %v3270 = vpack.c.b16 %v2364, %v2361
        %v3271 = vpack.c.b16 %v2368, %v2365
        %v3272 = vpack.c.b16 %v2369, %v2366
        %v3273 = vpack.c.b16 %v2370, %v2367
        %v3274 = vpack.c.b16 %v2374, %v2371
        %v3275 = vpack.c.b16 %v2375, %v2372
        %v3276 = vpack.c.b16 %v2376, %v2373
        %v3277 = vpack.c.b16 %v2380, %v2377
        %v3278 = vpack.c.b16 %v2381, %v2378
        %v3279 = vpack.c.b16 %v2382, %v2379
        %v3280 = vpack.c.b16 %v2386, %v2383
        %v3281 = vpack.c.b16 %v2387, %v2384
        %v3282 = vpack.c.b16 %v2388, %v2385
        %v3283 = vpack.c.b16 %v2392, %v2389
        %v3284 = vpack.c.b16 %v2393, %v2390
        %v3285 = vpack.c.b16 %v2394, %v2391
        %v3286 = vpack.c.b16 %v2398, %v2395
        %v3287 = vpack.c.b16 %v2399, %v2396
        %v3288 = vpack.c.b16 %v2400, %v2397
        %v3289 = vpack.c.b16 %v2404, %v2401
        %v3290 = vpack.c.b16 %v2405, %v2402
        %v3291 = vpack.c.b16 %v2406, %v2403
        %v3292 = vpack.c.b16 %v2410, %v2407
        %v3293 = vpack.c.b16 %v2411, %v2408
        %v3294 = vpack.c.b16 %v2412, %v2409
        %v3295 = vpack.c.b16 %v2416, %v2413
        %v3296 = vpack.c.b16 %v2417, %v2414
        %v3297 = vpack.c.b16 %v2418, %v2415
        %v3298 = vpack.c.b16 %v2422, %v2419
        %v3299 = vpack.c.b16 %v2423, %v2420
        %v3300 = vpack.c.b16 %v2424, %v2421
        %v3301 = vpack.c.b16 %v2428, %v2425
        %v3302 = vpack.c.b16 %v2429, %v2426
        %v3303 = vpack.c.b16 %v2430, %v2427
        %v3304 = vpack.c.b16 %v2434, %v2431
        %v3305 = vpack.c.b16 %v2435, %v2432
        %v3306 = vpack.c.b16 %v2436, %v2433
        %v3307 = vpack.c.b16 %v2440, %v2437
        %v3308 = vpack.c.b16 %v2441, %v2438
        %v3309 = vpack.c.b16 %v2442, %v2439
        %v3310 = vpack.c.b16 %v2446, %v2443
        %v3311 = vpack.c.b16 %v2447, %v2444
        %v3312 = vpack.c.b16 %v2448, %v2445
        %v3313 = vpack.c.b16 %v2452, %v2449
        %v3314 = vpack.c.b16 %v2453, %v2450
        %v3315 = vpack.c.b16 %v2454, %v2451
        %v3316 = vpack.c.b16 %v2458, %v2455
        %v3317 = vpack.c.b16 %v2459, %v2456
        %v3318 = vpack.c.b16 %v2460, %v2457
        %v3319 = vpack.c.b16 %v2464, %v2461
        %v3320 = vpack.c.b16 %v2465, %v2462
        %v3321 = vpack.c.b16 %v2466, %v2463
        %v3322 = vpack.c.b16 %v2470, %v2467
        %v3323 = vpack.c.b16 %v2471, %v2468
        %v3324 = vpack.c.b16 %v2472, %v2469
        %v3325 = vpack.c.b16 %v2476, %v2473
        %v3326 = vpack.c.b16 %v2477, %v2474
        %v3327 = vpack.c.b16 %v2478, %v2475
        %v3328 = vpack.c.b16 %v2482, %v2479
        %v3329 = vpack.c.b16 %v2483, %v2480
        %v3330 = vpack.c.b16 %v2484, %v2481
        %v3331 = vpack.c.b16 %v2488, %v2485
        %v3332 = vpack.c.b16 %v2489, %v2486
        %v3333 = vpack.c.b16 %v2490, %v2487
        %v3334 = vpack.c.b16 %v2494, %v2491
        %v3335 = vpack.c.b16 %v2495, %v2492
        %v3336 = vpack.c.b16 %v2496, %v2493
        %v3337 = vpack.c.b16 %v2500, %v2497
        %v3338 = vpack.c.b16 %v2501, %v2498
        %v3339 = vpack.c.b16 %v2502, %v2499
        %v3340 = vpack.c.b16 %v2506, %v2503
        %v3341 = vpack.c.b16 %v2507, %v2504
        %v3342 = vpack.c.b16 %v2508, %v2505
        %v3343 = vpack.c.b16 %v2512, %v2509
        %v3344 = vpack.c.b16 %v2513, %v2510
        %v3345 = vpack.c.b16 %v2514, %v2511
        %v3346 = vpack.c.b16 %v2518, %v2515
        %v3347 = vpack.c.b16 %v2519, %v2516
        %v3348 = vpack.c.b16 %v2520, %v2517
        %v3349 = vpack.c.b16 %v2524, %v2521
        %v3350 = vpack.c.b16 %v2525, %v2522
        %v3351 = vpack.c.b16 %v2526, %v2523
        %v3352 = vpack.c.b16 %v2530, %v2527
        %v3353 = vpack.c.b16 %v2531, %v2528
        %v3354 = vpack.c.b16 %v2532, %v2529
        %v3355 = vpack.c.b16 %v2536, %v2533
        %v3356 = vpack.c.b16 %v2537, %v2534
        %v3357 = vpack.c.b16 %v2538, %v2535
        %v3358 = vpack.c.b16 %v2542, %v2539
        %v3359 = vpack.c.b16 %v2543, %v2540
        %v3360 = vpack.c.b16 %v2544, %v2541
        %v3361 = vpack.c.b16 %v2548, %v2545
        %v3362 = vpack.c.b16 %v2549, %v2546
        %v3363 = vpack.c.b16 %v2550, %v2547
        %v3364 = vpack.c.b16 %v2554, %v2551
        %v3365 = vpack.c.b16 %v2555, %v2552
        %v3366 = vpack.c.b16 %v2556, %v2553
        %v3367 = vpack.c.b16 %v2560, %v2557
        %v3368 = vpack.c.b16 %v2561, %v2558
        %v3369 = vpack.c.b16 %v2562, %v2559
        %v3370 = vpack.c.b16 %v2566, %v2563
        %v3371 = vpack.c.b16 %v2567, %v2564
        %v3372 = vpack.c.b16 %v2568, %v2565
        %v3373 = vpack.c.b16 %v2572, %v2569
        %v3374 = vpack.c.b16 %v2573, %v2570
        %v3375 = vpack.c.b16 %v2574, %v2571
        %v3376 = vpack.c.b16 %v2578, %v2575
        %v3377 = vpack.c.b16 %v2579, %v2576
        %v3378 = vpack.c.b16 %v2580, %v2577
        %v3379 = vpack.c.b16 %v2584, %v2581
        %v3380 = vpack.c.b16 %v2585, %v2582
        %v3381 = vpack.c.b16 %v2586, %v2583
        %v3382 = vpack.c.b16 %v2590, %v2587
        %v3383 = vpack.c.b16 %v2591, %v2588
        %v3384 = vpack.c.b16 %v2592, %v2589
        %v3385 = vpack.c.b16 %v2596, %v2593
        %v3386 = vpack.c.b16 %v2597, %v2594
        %v3387 = vpack.c.b16 %v2598, %v2595
        %v3388 = vpack.c.b16 %v2602, %v2599
        %v3389 = vpack.c.b16 %v2603, %v2600
        %v3390 = vpack.c.b16 %v2604, %v2601
        %v3391 = vpack.c.b16 %v2608, %v2605
        %v3392 = vpack.c.b16 %v2609, %v2606
        %v3393 = vpack.c.b16 %v2610, %v2607
        %v3394 = vpack.c.b16 %v2614, %v2611
        %v3395 = vpack.c.b16 %v2615, %v2612
        %v3396 = vpack.c.b16 %v2616, %v2613
        %v3397 = vpack.c.b16 %v2620, %v2617
        %v3398 = vpack.c.b16 %v2621, %v2618
        %v3399 = vpack.c.b16 %v2622, %v2619
        %v3400 = vpack.c.b16 %v2626, %v2623
        %v3401 = vpack.c.b16 %v2627, %v2624
        %v3402 = vpack.c.b16 %v2628, %v2625
        %v3403 = vpack.c.b16 %v2632, %v2629
        %v3404 = vpack.c.b16 %v2633, %v2630
        %v3405 = vpack.c.b16 %v2634, %v2631
        %v3406 = vpack.c.b16 %v2638, %v2635
        %v3407 = vpack.c.b16 %v2639, %v2636
        %v3408 = vpack.c.b16 %v2640, %v2637
        %v3409 = vpack.c.b16 %v2644, %v2641
        %v3410 = vpack.c.b16 %v2645, %v2642
        %v3411 = vpack.c.b16 %v2646, %v2643
        %v3412 = vpack.c.b16 %v2650, %v2647
        %v3413 = vpack.c.b16 %v2651, %v2648
        %v3414 = vpack.c.b16 %v2652, %v2649
        %v3415 = vpack.c.b16 %v2656, %v2653
        %v3416 = vpack.c.b16 %v2657, %v2654
        %v3417 = vpack.c.b16 %v2658, %v2655
        %v3418 = vpack.c.b16 %v2662, %v2659
        %v3419 = vpack.c.b16 %v2663, %v2660
        %v3420 = vpack.c.b16 %v2664, %v2661
        %v3421 = vpack.c.b16 %v2668, %v2665
        %v3422 = vpack.c.b16 %v2669, %v2666
        %v3423 = vpack.c.b16 %v2670, %v2667
        %v3424 = vpack.c.b16 %v2674, %v2671
        %v3425 = vpack.c.b16 %v2675, %v2672
        %v3426 = vpack.c.b16 %v2676, %v2673
        %v3427 = vpack.c.b16 %v2680, %v2677
        %v3428 = vpack.c.b16 %v2681, %v2678
        %v3429 = vpack.c.b16 %v2682, %v2679
        %v3430 = vpack.c.b16 %v2686, %v2683
        %v3431 = vpack.c.b16 %v2687, %v2684
        %v3432 = vpack.c.b16 %v2688, %v2685
        %v3433 = vpack.c.b16 %v2692, %v2689
        %v3434 = vpack.c.b16 %v2693, %v2690
        %v3435 = vpack.c.b16 %v2694, %v2691
        %v3436 = vpack.c.b16 %v2698, %v2695
        %v3437 = vpack.c.b16 %v2699, %v2696
        %v3438 = vpack.c.b16 %v2700, %v2697
        %v3439 = vpack.c.b16 %v2704, %v2701
        %v3440 = vpack.c.b16 %v2705, %v2702
        %v3441 = vpack.c.b16 %v2706, %v2703
        %v3442 = vpack.c.b16 %v2710, %v2707
        %v3443 = vpack.c.b16 %v2711, %v2708
        %v3444 = vpack.c.b16 %v2712, %v2709
        %v3445 = vpack.c.b16 %v2716, %v2713
        %v3446 = vpack.c.b16 %v2717, %v2714
        %v3447 = vpack.c.b16 %v2718, %v2715
        %v3448 = vpack.c.b16 %v2722, %v2719
        %v3449 = vpack.c.b16 %v2723, %v2720
        %v3450 = vpack.c.b16 %v2724, %v2721
        %v3451 = vpack.c.b16 %v2728, %v2725
        %v3452 = vpack.c.b16 %v2729, %v2726
        %v3453 = vpack.c.b16 %v2730, %v2727
        %v3454 = vpack.c.b16 %v2734, %v2731
        %v3455 = vpack.c.b16 %v2735, %v2732
        %v3456 = vpack.c.b16 %v2736, %v2733
        %v3457 = vpack.c.b16 %v2740, %v2737
        %v3458 = vpack.c.b16 %v2741, %v2738
        %v3459 = vpack.c.b16 %v2742, %v2739
        %v3460 = vpack.c.b16 %v2746, %v2743
        %v3461 = vpack.c.b16 %v2747, %v2744
        %v3462 = vpack.c.b16 %v2748, %v2745
        %v3463 = vpack.c.b16 %v2752, %v2749
        %v3464 = vpack.c.b16 %v2753, %v2750
        %v3465 = vpack.c.b16 %v2754, %v2751
        %v3466 = vpack.c.b16 %v2758, %v2755
        %v3467 = vpack.c.b16 %v2759, %v2756
        %v3468 = vpack.c.b16 %v2760, %v2757
        %v3469 = vpack.c.b16 %v2764, %v2761
        %v3470 = vpack.c.b16 %v2765, %v2762
        %v3471 = vpack.c.b16 %v2766, %v2763
        %v3472 = vpack.c.b16 %v2770, %v2767
        %v3473 = vpack.c.b16 %v2771, %v2768
        %v3474 = vpack.c.b16 %v2772, %v2769
        %v3475 = vpack.c.b16 %v2776, %v2773
        %v3476 = vpack.c.b16 %v2777, %v2774
        %v3477 = vpack.c.b16 %v2778, %v2775
        %v3478 = vpack.c.b16 %v2782, %v2779
        %v3479 = vpack.c.b16 %v2783, %v2780
        %v3480 = vpack.c.b16 %v2784, %v2781
        %v3481 = vpack.c.b16 %v2788, %v2785
        %v3482 = vpack.c.b16 %v2789, %v2786
        %v3483 = vpack.c.b16 %v2790, %v2787
        %v3484 = vpack.c.b16 %v2794, %v2791
        %v3485 = vpack.c.b16 %v2795, %v2792
        %v3486 = vpack.c.b16 %v2796, %v2793
        %v3487 = vpack.c.b16 %v2800, %v2797
        %v3488 = vpack.c.b16 %v2801, %v2798
        %v3489 = vpack.c.b16 %v2802, %v2799
        %v3490 = vpack.c.b16 %v2806, %v2803
        %v3491 = vpack.c.b16 %v2807, %v2804
        %v3492 = vpack.c.b16 %v2808, %v2805
        %v3493 = vpack.c.b16 %v2812, %v2809
        %v3494 = vpack.c.b16 %v2813, %v2810
        %v3495 = vpack.c.b16 %v2814, %v2811
        %v3496 = vpack.c.b16 %v2818, %v2815
        %v3497 = vpack.c.b16 %v2819, %v2816
        %v3498 = vpack.c.b16 %v2820, %v2817
        %v3499 = vpack.c.b16 %v2824, %v2821
        %v3500 = vpack.c.b16 %v2825, %v2822
        %v3501 = vpack.c.b16 %v2826, %v2823
        %v3502 = vpack.c.b16 %v2830, %v2827
        %v3503 = vpack.c.b16 %v2831, %v2828
        %v3504 = vpack.c.b16 %v2832, %v2829
        %v3505 = vpack.c.b16 %v2836, %v2833
        %v3506 = vpack.c.b16 %v2837, %v2834
        %v3507 = vpack.c.b16 %v2838, %v2835
        %v3508 = vpack.c.b16 %v2842, %v2839
        %v3509 = vpack.c.b16 %v2843, %v2840
        %v3510 = vpack.c.b16 %v2844, %v2841
        %v3511 = vpack.c.b16 %v2848, %v2845
        %v3512 = vpack.c.b16 %v2849, %v2846
        %v3513 = vpack.c.b16 %v2850, %v2847
        %v3514 = vpack.c.b16 %v2854, %v2851
        %v3515 = vpack.c.b16 %v2855, %v2852
        %v3516 = vpack.c.b16 %v2856, %v2853
        %v3517 = vpack.c.b16 %v2860, %v2857
        %v3518 = vpack.c.b16 %v2861, %v2858
        %v3519 = vpack.c.b16 %v2862, %v2859
        %v3520 = vpack.c.b16 %v2866, %v2863
        %v3521 = vpack.c.b16 %v2867, %v2864
        %v3522 = vpack.c.b16 %v2868, %v2865
        %v3523 = vpack.c.b16 %v2872, %v2869
        %v3524 = vpack.c.b16 %v2873, %v2870
        %v3525 = vpack.c.b16 %v2874, %v2871
        %v3526 = vpack.c.b16 %v2878, %v2875
        %v3527 = vpack.c.b16 %v2879, %v2876
        %v3528 = vpack.c.b16 %v2880, %v2877
        %v3529 = vpack.c.b16 %v2884, %v2881
        %v3530 = vpack.c.b16 %v2885, %v2882
        %v3531 = vpack.c.b16 %v2886, %v2883
        %v3532 = vpack.c.b16 %v2890, %v2887
        %v3533 = vpack.c.b16 %v2891, %v2888
        %v3534 = vpack.c.b16 %v2892, %v2889
        %v3535 = vpack.c.b16 %v2896, %v2893
        %v3536 = vpack.c.b16 %v2897, %v2894
        %v3537 = vpack.c.b16 %v2898, %v2895
        %v3538 = vpack.c.b16 %v2902, %v2899
        %v3539 = vpack.c.b16 %v2903, %v2900
        %v3540 = vpack.c.b16 %v2904, %v2901
        %v3541 = vpack.c.b16 %v2908, %v2905
        %v3542 = vpack.c.b16 %v2909, %v2906
        %v3543 = vpack.c.b16 %v2910, %v2907
        %v3544 = vpack.c.b16 %v2914, %v2911
        %v3545 = vpack.c.b16 %v2915, %v2912
        %v3546 = vpack.c.b16 %v2916, %v2913
        %v3547 = vpack.c.b16 %v2920, %v2917
        %v3548 = vpack.c.b16 %v2921, %v2918
        %v3549 = vpack.c.b16 %v2922, %v2919
        %v3550 = vpack.c.b16 %v2926, %v2923
        %v3551 = vpack.c.b16 %v2927, %v2924
        %v3552 = vpack.c.b16 %v2928, %v2925
        %v3553 = vpack.c.b16 %v2932, %v2929
        %v3554 = vpack.c.b16 %v2933, %v2930
        %v3555 = vpack.c.b16 %v2934, %v2931
        %v3556 = vpack.c.b16 %v2938, %v2935
        %v3557 = vpack.c.b16 %v2939, %v2936
        %v3558 = vpack.c.b16 %v2940, %v2937
        %v3559 = vpack.c.b16 %v2944, %v2941
        %v3560 = vpack.c.b16 %v2945, %v2942
        %v3561 = vpack.c.b16 %v2946, %v2943
        %v3562 = vpack.c.b16 %v2950, %v2947
        %v3563 = vpack.c.b16 %v2951, %v2948
        %v3564 = vpack.c.b16 %v2952, %v2949
        %v3565 = vpack.c.b16 %v2956, %v2953
        %v3566 = vpack.c.b16 %v2957, %v2954
        %v3567 = vpack.c.b16 %v2958, %v2955
        %v3568 = vpack.c.b16 %v2962, %v2959
        %v3569 = vpack.c.b16 %v2963, %v2960
        %v3570 = vpack.c.b16 %v2964, %v2961
        %v3571 = vpack.c.b16 %v2968, %v2965
        %v3572 = vpack.c.b16 %v2969, %v2966
        %v3573 = vpack.c.b16 %v2970, %v2967
        %v3574 = vpack.c.b16 %v2974, %v2971
        %v3575 = vpack.c.b16 %v2975, %v2972
        %v3576 = vpack.c.b16 %v2976, %v2973
        %v3577 = vpack.c.b16 %v2980, %v2977
        %v3578 = vpack.c.b16 %v2981, %v2978
        %v3579 = vpack.c.b16 %v2982, %v2979
        %v3580 = vpack.c.b16 %v2986, %v2983
        %v3581 = vpack.c.b16 %v2987, %v2984
        %v3582 = vpack.c.b16 %v2988, %v2985
        %v3583 = vpack.c.b16 %v2992, %v2989
        %v3584 = vpack.c.b16 %v2993, %v2990
        %v3585 = vpack.c.b16 %v2994, %v2991
        %v3586 = vpack.c.b16 %v2998, %v2995
        %v3587 = vpack.c.b16 %v2999, %v2996
        %v3588 = vpack.c.b16 %v3000, %v2997
        %v3589 = vpack.c.b16 %v3004, %v3001
        %v3590 = vpack.c.b16 %v3005, %v3002
        %v3591 = vpack.c.b16 %v3006, %v3003
        %v3592 = vpack.c.b16 %v3010, %v3007
        %v3593 = vpack.c.b16 %v3011, %v3008
        %v3594 = vpack.c.b16 %v3012, %v3009
        %v3595 = vpack.c.b16 %v3016, %v3013
        %v3596 = vpack.c.b16 %v3017, %v3014
        %v3597 = vpack.c.b16 %v3018, %v3015
        %v3598 = vpack.c.b16 %v3022, %v3019
        %v3599 = vpack.c.b16 %v3023, %v3020
        %v3600 = vpack.c.b16 %v3024, %v3021
        %4177 = vmatprep.subr.bf16.mxu0 %v3026
        %4178 = vmatpush1.bf16.msra.mxu0 %v3025
        %4179 = vmatprep.subr.bf16.mxu0 %v3029
        %4180 = vmatpush1.bf16.msra.mxu0 %v3028
        %4181 = vmatprep.subr.bf16.mxu0 %v3032
        %4182 = vmatpush1.bf16.msra.mxu0 %v3031
        %4183 = vmatprep.subr.bf16.mxu0 %v3035
        %4184 = vmatpush1.bf16.msra.mxu0 %v3034
        %4185 = vmatprep.subr.bf16.mxu0 %v3038
        %4186 = vmatpush1.bf16.msra.mxu0 %v3037
        %4187 = vmatprep.subr.bf16.mxu0 %v3041
        %4188 = vmatpush1.bf16.msra.mxu0 %v3040
        %4189 = vmatprep.subr.bf16.mxu0 %v3044
        %4190 = vmatpush1.bf16.msra.mxu0 %v3043
        %4191 = vmatprep.subr.bf16.mxu0 %v3047
        %4192 = vmatpush1.bf16.msra.mxu0 %v3046
        %4193 = vmatprep.subr.bf16.mxu0 %v3050
        %4194 = vmatpush1.bf16.msra.mxu0 %v3049
        %4195 = vmatprep.subr.bf16.mxu0 %v3053
        %4196 = vmatpush1.bf16.msra.mxu0 %v3052
        %4197 = vmatprep.subr.bf16.mxu0 %v3056
        %4198 = vmatpush1.bf16.msra.mxu0 %v3055
        %4199 = vmatprep.subr.bf16.mxu0 %v3059
        %4200 = vmatpush1.bf16.msra.mxu0 %v3058
        %4201 = vmatprep.subr.bf16.mxu0 %v3062
        %4202 = vmatpush1.bf16.msra.mxu0 %v3061
        %4203 = vmatprep.subr.bf16.mxu0 %v3065
        %4204 = vmatpush1.bf16.msra.mxu0 %v3064
        %4205 = vmatprep.subr.bf16.mxu0 %v3068
        %4206 = vmatpush1.bf16.msra.mxu0 %v3067
        %4207 = vmatprep.subr.bf16.mxu0 %v3071
        %4208 = vmatpush1.bf16.msra.mxu0 %v3070
        %4209 = vmatprep.mubr.bf16.mxu0 %v1058
        %4210 = vmatmul.mubr.bf16.gmra.mrb[0].mxu0 %v1057
        %v4211 = vpop.f32.mrb[0].mxu0
        %v4212 = vadd.f32 0.0, %v4211
        %v4213 = vpop.f32.mrb[0].mxu0
        %v4214 = vadd.f32 0.0, %v4213
        %v4215 = vpop.f32.mrb[0].mxu0
        %v4216 = vadd.f32 0.0, %v4215
        %v4217 = vpop.f32.mrb[0].mxu0
        %v4218 = vadd.f32 0.0, %v4217
        %4219 = vdwg.mxu0
        %4220 = vmatprep.subr.bf16.mxu0 %v3074
        %4221 = vmatpush1.bf16.msra.mxu0 %v3073
        %4222 = vmatprep.subr.bf16.mxu0 %v3077
        %4223 = vmatpush1.bf16.msra.mxu0 %v3076
        %4224 = vmatprep.subr.bf16.mxu0 %v3080
        %4225 = vmatpush1.bf16.msra.mxu0 %v3079
        %4226 = vmatprep.subr.bf16.mxu0 %v3083
        %4227 = vmatpush1.bf16.msra.mxu0 %v3082
        %4228 = vmatprep.subr.bf16.mxu0 %v3086
        %4229 = vmatpush1.bf16.msra.mxu0 %v3085
        %4230 = vmatprep.subr.bf16.mxu0 %v3089
        %4231 = vmatpush1.bf16.msra.mxu0 %v3088
        %4232 = vmatprep.subr.bf16.mxu0 %v3092
        %4233 = vmatpush1.bf16.msra.mxu0 %v3091
        %4234 = vmatprep.subr.bf16.mxu0 %v3095
        %4235 = vmatpush1.bf16.msra.mxu0 %v3094
        %4236 = vmatprep.subr.bf16.mxu0 %v3098
        %4237 = vmatpush1.bf16.msra.mxu0 %v3097
        %4238 = vmatprep.subr.bf16.mxu0 %v3101
        %4239 = vmatpush1.bf16.msra.mxu0 %v3100
        %4240 = vmatprep.subr.bf16.mxu0 %v3104
        %4241 = vmatpush1.bf16.msra.mxu0 %v3103
        %4242 = vmatprep.subr.bf16.mxu0 %v3107
        %4243 = vmatpush1.bf16.msra.mxu0 %v3106
        %4244 = vmatprep.subr.bf16.mxu0 %v3110
        %4245 = vmatpush1.bf16.msra.mxu0 %v3109
        %4246 = vmatprep.subr.bf16.mxu0 %v3113
        %4247 = vmatpush1.bf16.msra.mxu0 %v3112
        %4248 = vmatprep.subr.bf16.mxu0 %v3116
        %4249 = vmatpush1.bf16.msra.mxu0 %v3115
        %4250 = vmatprep.subr.bf16.mxu0 %v3119
        %4251 = vmatpush1.bf16.msra.mxu0 %v3118
        %4252 = vmatprep.mubr.bf16.mxu0 %v1060
        %4253 = vmatmul.mubr.bf16.gmra.mrb[0].mxu0 %v1059
        %v4254 = vpop.f32.mrb[0].mxu0
        %v4255 = vadd.f32 %v4212, %v4254
        %v4256 = vpop.f32.mrb[0].mxu0
        %v4257 = vadd.f32 %v4214, %v4256
        %v4258 = vpop.f32.mrb[0].mxu0
        %v4259 = vadd.f32 %v4216, %v4258
        %v4260 = vpop.f32.mrb[0].mxu0
        %v4261 = vadd.f32 %v4218, %v4260
        %4262 = vdwg.mxu0
        %4263 = vmatprep.subr.bf16.mxu0 %v3122
        %4264 = vmatpush1.bf16.msra.mxu0 %v3121
        %4265 = vmatprep.subr.bf16.mxu0 %v3125
        %4266 = vmatpush1.bf16.msra.mxu0 %v3124
        %4267 = vmatprep.subr.bf16.mxu0 %v3128
        %4268 = vmatpush1.bf16.msra.mxu0 %v3127
        %4269 = vmatprep.subr.bf16.mxu0 %v3131
        %4270 = vmatpush1.bf16.msra.mxu0 %v3130
        %4271 = vmatprep.subr.bf16.mxu0 %v3134
        %4272 = vmatpush1.bf16.msra.mxu0 %v3133
        %4273 = vmatprep.subr.bf16.mxu0 %v3137
        %4274 = vmatpush1.bf16.msra.mxu0 %v3136
        %4275 = vmatprep.subr.bf16.mxu0 %v3140
        %4276 = vmatpush1.bf16.msra.mxu0 %v3139
        %4277 = vmatprep.subr.bf16.mxu0 %v3143
        %4278 = vmatpush1.bf16.msra.mxu0 %v3142
        %4279 = vmatprep.subr.bf16.mxu0 %v3146
        %4280 = vmatpush1.bf16.msra.mxu0 %v3145
        %4281 = vmatprep.subr.bf16.mxu0 %v3149
        %4282 = vmatpush1.bf16.msra.mxu0 %v3148
        %4283 = vmatprep.subr.bf16.mxu0 %v3152
        %4284 = vmatpush1.bf16.msra.mxu0 %v3151
        %4285 = vmatprep.subr.bf16.mxu0 %v3155
        %4286 = vmatpush1.bf16.msra.mxu0 %v3154
        %4287 = vmatprep.subr.bf16.mxu0 %v3158
        %4288 = vmatpush1.bf16.msra.mxu0 %v3157
        %4289 = vmatprep.subr.bf16.mxu0 %v3161
        %4290 = vmatpush1.bf16.msra.mxu0 %v3160
        %4291 = vmatprep.subr.bf16.mxu0 %v3164
        %4292 = vmatpush1.bf16.msra.mxu0 %v3163
        %4293 = vmatprep.subr.bf16.mxu0 %v3167
        %4294 = vmatpush1.bf16.msra.mxu0 %v3166
        %4295 = vmatprep.mubr.bf16.mxu0 %v1062
        %4296 = vmatmul.mubr.bf16.gmra.mrb[0].mxu0 %v1061
        %v4297 = vpop.f32.mrb[0].mxu0
        %v4298 = vadd.f32 %v4255, %v4297
        %v4299 = vpop.f32.mrb[0].mxu0
        %v4300 = vadd.f32 %v4257, %v4299
        %v4301 = vpop.f32.mrb[0].mxu0
        %v4302 = vadd.f32 %v4259, %v4301
        %v4303 = vpop.f32.mrb[0].mxu0
        %v4304 = vadd.f32 %v4261, %v4303
        %4305 = vdwg.mxu0
        %4306 = vmatprep.subr.bf16.mxu0 %v3170
        %4307 = vmatpush1.bf16.msra.mxu0 %v3169
        %4308 = vmatprep.subr.bf16.mxu0 %v3173
        %4309 = vmatpush1.bf16.msra.mxu0 %v3172
        %4310 = vmatprep.subr.bf16.mxu0 %v3176
        %4311 = vmatpush1.bf16.msra.mxu0 %v3175
        %4312 = vmatprep.subr.bf16.mxu0 %v3179
        %4313 = vmatpush1.bf16.msra.mxu0 %v3178
        %4314 = vmatprep.subr.bf16.mxu0 %v3182
        %4315 = vmatpush1.bf16.msra.mxu0 %v3181
        %4316 = vmatprep.subr.bf16.mxu0 %v3185
        %4317 = vmatpush1.bf16.msra.mxu0 %v3184
        %4318 = vmatprep.subr.bf16.mxu0 %v3188
        %4319 = vmatpush1.bf16.msra.mxu0 %v3187
        %4320 = vmatprep.subr.bf16.mxu0 %v3191
        %4321 = vmatpush1.bf16.msra.mxu0 %v3190
        %4322 = vmatprep.subr.bf16.mxu0 %v3194
        %4323 = vmatpush1.bf16.msra.mxu0 %v3193
        %4324 = vmatprep.subr.bf16.mxu0 %v3197
        %4325 = vmatpush1.bf16.msra.mxu0 %v3196
        %4326 = vmatprep.subr.bf16.mxu0 %v3200
        %4327 = vmatpush1.bf16.msra.mxu0 %v3199
        %4328 = vmatprep.subr.bf16.mxu0 %v3203
        %4329 = vmatpush1.bf16.msra.mxu0 %v3202
        %4330 = vmatprep.subr.bf16.mxu0 %v3206
        %4331 = vmatpush1.bf16.msra.mxu0 %v3205
        %4332 = vmatprep.subr.bf16.mxu0 %v3209
        %4333 = vmatpush1.bf16.msra.mxu0 %v3208
        %4334 = vmatprep.subr.bf16.mxu0 %v3212
        %4335 = vmatpush1.bf16.msra.mxu0 %v3211
        %4336 = vmatprep.subr.bf16.mxu0 %v3215
        %4337 = vmatpush1.bf16.msra.mxu0 %v3214
        %4338 = vmatprep.mubr.bf16.mxu0 %v1064
        %4339 = vmatmul.mubr.bf16.gmra.mrb[0].mxu0 %v1063
        %v4340 = vpop.f32.mrb[0].mxu0
        %v4341 = vadd.f32 %v4298, %v4340
        %v4342 = vpop.f32.mrb[0].mxu0
        %v4343 = vadd.f32 %v4300, %v4342
        %v4344 = vpop.f32.mrb[0].mxu0
        %v4345 = vadd.f32 %v4302, %v4344
        %v4346 = vpop.f32.mrb[0].mxu0
        %v4347 = vadd.f32 %v4304, %v4346
        %4348 = vdwg.mxu0
        %4349 = vmatprep.subr.bf16.mxu0 %v3218
        %4350 = vmatpush1.bf16.msra.mxu0 %v3217
        %4351 = vmatprep.subr.bf16.mxu0 %v3221
        %4352 = vmatpush1.bf16.msra.mxu0 %v3220
        %4353 = vmatprep.subr.bf16.mxu0 %v3224
        %4354 = vmatpush1.bf16.msra.mxu0 %v3223
        %4355 = vmatprep.subr.bf16.mxu0 %v3227
        %4356 = vmatpush1.bf16.msra.mxu0 %v3226
        %4357 = vmatprep.subr.bf16.mxu0 %v3230
        %4358 = vmatpush1.bf16.msra.mxu0 %v3229
        %4359 = vmatprep.subr.bf16.mxu0 %v3233
        %4360 = vmatpush1.bf16.msra.mxu0 %v3232
        %4361 = vmatprep.subr.bf16.mxu0 %v3236
        %4362 = vmatpush1.bf16.msra.mxu0 %v3235
        %4363 = vmatprep.subr.bf16.mxu0 %v3239
        %4364 = vmatpush1.bf16.msra.mxu0 %v3238
        %4365 = vmatprep.subr.bf16.mxu0 %v3242
        %4366 = vmatpush1.bf16.msra.mxu0 %v3241
        %4367 = vmatprep.subr.bf16.mxu0 %v3245
        %4368 = vmatpush1.bf16.msra.mxu0 %v3244
        %4369 = vmatprep.subr.bf16.mxu0 %v3248
        %4370 = vmatpush1.bf16.msra.mxu0 %v3247
        %4371 = vmatprep.subr.bf16.mxu0 %v3251
        %4372 = vmatpush1.bf16.msra.mxu0 %v3250
        %4373 = vmatprep.subr.bf16.mxu0 %v3254
        %4374 = vmatpush1.bf16.msra.mxu0 %v3253
        %4375 = vmatprep.subr.bf16.mxu0 %v3257
        %4376 = vmatpush1.bf16.msra.mxu0 %v3256
        %4377 = vmatprep.subr.bf16.mxu0 %v3260
        %4378 = vmatpush1.bf16.msra.mxu0 %v3259
        %4379 = vmatprep.subr.bf16.mxu0 %v3263
        %4380 = vmatpush1.bf16.msra.mxu0 %v3262
        %4381 = vmatprep.mubr.bf16.mxu0 %v1066
        %4382 = vmatmul.mubr.bf16.gmra.mrb[0].mxu0 %v1065
        %v4383 = vpop.f32.mrb[0].mxu0
        %v4384 = vadd.f32 %v4341, %v4383
        %v4385 = vpop.f32.mrb[0].mxu0
        %v4386 = vadd.f32 %v4343, %v4385
        %v4387 = vpop.f32.mrb[0].mxu0
        %v4388 = vadd.f32 %v4345, %v4387
        %v4389 = vpop.f32.mrb[0].mxu0
        %v4390 = vadd.f32 %v4347, %v4389
        %4391 = vdwg.mxu0
        %4392 = vmatprep.subr.bf16.mxu0 %v3266
        %4393 = vmatpush1.bf16.msra.mxu0 %v3265
        %4394 = vmatprep.subr.bf16.mxu0 %v3269
        %4395 = vmatpush1.bf16.msra.mxu0 %v3268
        %4396 = vmatprep.subr.bf16.mxu0 %v3272
        %4397 = vmatpush1.bf16.msra.mxu0 %v3271
        %4398 = vmatprep.subr.bf16.mxu0 %v3275
        %4399 = vmatpush1.bf16.msra.mxu0 %v3274
        %4400 = vmatprep.subr.bf16.mxu0 %v3278
        %4401 = vmatpush1.bf16.msra.mxu0 %v3277
        %4402 = vmatprep.subr.bf16.mxu0 %v3281
        %4403 = vmatpush1.bf16.msra.mxu0 %v3280
        %4404 = vmatprep.subr.bf16.mxu0 %v3284
        %4405 = vmatpush1.bf16.msra.mxu0 %v3283
        %4406 = vmatprep.subr.bf16.mxu0 %v3287
        %4407 = vmatpush1.bf16.msra.mxu0 %v3286
        %4408 = vmatprep.subr.bf16.mxu0 %v3290
        %4409 = vmatpush1.bf16.msra.mxu0 %v3289
        %4410 = vmatprep.subr.bf16.mxu0 %v3293
        %4411 = vmatpush1.bf16.msra.mxu0 %v3292
        %4412 = vmatprep.subr.bf16.mxu0 %v3296
        %4413 = vmatpush1.bf16.msra.mxu0 %v3295
        %4414 = vmatprep.subr.bf16.mxu0 %v3299
        %4415 = vmatpush1.bf16.msra.mxu0 %v3298
        %4416 = vmatprep.subr.bf16.mxu0 %v3302
        %4417 = vmatpush1.bf16.msra.mxu0 %v3301
        %4418 = vmatprep.subr.bf16.mxu0 %v3305
        %4419 = vmatpush1.bf16.msra.mxu0 %v3304
        %4420 = vmatprep.subr.bf16.mxu0 %v3308
        %4421 = vmatpush1.bf16.msra.mxu0 %v3307
        %4422 = vmatprep.subr.bf16.mxu0 %v3311
        %4423 = vmatpush1.bf16.msra.mxu0 %v3310
        %4424 = vmatprep.mubr.bf16.mxu0 %v1068
        %4425 = vmatmul.mubr.bf16.gmra.mrb[0].mxu0 %v1067
        %v4426 = vpop.f32.mrb[0].mxu0
        %v4427 = vadd.f32 %v4384, %v4426
        %v4428 = vpop.f32.mrb[0].mxu0
        %v4429 = vadd.f32 %v4386, %v4428
        %v4430 = vpop.f32.mrb[0].mxu0
        %v4431 = vadd.f32 %v4388, %v4430
        %v4432 = vpop.f32.mrb[0].mxu0
        %v4433 = vadd.f32 %v4390, %v4432
        %4434 = vdwg.mxu0
        %4435 = vmatprep.subr.bf16.mxu0 %v3314
        %4436 = vmatpush1.bf16.msra.mxu0 %v3313
        %4437 = vmatprep.subr.bf16.mxu0 %v3317
        %4438 = vmatpush1.bf16.msra.mxu0 %v3316
        %4439 = vmatprep.subr.bf16.mxu0 %v3320
        %4440 = vmatpush1.bf16.msra.mxu0 %v3319
        %4441 = vmatprep.subr.bf16.mxu0 %v3323
        %4442 = vmatpush1.bf16.msra.mxu0 %v3322
        %4443 = vmatprep.subr.bf16.mxu0 %v3326
        %4444 = vmatpush1.bf16.msra.mxu0 %v3325
        %4445 = vmatprep.subr.bf16.mxu0 %v3329
        %4446 = vmatpush1.bf16.msra.mxu0 %v3328
        %4447 = vmatprep.subr.bf16.mxu0 %v3332
        %4448 = vmatpush1.bf16.msra.mxu0 %v3331
        %4449 = vmatprep.subr.bf16.mxu0 %v3335
        %4450 = vmatpush1.bf16.msra.mxu0 %v3334
        %4451 = vmatprep.subr.bf16.mxu0 %v3338
        %4452 = vmatpush1.bf16.msra.mxu0 %v3337
        %4453 = vmatprep.subr.bf16.mxu0 %v3341
        %4454 = vmatpush1.bf16.msra.mxu0 %v3340
        %4455 = vmatprep.subr.bf16.mxu0 %v3344
        %4456 = vmatpush1.bf16.msra.mxu0 %v3343
        %4457 = vmatprep.subr.bf16.mxu0 %v3347
        %4458 = vmatpush1.bf16.msra.mxu0 %v3346
        %4459 = vmatprep.subr.bf16.mxu0 %v3350
        %4460 = vmatpush1.bf16.msra.mxu0 %v3349
        %4461 = vmatprep.subr.bf16.mxu0 %v3353
        %4462 = vmatpush1.bf16.msra.mxu0 %v3352
        %4463 = vmatprep.subr.bf16.mxu0 %v3356
        %4464 = vmatpush1.bf16.msra.mxu0 %v3355
        %4465 = vmatprep.subr.bf16.mxu0 %v3359
        %4466 = vmatpush1.bf16.msra.mxu0 %v3358
        %4467 = vmatprep.mubr.bf16.mxu0 %v1070
        %4468 = vmatmul.mubr.bf16.gmra.mrb[0].mxu0 %v1069
        %v4469 = vpop.f32.mrb[0].mxu0
        %v4470 = vadd.f32 %v4427, %v4469
        %v4471 = vpop.f32.mrb[0].mxu0
        %v4472 = vadd.f32 %v4429, %v4471
        %v4473 = vpop.f32.mrb[0].mxu0
        %v4474 = vadd.f32 %v4431, %v4473
        %v4475 = vpop.f32.mrb[0].mxu0
        %v4476 = vadd.f32 %v4433, %v4475
        %4477 = vdwg.mxu0
        %4478 = vmatprep.subr.bf16.mxu0 %v3362
        %4479 = vmatpush1.bf16.msra.mxu0 %v3361
        %4480 = vmatprep.subr.bf16.mxu0 %v3365
        %4481 = vmatpush1.bf16.msra.mxu0 %v3364
        %4482 = vmatprep.subr.bf16.mxu0 %v3368
        %4483 = vmatpush1.bf16.msra.mxu0 %v3367
        %4484 = vmatprep.subr.bf16.mxu0 %v3371
        %4485 = vmatpush1.bf16.msra.mxu0 %v3370
        %4486 = vmatprep.subr.bf16.mxu0 %v3374
        %4487 = vmatpush1.bf16.msra.mxu0 %v3373
        %4488 = vmatprep.subr.bf16.mxu0 %v3377
        %4489 = vmatpush1.bf16.msra.mxu0 %v3376
        %4490 = vmatprep.subr.bf16.mxu0 %v3380
        %4491 = vmatpush1.bf16.msra.mxu0 %v3379
        %4492 = vmatprep.subr.bf16.mxu0 %v3383
        %4493 = vmatpush1.bf16.msra.mxu0 %v3382
        %4494 = vmatprep.subr.bf16.mxu0 %v3386
        %4495 = vmatpush1.bf16.msra.mxu0 %v3385
        %4496 = vmatprep.subr.bf16.mxu0 %v3389
        %4497 = vmatpush1.bf16.msra.mxu0 %v3388
        %4498 = vmatprep.subr.bf16.mxu0 %v3392
        %4499 = vmatpush1.bf16.msra.mxu0 %v3391
        %4500 = vmatprep.subr.bf16.mxu0 %v3395
        %4501 = vmatpush1.bf16.msra.mxu0 %v3394
        %4502 = vmatprep.subr.bf16.mxu0 %v3398
        %4503 = vmatpush1.bf16.msra.mxu0 %v3397
        %4504 = vmatprep.subr.bf16.mxu0 %v3401
        %4505 = vmatpush1.bf16.msra.mxu0 %v3400
        %4506 = vmatprep.subr.bf16.mxu0 %v3404
        %4507 = vmatpush1.bf16.msra.mxu0 %v3403
        %4508 = vmatprep.subr.bf16.mxu0 %v3407
        %4509 = vmatpush1.bf16.msra.mxu0 %v3406
        %4510 = vmatprep.mubr.bf16.mxu0 %v1072
        %4511 = vmatmul.mubr.bf16.gmra.mrb[0].mxu0 %v1071
        %v4512 = vpop.f32.mrb[0].mxu0
        %v4513 = vadd.f32 %v4470, %v4512
        %v4514 = vpop.f32.mrb[0].mxu0
        %v4515 = vadd.f32 %v4472, %v4514
        %v4516 = vpop.f32.mrb[0].mxu0
        %v4517 = vadd.f32 %v4474, %v4516
        %v4518 = vpop.f32.mrb[0].mxu0
        %v4519 = vadd.f32 %v4476, %v4518
        %4520 = vdwg.mxu0
        %4521 = vmatprep.subr.bf16.mxu0 %v3410
        %4522 = vmatpush1.bf16.msra.mxu0 %v3409
        %4523 = vmatprep.subr.bf16.mxu0 %v3413
        %4524 = vmatpush1.bf16.msra.mxu0 %v3412
        %4525 = vmatprep.subr.bf16.mxu0 %v3416
        %4526 = vmatpush1.bf16.msra.mxu0 %v3415
        %4527 = vmatprep.subr.bf16.mxu0 %v3419
        %4528 = vmatpush1.bf16.msra.mxu0 %v3418
        %4529 = vmatprep.subr.bf16.mxu0 %v3422
        %4530 = vmatpush1.bf16.msra.mxu0 %v3421
        %4531 = vmatprep.subr.bf16.mxu0 %v3425
        %4532 = vmatpush1.bf16.msra.mxu0 %v3424
        %4533 = vmatprep.subr.bf16.mxu0 %v3428
        %4534 = vmatpush1.bf16.msra.mxu0 %v3427
        %4535 = vmatprep.subr.bf16.mxu0 %v3431
        %4536 = vmatpush1.bf16.msra.mxu0 %v3430
        %4537 = vmatprep.subr.bf16.mxu0 %v3434
        %4538 = vmatpush1.bf16.msra.mxu0 %v3433
        %4539 = vmatprep.subr.bf16.mxu0 %v3437
        %4540 = vmatpush1.bf16.msra.mxu0 %v3436
        %4541 = vmatprep.subr.bf16.mxu0 %v3440
        %4542 = vmatpush1.bf16.msra.mxu0 %v3439
        %4543 = vmatprep.subr.bf16.mxu0 %v3443
        %4544 = vmatpush1.bf16.msra.mxu0 %v3442
        %4545 = vmatprep.subr.bf16.mxu0 %v3446
        %4546 = vmatpush1.bf16.msra.mxu0 %v3445
        %4547 = vmatprep.subr.bf16.mxu0 %v3449
        %4548 = vmatpush1.bf16.msra.mxu0 %v3448
        %4549 = vmatprep.subr.bf16.mxu0 %v3452
        %4550 = vmatpush1.bf16.msra.mxu0 %v3451
        %4551 = vmatprep.subr.bf16.mxu0 %v3455
        %4552 = vmatpush1.bf16.msra.mxu0 %v3454
        %4553 = vmatprep.mubr.bf16.mxu0 %v1074
        %4554 = vmatmul.mubr.bf16.gmra.mrb[0].mxu0 %v1073
        %v4555 = vpop.f32.mrb[0].mxu0
        %v4556 = vadd.f32 %v4513, %v4555
        %v4557 = vpop.f32.mrb[0].mxu0
        %v4558 = vadd.f32 %v4515, %v4557
        %v4559 = vpop.f32.mrb[0].mxu0
        %v4560 = vadd.f32 %v4517, %v4559
        %v4561 = vpop.f32.mrb[0].mxu0
        %v4562 = vadd.f32 %v4519, %v4561
        %4563 = vdwg.mxu0
        %4564 = vmatprep.subr.bf16.mxu0 %v3458
        %4565 = vmatpush1.bf16.msra.mxu0 %v3457
        %4566 = vmatprep.subr.bf16.mxu0 %v3461
        %4567 = vmatpush1.bf16.msra.mxu0 %v3460
        %4568 = vmatprep.subr.bf16.mxu0 %v3464
        %4569 = vmatpush1.bf16.msra.mxu0 %v3463
        %4570 = vmatprep.subr.bf16.mxu0 %v3467
        %4571 = vmatpush1.bf16.msra.mxu0 %v3466
        %4572 = vmatprep.subr.bf16.mxu0 %v3470
        %4573 = vmatpush1.bf16.msra.mxu0 %v3469
        %4574 = vmatprep.subr.bf16.mxu0 %v3473
        %4575 = vmatpush1.bf16.msra.mxu0 %v3472
        %4576 = vmatprep.subr.bf16.mxu0 %v3476
        %4577 = vmatpush1.bf16.msra.mxu0 %v3475
        %4578 = vmatprep.subr.bf16.mxu0 %v3479
        %4579 = vmatpush1.bf16.msra.mxu0 %v3478
        %4580 = vmatprep.subr.bf16.mxu0 %v3482
        %4581 = vmatpush1.bf16.msra.mxu0 %v3481
        %4582 = vmatprep.subr.bf16.mxu0 %v3485
        %4583 = vmatpush1.bf16.msra.mxu0 %v3484
        %4584 = vmatprep.subr.bf16.mxu0 %v3488
        %4585 = vmatpush1.bf16.msra.mxu0 %v3487
        %4586 = vmatprep.subr.bf16.mxu0 %v3491
        %4587 = vmatpush1.bf16.msra.mxu0 %v3490
        %4588 = vmatprep.subr.bf16.mxu0 %v3494
        %4589 = vmatpush1.bf16.msra.mxu0 %v3493
        %4590 = vmatprep.subr.bf16.mxu0 %v3497
        %4591 = vmatpush1.bf16.msra.mxu0 %v3496
        %4592 = vmatprep.subr.bf16.mxu0 %v3500
        %4593 = vmatpush1.bf16.msra.mxu0 %v3499
        %4594 = vmatprep.subr.bf16.mxu0 %v3503
        %4595 = vmatpush1.bf16.msra.mxu0 %v3502
        %4596 = vmatprep.mubr.bf16.mxu0 %v1076
        %4597 = vmatmul.mubr.bf16.gmra.mrb[0].mxu0 %v1075
        %v4598 = vpop.f32.mrb[0].mxu0
        %v4599 = vadd.f32 %v4556, %v4598
        %v4600 = vpop.f32.mrb[0].mxu0
        %v4601 = vadd.f32 %v4558, %v4600
        %v4602 = vpop.f32.mrb[0].mxu0
        %v4603 = vadd.f32 %v4560, %v4602
        %v4604 = vpop.f32.mrb[0].mxu0
        %v4605 = vadd.f32 %v4562, %v4604
        %4606 = vdwg.mxu0
        %4607 = vmatprep.subr.bf16.mxu0 %v3506
        %4608 = vmatpush1.bf16.msra.mxu0 %v3505
        %4609 = vmatprep.subr.bf16.mxu0 %v3509
        %4610 = vmatpush1.bf16.msra.mxu0 %v3508
        %4611 = vmatprep.subr.bf16.mxu0 %v3512
        %4612 = vmatpush1.bf16.msra.mxu0 %v3511
        %4613 = vmatprep.subr.bf16.mxu0 %v3515
        %4614 = vmatpush1.bf16.msra.mxu0 %v3514
        %4615 = vmatprep.subr.bf16.mxu0 %v3518
        %4616 = vmatpush1.bf16.msra.mxu0 %v3517
        %4617 = vmatprep.subr.bf16.mxu0 %v3521
        %4618 = vmatpush1.bf16.msra.mxu0 %v3520
        %4619 = vmatprep.subr.bf16.mxu0 %v3524
        %4620 = vmatpush1.bf16.msra.mxu0 %v3523
        %4621 = vmatprep.subr.bf16.mxu0 %v3527
        %4622 = vmatpush1.bf16.msra.mxu0 %v3526
        %4623 = vmatprep.subr.bf16.mxu0 %v3530
        %4624 = vmatpush1.bf16.msra.mxu0 %v3529
        %4625 = vmatprep.subr.bf16.mxu0 %v3533
        %4626 = vmatpush1.bf16.msra.mxu0 %v3532
        %4627 = vmatprep.subr.bf16.mxu0 %v3536
        %4628 = vmatpush1.bf16.msra.mxu0 %v3535
        %4629 = vmatprep.subr.bf16.mxu0 %v3539
        %4630 = vmatpush1.bf16.msra.mxu0 %v3538
        %4631 = vmatprep.subr.bf16.mxu0 %v3542
        %4632 = vmatpush1.bf16.msra.mxu0 %v3541
        %4633 = vmatprep.subr.bf16.mxu0 %v3545
        %4634 = vmatpush1.bf16.msra.mxu0 %v3544
        %4635 = vmatprep.subr.bf16.mxu0 %v3548
        %4636 = vmatpush1.bf16.msra.mxu0 %v3547
        %4637 = vmatprep.subr.bf16.mxu0 %v3551
        %4638 = vmatpush1.bf16.msra.mxu0 %v3550
        %4639 = vmatprep.mubr.bf16.mxu0 %v1078
        %4640 = vmatmul.mubr.bf16.gmra.mrb[0].mxu0 %v1077
        %v4641 = vpop.f32.mrb[0].mxu0
        %v4642 = vadd.f32 %v4599, %v4641
        %v4643 = vpop.f32.mrb[0].mxu0
        %v4644 = vadd.f32 %v4601, %v4643
        %v4645 = vpop.f32.mrb[0].mxu0
        %v4646 = vadd.f32 %v4603, %v4645
        %v4647 = vpop.f32.mrb[0].mxu0
        %v4648 = vadd.f32 %v4605, %v4647
        %4649 = vdwg.mxu0
        %4650 = vmatprep.subr.bf16.mxu0 %v3554
        %4651 = vmatpush1.bf16.msra.mxu0 %v3553
        %4652 = vmatprep.subr.bf16.mxu0 %v3557
        %4653 = vmatpush1.bf16.msra.mxu0 %v3556
        %4654 = vmatprep.subr.bf16.mxu0 %v3560
        %4655 = vmatpush1.bf16.msra.mxu0 %v3559
        %4656 = vmatprep.subr.bf16.mxu0 %v3563
        %4657 = vmatpush1.bf16.msra.mxu0 %v3562
        %4658 = vmatprep.subr.bf16.mxu0 %v3566
        %4659 = vmatpush1.bf16.msra.mxu0 %v3565
        %4660 = vmatprep.subr.bf16.mxu0 %v3569
        %4661 = vmatpush1.bf16.msra.mxu0 %v3568
        %4662 = vmatprep.subr.bf16.mxu0 %v3572
        %4663 = vmatpush1.bf16.msra.mxu0 %v3571
        %4664 = vmatprep.subr.bf16.mxu0 %v3575
        %4665 = vmatpush1.bf16.msra.mxu0 %v3574
        %4666 = vmatprep.subr.bf16.mxu0 %v3578
        %4667 = vmatpush1.bf16.msra.mxu0 %v3577
        %4668 = vmatprep.subr.bf16.mxu0 %v3581
        %4669 = vmatpush1.bf16.msra.mxu0 %v3580
        %4670 = vmatprep.subr.bf16.mxu0 %v3584
        %4671 = vmatpush1.bf16.msra.mxu0 %v3583
        %4672 = vmatprep.subr.bf16.mxu0 %v3587
        %4673 = vmatpush1.bf16.msra.mxu0 %v3586
        %4674 = vmatprep.subr.bf16.mxu0 %v3590
        %4675 = vmatpush1.bf16.msra.mxu0 %v3589
        %4676 = vmatprep.subr.bf16.mxu0 %v3593
        %4677 = vmatpush1.bf16.msra.mxu0 %v3592
        %4678 = vmatprep.subr.bf16.mxu0 %v3596
        %4679 = vmatpush1.bf16.msra.mxu0 %v3595
        %4680 = vmatprep.subr.bf16.mxu0 %v3599
        %4681 = vmatpush1.bf16.msra.mxu0 %v3598
        %4682 = vmatprep.mubr.bf16.mxu0 %v1080
        %4683 = vmatmul.mubr.bf16.gmra.mrb[0].mxu0 %v1079
        %v4684 = vpop.f32.mrb[0].mxu0
        %v4685 = vadd.f32 %v4642, %v4684
        %v4686 = vpop.f32.mrb[0].mxu0
        %v4687 = vadd.f32 %v4644, %v4686
        %v4688 = vpop.f32.mrb[0].mxu0
        %v4689 = vadd.f32 %v4646, %v4688
        %v4690 = vpop.f32.mrb[0].mxu0
        %v4691 = vadd.f32 %v4648, %v4690
        %4692 = vdwg.mxu0
        %4693 = vmatprep.subr.bf16.mxu0 0
        %4694 = vmatpush1.bf16.msra.mxu0 %v3027
        %4695 = vmatprep.subr.bf16.mxu0 0
        %4696 = vmatpush1.bf16.msra.mxu0 %v3030
        %4697 = vmatprep.subr.bf16.mxu0 0
        %4698 = vmatpush1.bf16.msra.mxu0 %v3033
        %4699 = vmatprep.subr.bf16.mxu0 0
        %4700 = vmatpush1.bf16.msra.mxu0 %v3036
        %4701 = vmatprep.subr.bf16.mxu0 0
        %4702 = vmatpush1.bf16.msra.mxu0 %v3039
        %4703 = vmatprep.subr.bf16.mxu0 0
        %4704 = vmatpush1.bf16.msra.mxu0 %v3042
        %4705 = vmatprep.subr.bf16.mxu0 0
        %4706 = vmatpush1.bf16.msra.mxu0 %v3045
        %4707 = vmatprep.subr.bf16.mxu0 0
        %4708 = vmatpush1.bf16.msra.mxu0 %v3048
        %4709 = vmatprep.subr.bf16.mxu0 0
        %4710 = vmatpush1.bf16.msra.mxu0 %v3051
        %4711 = vmatprep.subr.bf16.mxu0 0
        %4712 = vmatpush1.bf16.msra.mxu0 %v3054
        %4713 = vmatprep.subr.bf16.mxu0 0
        %4714 = vmatpush1.bf16.msra.mxu0 %v3057
        %4715 = vmatprep.subr.bf16.mxu0 0
        %4716 = vmatpush1.bf16.msra.mxu0 %v3060
        %4717 = vmatprep.subr.bf16.mxu0 0
        %4718 = vmatpush1.bf16.msra.mxu0 %v3063
        %4719 = vmatprep.subr.bf16.mxu0 0
        %4720 = vmatpush1.bf16.msra.mxu0 %v3066
        %4721 = vmatprep.subr.bf16.mxu0 0
        %4722 = vmatpush1.bf16.msra.mxu0 %v3069
        %4723 = vmatprep.subr.bf16.mxu0 0
        %4724 = vmatpush1.bf16.msra.mxu0 %v3072
        %4725 = vmatprep.mubr.bf16.mxu0 %v1058
        %4726 = vmatmul.mubr.bf16.gmra.mrb[0].mxu0 %v1057
        %v4727 = vpop.f32.mrb[0].mxu0
        %v4728 = vadd.f32 0.0, %v4727
        %v4729 = vpop.f32.mrb[0].mxu0
        %v4730 = vpop.f32.mrb[0].mxu0
        %v4731 = vadd.f32 0.0, %v4730
        %v4732 = vpop.f32.mrb[0].mxu0
        %4733 = vdwg.mxu0
        %4734 = vmatprep.subr.bf16.mxu0 0
        %4735 = vmatpush1.bf16.msra.mxu0 %v3075
        %4736 = vmatprep.subr.bf16.mxu0 0
        %4737 = vmatpush1.bf16.msra.mxu0 %v3078
        %4738 = vmatprep.subr.bf16.mxu0 0
        %4739 = vmatpush1.bf16.msra.mxu0 %v3081
        %4740 = vmatprep.subr.bf16.mxu0 0
        %4741 = vmatpush1.bf16.msra.mxu0 %v3084
        %4742 = vmatprep.subr.bf16.mxu0 0
        %4743 = vmatpush1.bf16.msra.mxu0 %v3087
        %4744 = vmatprep.subr.bf16.mxu0 0
        %4745 = vmatpush1.bf16.msra.mxu0 %v3090
        %4746 = vmatprep.subr.bf16.mxu0 0
        %4747 = vmatpush1.bf16.msra.mxu0 %v3093
        %4748 = vmatprep.subr.bf16.mxu0 0
        %4749 = vmatpush1.bf16.msra.mxu0 %v3096
        %4750 = vmatprep.subr.bf16.mxu0 0
        %4751 = vmatpush1.bf16.msra.mxu0 %v3099
        %4752 = vmatprep.subr.bf16.mxu0 0
        %4753 = vmatpush1.bf16.msra.mxu0 %v3102
        %4754 = vmatprep.subr.bf16.mxu0 0
        %4755 = vmatpush1.bf16.msra.mxu0 %v3105
        %4756 = vmatprep.subr.bf16.mxu0 0
        %4757 = vmatpush1.bf16.msra.mxu0 %v3108
        %4758 = vmatprep.subr.bf16.mxu0 0
        %4759 = vmatpush1.bf16.msra.mxu0 %v3111
        %4760 = vmatprep.subr.bf16.mxu0 0
        %4761 = vmatpush1.bf16.msra.mxu0 %v3114
        %4762 = vmatprep.subr.bf16.mxu0 0
        %4763 = vmatpush1.bf16.msra.mxu0 %v3117
        %4764 = vmatprep.subr.bf16.mxu0 0
        %4765 = vmatpush1.bf16.msra.mxu0 %v3120
        %4766 = vmatprep.mubr.bf16.mxu0 %v1060
        %4767 = vmatmul.mubr.bf16.gmra.mrb[0].mxu0 %v1059
        %v4768 = vpop.f32.mrb[0].mxu0
        %v4769 = vadd.f32 %v4728, %v4768
        %v4770 = vpop.f32.mrb[0].mxu0
        %v4771 = vpop.f32.mrb[0].mxu0
        %v4772 = vadd.f32 %v4731, %v4771
        %v4773 = vpop.f32.mrb[0].mxu0
        %4774 = vdwg.mxu0
        %4775 = vmatprep.subr.bf16.mxu0 0
        %4776 = vmatpush1.bf16.msra.mxu0 %v3123
        %4777 = vmatprep.subr.bf16.mxu0 0
        %4778 = vmatpush1.bf16.msra.mxu0 %v3126
        %4779 = vmatprep.subr.bf16.mxu0 0
        %4780 = vmatpush1.bf16.msra.mxu0 %v3129
        %4781 = vmatprep.subr.bf16.mxu0 0
        %4782 = vmatpush1.bf16.msra.mxu0 %v3132
        %4783 = vmatprep.subr.bf16.mxu0 0
        %4784 = vmatpush1.bf16.msra.mxu0 %v3135
        %4785 = vmatprep.subr.bf16.mxu0 0
        %4786 = vmatpush1.bf16.msra.mxu0 %v3138
        %4787 = vmatprep.subr.bf16.mxu0 0
        %4788 = vmatpush1.bf16.msra.mxu0 %v3141
        %4789 = vmatprep.subr.bf16.mxu0 0
        %4790 = vmatpush1.bf16.msra.mxu0 %v3144
        %4791 = vmatprep.subr.bf16.mxu0 0
        %4792 = vmatpush1.bf16.msra.mxu0 %v3147
        %4793 = vmatprep.subr.bf16.mxu0 0
        %4794 = vmatpush1.bf16.msra.mxu0 %v3150
        %4795 = vmatprep.subr.bf16.mxu0 0
        %4796 = vmatpush1.bf16.msra.mxu0 %v3153
        %4797 = vmatprep.subr.bf16.mxu0 0
        %4798 = vmatpush1.bf16.msra.mxu0 %v3156
        %4799 = vmatprep.subr.bf16.mxu0 0
        %4800 = vmatpush1.bf16.msra.mxu0 %v3159
        %4801 = vmatprep.subr.bf16.mxu0 0
        %4802 = vmatpush1.bf16.msra.mxu0 %v3162
        %4803 = vmatprep.subr.bf16.mxu0 0
        %4804 = vmatpush1.bf16.msra.mxu0 %v3165
        %4805 = vmatprep.subr.bf16.mxu0 0
        %4806 = vmatpush1.bf16.msra.mxu0 %v3168
        %4807 = vmatprep.mubr.bf16.mxu0 %v1062
        %4808 = vmatmul.mubr.bf16.gmra.mrb[0].mxu0 %v1061
        %v4809 = vpop.f32.mrb[0].mxu0
        %v4810 = vadd.f32 %v4769, %v4809
        %v4811 = vpop.f32.mrb[0].mxu0
        %v4812 = vpop.f32.mrb[0].mxu0
        %v4813 = vadd.f32 %v4772, %v4812
        %v4814 = vpop.f32.mrb[0].mxu0
        %4815 = vdwg.mxu0
        %4816 = vmatprep.subr.bf16.mxu0 0
        %4817 = vmatpush1.bf16.msra.mxu0 %v3171
        %4818 = vmatprep.subr.bf16.mxu0 0
        %4819 = vmatpush1.bf16.msra.mxu0 %v3174
        %4820 = vmatprep.subr.bf16.mxu0 0
        %4821 = vmatpush1.bf16.msra.mxu0 %v3177
        %4822 = vmatprep.subr.bf16.mxu0 0
        %4823 = vmatpush1.bf16.msra.mxu0 %v3180
        %4824 = vmatprep.subr.bf16.mxu0 0
        %4825 = vmatpush1.bf16.msra.mxu0 %v3183
        %4826 = vmatprep.subr.bf16.mxu0 0
        %4827 = vmatpush1.bf16.msra.mxu0 %v3186
        %4828 = vmatprep.subr.bf16.mxu0 0
        %4829 = vmatpush1.bf16.msra.mxu0 %v3189
        %4830 = vmatprep.subr.bf16.mxu0 0
        %4831 = vmatpush1.bf16.msra.mxu0 %v3192
        %4832 = vmatprep.subr.bf16.mxu0 0
        %4833 = vmatpush1.bf16.msra.mxu0 %v3195
        %4834 = vmatprep.subr.bf16.mxu0 0
        %4835 = vmatpush1.bf16.msra.mxu0 %v3198
        %4836 = vmatprep.subr.bf16.mxu0 0
        %4837 = vmatpush1.bf16.msra.mxu0 %v3201
        %4838 = vmatprep.subr.bf16.mxu0 0
        %4839 = vmatpush1.bf16.msra.mxu0 %v3204
        %4840 = vmatprep.subr.bf16.mxu0 0
        %4841 = vmatpush1.bf16.msra.mxu0 %v3207
        %4842 = vmatprep.subr.bf16.mxu0 0
        %4843 = vmatpush1.bf16.msra.mxu0 %v3210
        %4844 = vmatprep.subr.bf16.mxu0 0
        %4845 = vmatpush1.bf16.msra.mxu0 %v3213
        %4846 = vmatprep.subr.bf16.mxu0 0
        %4847 = vmatpush1.bf16.msra.mxu0 %v3216
        %4848 = vmatprep.mubr.bf16.mxu0 %v1064
        %4849 = vmatmul.mubr.bf16.gmra.mrb[0].mxu0 %v1063
        %v4850 = vpop.f32.mrb[0].mxu0
        %v4851 = vadd.f32 %v4810, %v4850
        %v4852 = vpop.f32.mrb[0].mxu0
        %v4853 = vpop.f32.mrb[0].mxu0
        %v4854 = vadd.f32 %v4813, %v4853
        %v4855 = vpop.f32.mrb[0].mxu0
        %4856 = vdwg.mxu0
        %4857 = vmatprep.subr.bf16.mxu0 0
        %4858 = vmatpush1.bf16.msra.mxu0 %v3219
        %4859 = vmatprep.subr.bf16.mxu0 0
        %4860 = vmatpush1.bf16.msra.mxu0 %v3222
        %4861 = vmatprep.subr.bf16.mxu0 0
        %4862 = vmatpush1.bf16.msra.mxu0 %v3225
        %4863 = vmatprep.subr.bf16.mxu0 0
        %4864 = vmatpush1.bf16.msra.mxu0 %v3228
        %4865 = vmatprep.subr.bf16.mxu0 0
        %4866 = vmatpush1.bf16.msra.mxu0 %v3231
        %4867 = vmatprep.subr.bf16.mxu0 0
        %4868 = vmatpush1.bf16.msra.mxu0 %v3234
        %4869 = vmatprep.subr.bf16.mxu0 0
        %4870 = vmatpush1.bf16.msra.mxu0 %v3237
        %4871 = vmatprep.subr.bf16.mxu0 0
        %4872 = vmatpush1.bf16.msra.mxu0 %v3240
        %4873 = vmatprep.subr.bf16.mxu0 0
        %4874 = vmatpush1.bf16.msra.mxu0 %v3243
        %4875 = vmatprep.subr.bf16.mxu0 0
        %4876 = vmatpush1.bf16.msra.mxu0 %v3246
        %4877 = vmatprep.subr.bf16.mxu0 0
        %4878 = vmatpush1.bf16.msra.mxu0 %v3249
        %4879 = vmatprep.subr.bf16.mxu0 0
        %4880 = vmatpush1.bf16.msra.mxu0 %v3252
        %4881 = vmatprep.subr.bf16.mxu0 0
        %4882 = vmatpush1.bf16.msra.mxu0 %v3255
        %4883 = vmatprep.subr.bf16.mxu0 0
        %4884 = vmatpush1.bf16.msra.mxu0 %v3258
        %4885 = vmatprep.subr.bf16.mxu0 0
        %4886 = vmatpush1.bf16.msra.mxu0 %v3261
        %4887 = vmatprep.subr.bf16.mxu0 0
        %4888 = vmatpush1.bf16.msra.mxu0 %v3264
        %4889 = vmatprep.mubr.bf16.mxu0 %v1066
        %4890 = vmatmul.mubr.bf16.gmra.mrb[0].mxu0 %v1065
        %v4891 = vpop.f32.mrb[0].mxu0
        %v4892 = vadd.f32 %v4851, %v4891
        %v4893 = vpop.f32.mrb[0].mxu0
        %v4894 = vpop.f32.mrb[0].mxu0
        %v4895 = vadd.f32 %v4854, %v4894
        %v4896 = vpop.f32.mrb[0].mxu0
        %4897 = vdwg.mxu0
        %4898 = vmatprep.subr.bf16.mxu0 0
        %4899 = vmatpush1.bf16.msra.mxu0 %v3267
        %4900 = vmatprep.subr.bf16.mxu0 0
        %4901 = vmatpush1.bf16.msra.mxu0 %v3270
        %4902 = vmatprep.subr.bf16.mxu0 0
        %4903 = vmatpush1.bf16.msra.mxu0 %v3273
        %4904 = vmatprep.subr.bf16.mxu0 0
        %4905 = vmatpush1.bf16.msra.mxu0 %v3276
        %4906 = vmatprep.subr.bf16.mxu0 0
        %4907 = vmatpush1.bf16.msra.mxu0 %v3279
        %4908 = vmatprep.subr.bf16.mxu0 0
        %4909 = vmatpush1.bf16.msra.mxu0 %v3282
        %4910 = vmatprep.subr.bf16.mxu0 0
        %4911 = vmatpush1.bf16.msra.mxu0 %v3285
        %4912 = vmatprep.subr.bf16.mxu0 0
        %4913 = vmatpush1.bf16.msra.mxu0 %v3288
        %4914 = vmatprep.subr.bf16.mxu0 0
        %4915 = vmatpush1.bf16.msra.mxu0 %v3291
        %4916 = vmatprep.subr.bf16.mxu0 0
        %4917 = vmatpush1.bf16.msra.mxu0 %v3294
        %4918 = vmatprep.subr.bf16.mxu0 0
        %4919 = vmatpush1.bf16.msra.mxu0 %v3297
        %4920 = vmatprep.subr.bf16.mxu0 0
        %4921 = vmatpush1.bf16.msra.mxu0 %v3300
        %4922 = vmatprep.subr.bf16.mxu0 0
        %4923 = vmatpush1.bf16.msra.mxu0 %v3303
        %4924 = vmatprep.subr.bf16.mxu0 0
        %4925 = vmatpush1.bf16.msra.mxu0 %v3306
        %4926 = vmatprep.subr.bf16.mxu0 0
        %4927 = vmatpush1.bf16.msra.mxu0 %v3309
        %4928 = vmatprep.subr.bf16.mxu0 0
        %4929 = vmatpush1.bf16.msra.mxu0 %v3312
        %4930 = vmatprep.mubr.bf16.mxu0 %v1068
        %4931 = vmatmul.mubr.bf16.gmra.mrb[0].mxu0 %v1067
        %v4932 = vpop.f32.mrb[0].mxu0
        %v4933 = vadd.f32 %v4892, %v4932
        %v4934 = vpop.f32.mrb[0].mxu0
        %v4935 = vpop.f32.mrb[0].mxu0
        %v4936 = vadd.f32 %v4895, %v4935
        %v4937 = vpop.f32.mrb[0].mxu0
        %4938 = vdwg.mxu0
        %4939 = vmatprep.subr.bf16.mxu0 0
        %4940 = vmatpush1.bf16.msra.mxu0 %v3315
        %4941 = vmatprep.subr.bf16.mxu0 0
        %4942 = vmatpush1.bf16.msra.mxu0 %v3318
        %4943 = vmatprep.subr.bf16.mxu0 0
        %4944 = vmatpush1.bf16.msra.mxu0 %v3321
        %4945 = vmatprep.subr.bf16.mxu0 0
        %4946 = vmatpush1.bf16.msra.mxu0 %v3324
        %4947 = vmatprep.subr.bf16.mxu0 0
        %4948 = vmatpush1.bf16.msra.mxu0 %v3327
        %4949 = vmatprep.subr.bf16.mxu0 0
        %4950 = vmatpush1.bf16.msra.mxu0 %v3330
        %4951 = vmatprep.subr.bf16.mxu0 0
        %4952 = vmatpush1.bf16.msra.mxu0 %v3333
        %4953 = vmatprep.subr.bf16.mxu0 0
        %4954 = vmatpush1.bf16.msra.mxu0 %v3336
        %4955 = vmatprep.subr.bf16.mxu0 0
        %4956 = vmatpush1.bf16.msra.mxu0 %v3339
        %4957 = vmatprep.subr.bf16.mxu0 0
        %4958 = vmatpush1.bf16.msra.mxu0 %v3342
        %4959 = vmatprep.subr.bf16.mxu0 0
        %4960 = vmatpush1.bf16.msra.mxu0 %v3345
        %4961 = vmatprep.subr.bf16.mxu0 0
        %4962 = vmatpush1.bf16.msra.mxu0 %v3348
        %4963 = vmatprep.subr.bf16.mxu0 0
        %4964 = vmatpush1.bf16.msra.mxu0 %v3351
        %4965 = vmatprep.subr.bf16.mxu0 0
        %4966 = vmatpush1.bf16.msra.mxu0 %v3354
        %4967 = vmatprep.subr.bf16.mxu0 0
        %4968 = vmatpush1.bf16.msra.mxu0 %v3357
        %4969 = vmatprep.subr.bf16.mxu0 0
        %4970 = vmatpush1.bf16.msra.mxu0 %v3360
        %4971 = vmatprep.mubr.bf16.mxu0 %v1070
        %4972 = vmatmul.mubr.bf16.gmra.mrb[0].mxu0 %v1069
        %v4973 = vpop.f32.mrb[0].mxu0
        %v4974 = vadd.f32 %v4933, %v4973
        %v4975 = vpop.f32.mrb[0].mxu0
        %v4976 = vpop.f32.mrb[0].mxu0
        %v4977 = vadd.f32 %v4936, %v4976
        %v4978 = vpop.f32.mrb[0].mxu0
        %4979 = vdwg.mxu0
        %4980 = vmatprep.subr.bf16.mxu0 0
        %4981 = vmatpush1.bf16.msra.mxu0 %v3363
        %4982 = vmatprep.subr.bf16.mxu0 0
        %4983 = vmatpush1.bf16.msra.mxu0 %v3366
        %4984 = vmatprep.subr.bf16.mxu0 0
        %4985 = vmatpush1.bf16.msra.mxu0 %v3369
        %4986 = vmatprep.subr.bf16.mxu0 0
        %4987 = vmatpush1.bf16.msra.mxu0 %v3372
        %4988 = vmatprep.subr.bf16.mxu0 0
        %4989 = vmatpush1.bf16.msra.mxu0 %v3375
        %4990 = vmatprep.subr.bf16.mxu0 0
        %4991 = vmatpush1.bf16.msra.mxu0 %v3378
        %4992 = vmatprep.subr.bf16.mxu0 0
        %4993 = vmatpush1.bf16.msra.mxu0 %v3381
        %4994 = vmatprep.subr.bf16.mxu0 0
        %4995 = vmatpush1.bf16.msra.mxu0 %v3384
        %4996 = vmatprep.subr.bf16.mxu0 0
        %4997 = vmatpush1.bf16.msra.mxu0 %v3387
        %4998 = vmatprep.subr.bf16.mxu0 0
        %4999 = vmatpush1.bf16.msra.mxu0 %v3390
        %5000 = vmatprep.subr.bf16.mxu0 0
        %5001 = vmatpush1.bf16.msra.mxu0 %v3393
        %5002 = vmatprep.subr.bf16.mxu0 0
        %5003 = vmatpush1.bf16.msra.mxu0 %v3396
        %5004 = vmatprep.subr.bf16.mxu0 0
        %5005 = vmatpush1.bf16.msra.mxu0 %v3399
        %5006 = vmatprep.subr.bf16.mxu0 0
        %5007 = vmatpush1.bf16.msra.mxu0 %v3402
        %5008 = vmatprep.subr.bf16.mxu0 0
        %5009 = vmatpush1.bf16.msra.mxu0 %v3405
        %5010 = vmatprep.subr.bf16.mxu0 0
        %5011 = vmatpush1.bf16.msra.mxu0 %v3408
        %5012 = vmatprep.mubr.bf16.mxu0 %v1072
        %5013 = vmatmul.mubr.bf16.gmra.mrb[0].mxu0 %v1071
        %v5014 = vpop.f32.mrb[0].mxu0
        %v5015 = vadd.f32 %v4974, %v5014
        %v5016 = vpop.f32.mrb[0].mxu0
        %v5017 = vpop.f32.mrb[0].mxu0
        %v5018 = vadd.f32 %v4977, %v5017
        %v5019 = vpop.f32.mrb[0].mxu0
        %5020 = vdwg.mxu0
        %5021 = vmatprep.subr.bf16.mxu0 0
        %5022 = vmatpush1.bf16.msra.mxu0 %v3411
        %5023 = vmatprep.subr.bf16.mxu0 0
        %5024 = vmatpush1.bf16.msra.mxu0 %v3414
        %5025 = vmatprep.subr.bf16.mxu0 0
        %5026 = vmatpush1.bf16.msra.mxu0 %v3417
        %5027 = vmatprep.subr.bf16.mxu0 0
        %5028 = vmatpush1.bf16.msra.mxu0 %v3420
        %5029 = vmatprep.subr.bf16.mxu0 0
        %5030 = vmatpush1.bf16.msra.mxu0 %v3423
        %5031 = vmatprep.subr.bf16.mxu0 0
        %5032 = vmatpush1.bf16.msra.mxu0 %v3426
        %5033 = vmatprep.subr.bf16.mxu0 0
        %5034 = vmatpush1.bf16.msra.mxu0 %v3429
        %5035 = vmatprep.subr.bf16.mxu0 0
        %5036 = vmatpush1.bf16.msra.mxu0 %v3432
        %5037 = vmatprep.subr.bf16.mxu0 0
        %5038 = vmatpush1.bf16.msra.mxu0 %v3435
        %5039 = vmatprep.subr.bf16.mxu0 0
        %5040 = vmatpush1.bf16.msra.mxu0 %v3438
        %5041 = vmatprep.subr.bf16.mxu0 0
        %5042 = vmatpush1.bf16.msra.mxu0 %v3441
        %5043 = vmatprep.subr.bf16.mxu0 0
        %5044 = vmatpush1.bf16.msra.mxu0 %v3444
        %5045 = vmatprep.subr.bf16.mxu0 0
        %5046 = vmatpush1.bf16.msra.mxu0 %v3447
        %5047 = vmatprep.subr.bf16.mxu0 0
        %5048 = vmatpush1.bf16.msra.mxu0 %v3450
        %5049 = vmatprep.subr.bf16.mxu0 0
        %5050 = vmatpush1.bf16.msra.mxu0 %v3453
        %5051 = vmatprep.subr.bf16.mxu0 0
        %5052 = vmatpush1.bf16.msra.mxu0 %v3456
        %5053 = vmatprep.mubr.bf16.mxu0 %v1074
        %5054 = vmatmul.mubr.bf16.gmra.mrb[0].mxu0 %v1073
        %v5055 = vpop.f32.mrb[0].mxu0
        %v5056 = vadd.f32 %v5015, %v5055
        %v5057 = vpop.f32.mrb[0].mxu0
        %v5058 = vpop.f32.mrb[0].mxu0
        %v5059 = vadd.f32 %v5018, %v5058
        %v5060 = vpop.f32.mrb[0].mxu0
        %5061 = vdwg.mxu0
        %5062 = vmatprep.subr.bf16.mxu0 0
        %5063 = vmatpush1.bf16.msra.mxu0 %v3459
        %5064 = vmatprep.subr.bf16.mxu0 0
        %5065 = vmatpush1.bf16.msra.mxu0 %v3462
        %5066 = vmatprep.subr.bf16.mxu0 0
        %5067 = vmatpush1.bf16.msra.mxu0 %v3465
        %5068 = vmatprep.subr.bf16.mxu0 0
        %5069 = vmatpush1.bf16.msra.mxu0 %v3468
        %5070 = vmatprep.subr.bf16.mxu0 0
        %5071 = vmatpush1.bf16.msra.mxu0 %v3471
        %5072 = vmatprep.subr.bf16.mxu0 0
        %5073 = vmatpush1.bf16.msra.mxu0 %v3474
        %5074 = vmatprep.subr.bf16.mxu0 0
        %5075 = vmatpush1.bf16.msra.mxu0 %v3477
        %5076 = vmatprep.subr.bf16.mxu0 0
        %5077 = vmatpush1.bf16.msra.mxu0 %v3480
        %5078 = vmatprep.subr.bf16.mxu0 0
        %5079 = vmatpush1.bf16.msra.mxu0 %v3483
        %5080 = vmatprep.subr.bf16.mxu0 0
        %5081 = vmatpush1.bf16.msra.mxu0 %v3486
        %5082 = vmatprep.subr.bf16.mxu0 0
        %5083 = vmatpush1.bf16.msra.mxu0 %v3489
        %5084 = vmatprep.subr.bf16.mxu0 0
        %5085 = vmatpush1.bf16.msra.mxu0 %v3492
        %5086 = vmatprep.subr.bf16.mxu0 0
        %5087 = vmatpush1.bf16.msra.mxu0 %v3495
        %5088 = vmatprep.subr.bf16.mxu0 0
        %5089 = vmatpush1.bf16.msra.mxu0 %v3498
        %5090 = vmatprep.subr.bf16.mxu0 0
        %5091 = vmatpush1.bf16.msra.mxu0 %v3501
        %5092 = vmatprep.subr.bf16.mxu0 0
        %5093 = vmatpush1.bf16.msra.mxu0 %v3504
        %5094 = vmatprep.mubr.bf16.mxu0 %v1076
        %5095 = vmatmul.mubr.bf16.gmra.mrb[0].mxu0 %v1075
        %v5096 = vpop.f32.mrb[0].mxu0
        %v5097 = vadd.f32 %v5056, %v5096
        %v5098 = vpop.f32.mrb[0].mxu0
        %v5099 = vpop.f32.mrb[0].mxu0
        %v5100 = vadd.f32 %v5059, %v5099
        %v5101 = vpop.f32.mrb[0].mxu0
        %5102 = vdwg.mxu0
        %5103 = vmatprep.subr.bf16.mxu0 0
        %5104 = vmatpush1.bf16.msra.mxu0 %v3507
        %5105 = vmatprep.subr.bf16.mxu0 0
        %5106 = vmatpush1.bf16.msra.mxu0 %v3510
        %5107 = vmatprep.subr.bf16.mxu0 0
        %5108 = vmatpush1.bf16.msra.mxu0 %v3513
        %5109 = vmatprep.subr.bf16.mxu0 0
        %5110 = vmatpush1.bf16.msra.mxu0 %v3516
        %5111 = vmatprep.subr.bf16.mxu0 0
        %5112 = vmatpush1.bf16.msra.mxu0 %v3519
        %5113 = vmatprep.subr.bf16.mxu0 0
        %5114 = vmatpush1.bf16.msra.mxu0 %v3522
        %5115 = vmatprep.subr.bf16.mxu0 0
        %5116 = vmatpush1.bf16.msra.mxu0 %v3525
        %5117 = vmatprep.subr.bf16.mxu0 0
        %5118 = vmatpush1.bf16.msra.mxu0 %v3528
        %5119 = vmatprep.subr.bf16.mxu0 0
        %5120 = vmatpush1.bf16.msra.mxu0 %v3531
        %5121 = vmatprep.subr.bf16.mxu0 0
        %5122 = vmatpush1.bf16.msra.mxu0 %v3534
        %5123 = vmatprep.subr.bf16.mxu0 0
        %5124 = vmatpush1.bf16.msra.mxu0 %v3537
        %5125 = vmatprep.subr.bf16.mxu0 0
        %5126 = vmatpush1.bf16.msra.mxu0 %v3540
        %5127 = vmatprep.subr.bf16.mxu0 0
        %5128 = vmatpush1.bf16.msra.mxu0 %v3543
        %5129 = vmatprep.subr.bf16.mxu0 0
        %5130 = vmatpush1.bf16.msra.mxu0 %v3546
        %5131 = vmatprep.subr.bf16.mxu0 0
        %5132 = vmatpush1.bf16.msra.mxu0 %v3549
        %5133 = vmatprep.subr.bf16.mxu0 0
        %5134 = vmatpush1.bf16.msra.mxu0 %v3552
        %5135 = vmatprep.mubr.bf16.mxu0 %v1078
        %5136 = vmatmul.mubr.bf16.gmra.mrb[0].mxu0 %v1077
        %v5137 = vpop.f32.mrb[0].mxu0
        %v5138 = vadd.f32 %v5097, %v5137
        %v5139 = vpop.f32.mrb[0].mxu0
        %v5140 = vpop.f32.mrb[0].mxu0
        %v5141 = vadd.f32 %v5100, %v5140
        %v5142 = vpop.f32.mrb[0].mxu0
        %5143 = vdwg.mxu0
        %5144 = vmatprep.subr.bf16.mxu0 0
        %5145 = vmatpush1.bf16.msra.mxu0 %v3555
        %5146 = vmatprep.subr.bf16.mxu0 0
        %5147 = vmatpush1.bf16.msra.mxu0 %v3558
        %5148 = vmatprep.subr.bf16.mxu0 0
        %5149 = vmatpush1.bf16.msra.mxu0 %v3561
        %5150 = vmatprep.subr.bf16.mxu0 0
        %5151 = vmatpush1.bf16.msra.mxu0 %v3564
        %5152 = vmatprep.subr.bf16.mxu0 0
        %5153 = vmatpush1.bf16.msra.mxu0 %v3567
        %5154 = vmatprep.subr.bf16.mxu0 0
        %5155 = vmatpush1.bf16.msra.mxu0 %v3570
        %5156 = vmatprep.subr.bf16.mxu0 0
        %5157 = vmatpush1.bf16.msra.mxu0 %v3573
        %5158 = vmatprep.subr.bf16.mxu0 0
        %5159 = vmatpush1.bf16.msra.mxu0 %v3576
        %5160 = vmatprep.subr.bf16.mxu0 0
        %5161 = vmatpush1.bf16.msra.mxu0 %v3579
        %5162 = vmatprep.subr.bf16.mxu0 0
        %5163 = vmatpush1.bf16.msra.mxu0 %v3582
        %5164 = vmatprep.subr.bf16.mxu0 0
        %5165 = vmatpush1.bf16.msra.mxu0 %v3585
        %5166 = vmatprep.subr.bf16.mxu0 0
        %5167 = vmatpush1.bf16.msra.mxu0 %v3588
        %5168 = vmatprep.subr.bf16.mxu0 0
        %5169 = vmatpush1.bf16.msra.mxu0 %v3591
        %5170 = vmatprep.subr.bf16.mxu0 0
        %5171 = vmatpush1.bf16.msra.mxu0 %v3594
        %5172 = vmatprep.subr.bf16.mxu0 0
        %5173 = vmatpush1.bf16.msra.mxu0 %v3597
        %5174 = vmatprep.subr.bf16.mxu0 0
        %5175 = vmatpush1.bf16.msra.mxu0 %v3600
        %5176 = vmatprep.mubr.bf16.mxu0 %v1080
        %5177 = vmatmul.mubr.bf16.gmra.mrb[0].mxu0 %v1079
        %v5178 = vpop.f32.mrb[0].mxu0
        %v5179 = vadd.f32 %v5138, %v5178
        %v5180 = vpop.f32.mrb[0].mxu0
        %v5181 = vpop.f32.mrb[0].mxu0
        %v5182 = vadd.f32 %v5141, %v5181
        %v5183 = vpop.f32.mrb[0].mxu0
        %5184 = vdwg.mxu0
        %v5185 = vmax.f32 %v4685, 0.0
        %v5186 = vmax.f32 %v4687, 0.0
        %v5187 = vmax.f32 %v5179, 0.0
        %v5188 = vmax.f32 %v4689, 0.0
        %v5189 = vmax.f32 %v4691, 0.0
        %v5190 = vmax.f32 %v5182, 0.0
        %v5191 = vpack.c.bf16 %v5188, %v5185
        %v5192 = vpack.c.bf16 %v5189, %v5186
        %v5193 = vpack.c.bf16 %v5190, %v5187
        %v5194 = vld [vmem:[%s2] sm:$0xf]
        %v5195 = vld [vmem:[%s2 + $0x4] sm:$0xf]
        %v5196 = vld [vmem:[%s2 + $0x8] sm:$0xf]
        %v5197 = vld [vmem:[%s2 + $0xc] sm:$0xf]
        %v5198 = vld [vmem:[%s2 + $0x10] sm:$0xf]
        %v5199 = vld [vmem:[%s2 + $0x14] sm:$0xf]
        %v5200 = vld [vmem:[%s2 + $0x18] sm:$0xf]
        %v5201 = vld [vmem:[%s2 + $0x1c] sm:$0xf]
        %v5202 = vld [vmem:[%s2 + $0x20] sm:$0xf]
        %v5203 = vld [vmem:[%s2 + $0x24] sm:$0xf]
        %v5204 = vld [vmem:[%s2 + $0x28] sm:$0xf]
        %v5205 = vld [vmem:[%s2 + $0x2c] sm:$0xf]
        %v5206 = vld [vmem:[%s2 + $0x30] sm:$0xf]
        %v5207 = vld [vmem:[%s2 + $0x34] sm:$0xf]
        %v5208 = vld [vmem:[%s2 + $0x38] sm:$0xf]
        %v5209 = vld [vmem:[%s2 + $0x3c] sm:$0xf]
        %v5210 = vld [vmem:[%s2 + $0x40] sm:$0xf]
        %v5211 = vld [vmem:[%s2 + $0x44] sm:$0xf]
        %v5212 = vld [vmem:[%s2 + $0x48] sm:$0xf]
        %v5213 = vld [vmem:[%s2 + $0x4c] sm:$0xf]
        %v5214 = vld [vmem:[%s2 + $0x50] sm:$0xf]
        %v5215 = vld [vmem:[%s2 + $0x54] sm:$0xf]
        %v5216 = vld [vmem:[%s2 + $0x58] sm:$0xf]
        %v5217 = vld [vmem:[%s2 + $0x5c] sm:$0xf]
        %v5218 = vld [vmem:[%s2 + $0x60] sm:$0xf]
        %v5219 = vld [vmem:[%s2 + $0x64] sm:$0xf]
        %v5220 = vld [vmem:[%s2 + $0x68] sm:$0xf]
        %v5221 = vld [vmem:[%s2 + $0x6c] sm:$0xf]
        %v5222 = vld [vmem:[%s2 + $0x70] sm:$0xf]
        %v5223 = vld [vmem:[%s2 + $0x74] sm:$0xf]
        %v5224 = vld [vmem:[%s2 + $0x78] sm:$0xf]
        %v5225 = vld [vmem:[%s2 + $0x7c] sm:$0xf]
        %v5226 = vld [vmem:[%s2 + $0x80] sm:$0xf]
        %v5227 = vld [vmem:[%s2 + $0x84] sm:$0xf]
        %v5228 = vld [vmem:[%s2 + $0x88] sm:$0xf]
        %v5229 = vld [vmem:[%s2 + $0x8c] sm:$0xf]
        %v5230 = vld [vmem:[%s2 + $0x90] sm:$0xf]
        %v5231 = vld [vmem:[%s2 + $0x94] sm:$0xf]
        %v5232 = vld [vmem:[%s2 + $0x98] sm:$0xf]
        %v5233 = vld [vmem:[%s2 + $0x9c] sm:$0xf]
        %v5234 = vld [vmem:[%s2 + $0xa0] sm:$0xf]
        %v5235 = vld [vmem:[%s2 + $0xa4] sm:$0xf]
        %v5236 = vld [vmem:[%s2 + $0xa8] sm:$0xf]
        %v5237 = vld [vmem:[%s2 + $0xac] sm:$0xf]
        %v5238 = vld [vmem:[%s2 + $0xb0] sm:$0xf]
        %v5239 = vld [vmem:[%s2 + $0xb4] sm:$0xf]
        %v5240 = vld [vmem:[%s2 + $0xb8] sm:$0xf]
        %v5241 = vld [vmem:[%s2 + $0xbc] sm:$0xf]
        %v5290 = vunpack.c.l.b16 %v5194
        %v5291 = vunpack.c.l.b16 %v5195
        %v5292 = vunpack.c.l.b16 %v5196
        %v5293 = vunpack.c.l.b16 %v5197
        %v5294 = vunpack.c.l.b16 %v5198
        %v5295 = vunpack.c.l.b16 %v5199
        %v5296 = vunpack.c.l.b16 %v5200
        %v5297 = vunpack.c.l.b16 %v5201
        %v5298 = vunpack.c.l.b16 %v5202
        %v5299 = vunpack.c.l.b16 %v5203
        %v5300 = vunpack.c.l.b16 %v5204
        %v5301 = vunpack.c.l.b16 %v5205
        %v5302 = vunpack.c.l.b16 %v5206
        %v5303 = vunpack.c.l.b16 %v5207
        %v5304 = vunpack.c.l.b16 %v5208
        %v5305 = vunpack.c.l.b16 %v5209
        %v5306 = vunpack.c.l.b16 %v5210
        %v5307 = vunpack.c.l.b16 %v5211
        %v5308 = vunpack.c.l.b16 %v5212
        %v5309 = vunpack.c.l.b16 %v5213
        %v5310 = vunpack.c.l.b16 %v5214
        %v5311 = vunpack.c.l.b16 %v5215
        %v5312 = vunpack.c.l.b16 %v5216
        %v5313 = vunpack.c.l.b16 %v5217
        %v5314 = vunpack.c.l.b16 %v5218
        %v5315 = vunpack.c.l.b16 %v5219
        %v5316 = vunpack.c.l.b16 %v5220
        %v5317 = vunpack.c.l.b16 %v5221
        %v5318 = vunpack.c.l.b16 %v5222
        %v5319 = vunpack.c.l.b16 %v5223
        %v5320 = vunpack.c.l.b16 %v5224
        %v5321 = vunpack.c.l.b16 %v5225
        %v5322 = vunpack.c.l.b16 %v5226
        %v5323 = vunpack.c.l.b16 %v5227
        %v5324 = vunpack.c.l.b16 %v5228
        %v5325 = vunpack.c.l.b16 %v5229
        %v5326 = vunpack.c.l.b16 %v5230
        %v5327 = vunpack.c.l.b16 %v5231
        %v5328 = vunpack.c.l.b16 %v5232
        %v5329 = vunpack.c.l.b16 %v5233
        %v5330 = vunpack.c.l.b16 %v5234
        %v5331 = vunpack.c.l.b16 %v5235
        %v5332 = vunpack.c.l.b16 %v5236
        %v5333 = vunpack.c.l.b16 %v5237
        %v5334 = vunpack.c.l.b16 %v5238
        %v5335 = vunpack.c.l.b16 %v5239
        %v5336 = vunpack.c.l.b16 %v5240
        %v5337 = vunpack.c.l.b16 %v5241
        %v5338 = vpack.c.b16 %v5291, %v5290
        %v5339 = vpack.c.b16 %v5293, %v5292
        %v5340 = vpack.c.b16 %v5295, %v5294
        %v5341 = vpack.c.b16 %v5297, %v5296
        %v5342 = vpack.c.b16 %v5299, %v5298
        %v5343 = vpack.c.b16 %v5301, %v5300
        %v5344 = vpack.c.b16 %v5303, %v5302
        %v5345 = vpack.c.b16 %v5305, %v5304
        %v5346 = vpack.c.b16 %v5307, %v5306
        %v5347 = vpack.c.b16 %v5309, %v5308
        %v5348 = vpack.c.b16 %v5311, %v5310
        %v5349 = vpack.c.b16 %v5313, %v5312
        %v5350 = vpack.c.b16 %v5315, %v5314
        %v5351 = vpack.c.b16 %v5317, %v5316
        %v5352 = vpack.c.b16 %v5319, %v5318
        %v5353 = vpack.c.b16 %v5321, %v5320
        %v5354 = vpack.c.b16 %v5323, %v5322
        %v5355 = vpack.c.b16 %v5325, %v5324
        %v5356 = vpack.c.b16 %v5327, %v5326
        %v5357 = vpack.c.b16 %v5329, %v5328
        %v5358 = vpack.c.b16 %v5331, %v5330
        %v5359 = vpack.c.b16 %v5333, %v5332
        %v5360 = vpack.c.b16 %v5335, %v5334
        %v5361 = vpack.c.b16 %v5337, %v5336
        %5386 = vmatprep.subr.bf16.mxu0 0
        %5387 = vmatpush1.bf16.msra.mxu0 %v5338
        %5388 = vmatprep.subr.bf16.mxu0 0
        %5389 = vmatpush1.bf16.msra.mxu0 %v5339
        %5390 = vmatprep.subr.bf16.mxu0 0
        %5391 = vmatpush1.bf16.msra.mxu0 %v5340
        %5392 = vmatprep.subr.bf16.mxu0 0
        %5393 = vmatpush1.bf16.msra.mxu0 %v5341
        %5394 = vmatprep.subr.bf16.mxu0 0
        %5395 = vmatpush1.bf16.msra.mxu0 %v5342
        %5396 = vmatprep.subr.bf16.mxu0 0
        %5397 = vmatpush1.bf16.msra.mxu0 %v5343
        %5398 = vmatprep.subr.bf16.mxu0 0
        %5399 = vmatpush1.bf16.msra.mxu0 %v5344
        %5400 = vmatprep.subr.bf16.mxu0 0
        %5401 = vmatpush1.bf16.msra.mxu0 %v5345
        %5402 = vmatprep.subr.bf16.mxu0 0
        %5403 = vmatpush1.bf16.msra.mxu0 %v5346
        %5404 = vmatprep.subr.bf16.mxu0 0
        %5405 = vmatpush1.bf16.msra.mxu0 %v5347
        %5406 = vmatprep.subr.bf16.mxu0 0
        %5407 = vmatpush1.bf16.msra.mxu0 %v5348
        %5408 = vmatprep.subr.bf16.mxu0 0
        %5409 = vmatpush1.bf16.msra.mxu0 %v5349
        %5410 = vmatprep.subr.bf16.mxu0 0
        %5411 = vmatpush1.bf16.msra.mxu0 %v5350
        %5412 = vmatprep.subr.bf16.mxu0 0
        %5413 = vmatpush1.bf16.msra.mxu0 %v5351
        %5414 = vmatprep.subr.bf16.mxu0 0
        %5415 = vmatpush1.bf16.msra.mxu0 %v5352
        %5416 = vmatprep.subr.bf16.mxu0 0
        %5417 = vmatpush1.bf16.msra.mxu0 %v5353
        %5418 = vmatprep.mubr.bf16.mxu0 %v5192
        %5419 = vmatmul.mubr.bf16.gmra.mrb[0].mxu0 %v5191
        %v5420 = vpop.f32.mrb[0].mxu0
        %v5421 = vadd.f32 0.0, %v5420
        %v5422 = vpop.f32.mrb[0].mxu0
        %v5423 = vpop.f32.mrb[0].mxu0
        %v5424 = vadd.f32 0.0, %v5423
        %v5425 = vpop.f32.mrb[0].mxu0
        %5426 = vdwg.mxu0
        %5427 = vmatprep.subr.bf16.mxu0 0
        %5428 = vmatpush1.bf16.msra.mxu0 %v5354
        %5429 = vmatprep.subr.bf16.mxu0 0
        %5430 = vmatpush1.bf16.msra.mxu0 %v5355
        %5431 = vmatprep.subr.bf16.mxu0 0
        %5432 = vmatpush1.bf16.msra.mxu0 %v5356
        %5433 = vmatprep.subr.bf16.mxu0 0
        %5434 = vmatpush1.bf16.msra.mxu0 %v5357
        %5435 = vmatprep.subr.bf16.mxu0 0
        %5436 = vmatpush1.bf16.msra.mxu0 %v5358
        %5437 = vmatprep.subr.bf16.mxu0 0
        %5438 = vmatpush1.bf16.msra.mxu0 %v5359
        %5439 = vmatprep.subr.bf16.mxu0 0
        %5440 = vmatpush1.bf16.msra.mxu0 %v5360
        %5441 = vmatprep.subr.bf16.mxu0 0
        %5442 = vmatpush1.bf16.msra.mxu0 %v5361
        %5443 = vmatprep.subr.bf16.mxu0 0
        %5444 = vmatpush1.bf16.msra.mxu0 0
        %5445 = vmatprep.subr.bf16.mxu0 0
        %5446 = vmatpush1.bf16.msra.mxu0 0
        %5447 = vmatprep.subr.bf16.mxu0 0
        %5448 = vmatpush1.bf16.msra.mxu0 0
        %5449 = vmatprep.subr.bf16.mxu0 0
        %5450 = vmatpush1.bf16.msra.mxu0 0
        %5451 = vmatprep.subr.bf16.mxu0 0
        %5452 = vmatpush1.bf16.msra.mxu0 0
        %5453 = vmatprep.subr.bf16.mxu0 0
        %5454 = vmatpush1.bf16.msra.mxu0 0
        %5455 = vmatprep.subr.bf16.mxu0 0
        %5456 = vmatpush1.bf16.msra.mxu0 0
        %5457 = vmatprep.subr.bf16.mxu0 0
        %5458 = vmatpush1.bf16.msra.mxu0 0
        %5459 = vmatprep.mubr.bf16.mxu0 0
        %5460 = vmatmul.mubr.bf16.gmra.mrb[0].mxu0 %v5193
        %v5461 = vpop.f32.mrb[0].mxu0
        %v5462 = vadd.f32 %v5421, %v5461
        %v5463 = vpop.f32.mrb[0].mxu0
        %v5464 = vpop.f32.mrb[0].mxu0
        %v5465 = vadd.f32 %v5424, %v5464
        %v5466 = vpop.f32.mrb[0].mxu0
        %5467 = vdwg.mxu0
        %vm5468 = vcmask 80896
        %v5469 = vsel %vm5468, %v5462, -inf
        %5470 = vmax.xlane.f32.xlu0 %v5469
        %v5471 = vpop.xlane.xlu0 %5470
        %v5472 = vsel %vm5468, %v5465, -inf
        %5473 = vmax.xlane.f32.xlu0 %v5472
        %v5474 = vpop.xlane.xlu0 %5473
        %v5475 = vsub.f32 %v5462, %v5471
        %v5476 = vsub.f32 %v5465, %v5474
        %v5477 = vmul.f32 %v5475, 1.442695
        %v5478 = vpow.pop %v5477
        %v5479 = vmul.f32 %v5476, 1.442695
        %v5480 = vpow.pop %v5479
        %v5481 = vsel %vm5468, %v5478, 0.0
        %5482 = vadd.xlane.f32.xlu0 %v5481
        %v5483 = vpop.xlane.xlu0 %5482
        %v5484 = vsel %vm5468, %v5480, 0.0
        %5485 = vadd.xlane.f32.xlu0 %v5484
        %v5486 = vpop.xlane.xlu0 %5485
        %v5487 = vlog2.pop %v5483
        %v5488 = vmul.f32 %v5487, 0.6931472
        %v5489 = vlog2.pop %v5486
        %v5490 = vmul.f32 %v5489, 0.6931472
        %v5491 = vsub.f32 %v5475, %v5488
        %v5492 = vsub.f32 %v5476, %v5490
        %5493 = vst.msk [vmem:[%s190] sm:$0xff] %vm5468, %v5491
        %5494 = vst.msk [vmem:[%s190 + $0x8] sm:$0xff] %vm5468, %v5492
        %s5495 = smul.u32 2, %s15
        %p5496 = scmp.lt.s32.totalorder %s5495, 3
        %s5497 = scalar_select %p5496, %s5495, 3
        %s5498 = smul.addr %s5497, 8
        %s5499 = scalar_lea.vmem %s3, %s5498
        // Predicated region
        $region37: #{net_forward.1} parent=31 // pred_check
          %p5500 = pneg %p101
        $region38: #{net_forward.1} parent=31 // pred_check_branch
          %5502 = sbr.rel (%p5500) target = $region40
        $region39: #{net_forward.1} parent=31 // pred_region
          %s5503 = smul.u32 2, %s15
        $region40: #{net_forward.1} parent=31 // pred_fallthru
          _
      $region32: #{net_forward.1} parent=5 // pred_fallthru
        _
      %p5504 = scmp.le.s32.totalorder 2, %s10
      // Predicated region
      $region41: #{net_forward.1} parent=5 // pred_check
        %p5505 = pneg %p5504
      $region42: #{net_forward.1} parent=5 // pred_check_branch
        %5507 = sbr.rel (%p5505) target = $region44
      $region43: #{net_forward.1} parent=5 // pred_region
        %s5508 = ssub.s32 %s10, 2
        // Predicated region
        $region45: #{net_forward.1} parent=43 // pred_check
          %p5509 = pneg %p107
        $region46: #{net_forward.1} parent=43 // pred_check_branch
          %5511 = sbr.rel (%p5509) target = $region48
        $region47: #{net_forward.1} parent=43 // pred_region
          %s5512 = smul.u32 2, %s16
          %p5513 = scmp.lt.s32.totalorder %s5512, 3
          %s5514 = scalar_select %p5513, %s5512, 3
          %s5515 = smul.addr %s5514, 8
          %s5516 = scalar_lea.vmem %s3, %s5515
        $region48: #{net_forward.1} parent=43 // pred_fallthru
          _
      $region44: #{net_forward.1} parent=5 // pred_fallthru
        _
    $region6: #{net_forward.1} parent=1 // loop_footer
      %s14 = sadd.s32 1, %s10
    $region7: #{net_forward.1} parent=1 // loop_footer_branch
      %9 = sbr.rel target = $region3
    $region8: #{net_forward.1} parent=1 // loop_exit
      _
    %5517 = vsyncpa [#allocation3], 1
    %s5518 = scalar_lea.sflag [#allocation3], 1
    %5519 = vsyncpa %s5518, 1

</llo_original>
